<compile_context>
chip_gen: v5e
topology: v5e:2x2
jax: 0.10.0
libtpu: 0.0.40
codegen_flags: <defaults>
</compile_context>

<pallas_src>
import jax
import jax.numpy as jnp
from jax.experimental import pallas as pl
from jax.experimental.pallas import tpu as pltpu

EPS = 1e-5


def _vmem_limit_bytes():
    try:
        cap = int(pltpu.get_tpu_info().vmem_capacity_bytes)
        return min(100 * 1024 * 1024, (cap * 3) // 4)     # ~96 MiB on 128 MiB parts, ~48 MiB on v7x
    except Exception:
        return 64 * 1024 * 1024


VMEM_LIMIT = _vmem_limit_bytes()

# low-res tap row/col offsets (into the zero-padded low-res activation) for output parity 0 / 1
_PHASE_OFFS = ((0, 1), (1, 2))


# ----------------------------- Pallas kernels ------------------------------ #

def bn_stats_kernel(x_ref, o_ref):
    """Per-column [sum; sum-of-squares], accumulated across the row grid."""
    @pl.when(pl.program_id(0) == 0)
    def _init():
        o_ref[...] = jnp.zeros_like(o_ref)

    x = x_ref[...].astype(jnp.float32)
    s = jnp.sum(x, axis=0, keepdims=True)
    ss = jnp.sum(x * x, axis=0, keepdims=True)
    o_ref[...] = o_ref[...] + jnp.concatenate([s, ss], axis=0)


def _im2col(zwin, dr_list, dc_list, T, W):
    """Tap-major im2col (T*W, n_taps*C) from a (T+2, Wp, C) window (kept in VMEM)."""
    C = zwin.shape[-1]
    if W % 8 == 0:
        taps = [zwin[dr:dr + T, dc:dc + W, :].reshape(T * W, C)
                for dr in dr_list for dc in dc_list]
        return jnp.concatenate(taps, axis=-1)
    # fallback (odd widths): per-output-row construction
    blocks = []
    for a in range(T):
        taps = [zwin[a + dr, dc:dc + W, :] for dr in dr_list for dc in dc_list]
        blocks.append(jnp.concatenate(taps, axis=-1))
    return jnp.concatenate(blocks, axis=0)


def conv1_kernel(x_ref, scale_ref, shift_ref, w_ref, b_ref, o_ref, st_ref, zpad_ref):
    """Fused BN1+ReLU + 3x3 conv (+ fused BN2 statistics) for one (image, row-block).

    x_ref   : (1, H, W, Cin) f32   raw image (resident across row-blocks of this image)
    scale/shift : (1, Cin)          BN1 folded into y = relu(x*scale + shift)
    w_ref   : (9*Cin, F) bf16       tap-major, channel-minor
    b_ref   : (1, F)
    o_ref   : (TH*W, F) bf16        rows of the flattened (N*H*W, F) h1
    st_ref  : (1, 2, F) f32         per-image [sum; sumsq] of h1 (accumulated over r)
    zpad_ref: (H+2, W+2, Cin) bf16  zero-padded BN1+ReLU activation (built at r==0)
    """
    Hp, Wp, _ = zpad_ref.shape
    H, W = Hp - 2, Wp - 2
    TH = o_ref.shape[0] // W
    r = pl.program_id(1)

    @pl.when(r == 0)
    def _build():
        zpad_ref[...] = jnp.zeros_like(zpad_ref)
        xv = x_ref[0].astype(jnp.float32)                              # (H, W, Cin)
        z = jnp.maximum(xv * scale_ref[...] + shift_ref[...], 0.0)
        zpad_ref[1:H + 1, 1:W + 1, :] = z.astype(zpad_ref.dtype)

    row0 = r * TH
    if TH % 8 == 0:
        row0 = pl.multiple_of(row0, 8)
    zwin = zpad_ref[pl.ds(row0, TH + 2), :, :]                         # (TH+2, Wp, Cin) bf16

    xcol = _im2col(zwin, range(3), range(3), TH, W)                    # (TH*W, 9*Cin) bf16
    acc = jnp.dot(xcol, w_ref[...], preferred_element_type=jnp.float32)
    h = (acc + b_ref[...]).astype(o_ref.dtype)                         # bf16 h1 tile
    o_ref[...] = h

    # Fused BN2 statistics of the exact (bf16-rounded) values conv2 will normalize.
    hf = h.astype(jnp.float32)
    st = jnp.concatenate([jnp.sum(hf, axis=0, keepdims=True),
                          jnp.sum(hf * hf, axis=0, keepdims=True)], axis=0)   # (2, F)

    @pl.when(r == 0)
    def _init_stats():
        st_ref[...] = jnp.zeros_like(st_ref)

    st_ref[...] = st_ref[...] + st[None]


def conv2_kernel(h_ref, xsc_ref, scale_ref, shift_ref, w_ref, b2_ref,
                 wsc_ref, bsc_ref, o_ref, zpad_ref):
    """Fused BN2+ReLU + (2x nearest upsample folded into the 3x3 conv) + bias
    + 1x1 shortcut conv + residual add, phases written interleave-ready.

    h_ref   : (H*W, F) bf16        h1 rows of this image
    xsc_ref : (TA*W, Cin) f32      matching rows of the original input (shortcut path)
    w_ref   : (9F, 4F) bf16 combined phase weights, or (4, 4F, F) per-phase weights
    o_ref   : (1, TA, 2, W, 2F) f32  (n, a, pr, b, (pc,f)) -> free reshape to (N,2H,2W,F)
    zpad_ref: (H+2, W+2, F) bf16   zero-padded BN2+ReLU activation (built at r==0)
    """
    Hp, Wp, F = zpad_ref.shape
    H, W = Hp - 2, Wp - 2
    TA = o_ref.shape[1]
    r = pl.program_id(1)

    @pl.when(r == 0)
    def _build():
        zpad_ref[...] = jnp.zeros_like(zpad_ref)
        hv = h_ref[...].astype(jnp.float32)                            # (H*W, F)
        z = jnp.maximum(hv * scale_ref[...] + shift_ref[...], 0.0)
        if W % 8 == 0:
            zpad_ref[1:H + 1, 1:W + 1, :] = z.reshape(H, W, F).astype(zpad_ref.dtype)
        else:
            for i in range(H):
                zpad_ref[1 + i, 1:W + 1, :] = z[i * W:(i + 1) * W, :].astype(zpad_ref.dtype)

    row0 = r * TA
    if TA % 8 == 0:
        row0 = pl.multiple_of(row0, 8)
    zwin = zpad_ref[pl.ds(row0, TA + 2), :, :]                         # (TA+2, Wp, F) bf16

    # 1x1 shortcut conv (commutes with nearest 2x upsample): identical for all 4 phases.
    sc = jnp.dot(xsc_ref[...].astype(jnp.bfloat16), wsc_ref[...],
                 preferred_element_type=jnp.float32)
    base = sc + bsc_ref[...] + b2_ref[...]                             # (TA*W, F)

    if len(w_ref.shape) == 2:
        # Combined path (small F): one big-K matmul emits all 4 subpixel phases lane-dense.
        xcol = _im2col(zwin, range(3), range(3), TA, W)                # (TA*W, 9F)
        acc = jnp.dot(xcol, w_ref[...], preferred_element_type=jnp.float32)   # (TA*W, 4F)
        ys = [acc[:, p * F:(p + 1) * F] + base for p in range(4)]
    else:
        # Per-phase path (large F): four 2x2 convs with summed weights (2.25x fewer FLOPs).
        ys = []
        for pr in range(2):
            for pc in range(2):
                xcol = _im2col(zwin, _PHASE_OFFS[pr], _PHASE_OFFS[pc], TA, W)
                ys.append(jnp.dot(xcol, w_ref[2 * pr + pc],
                                  preferred_element_type=jnp.float32) + base)

    # Interleave the column-parity phases along lanes and store one (TA, W, 2F) slab per pr.
    for pr in range(2):
        y0, y1 = ys[2 * pr], ys[2 * pr + 1]
        if W % 8 == 0:
            row = jnp.concatenate([y0.reshape(TA, W, F), y1.reshape(TA, W, F)], axis=-1)
            o_ref[0, :, pr, :, :] = row.astype(o_ref.dtype)
        else:
            for a in range(TA):
                row = jnp.concatenate([y0[a * W:(a + 1) * W, :],
                                       y1[a * W:(a + 1) * W, :]], axis=-1)
                o_ref[0, a, pr, :, :] = row.astype(o_ref.dtype)


# ------------------------------ tiling helpers ------------------------------ #

def _pick_row_tile(M, cap=4096):
    """Largest multiple of 8 dividing M (<= cap); whole array if M % 8 != 0."""
    if M % 8 != 0:
        return M
    best, t = 8, 8
    while t <= min(M, cap):
        if M % t == 0:
            best = t
        t += 8
    return best


def _pick_conv_row_tile(H, W, target_rows=512):
    """Rows per conv tile: divides H, keeps TH*W near the MXU row budget, 8-aligned."""
    best = None
    cap = max(target_rows, W)
    for th in range(1, H + 1):
        if H % th == 0 and (th * W) % 8 == 0 and th * W <= cap:
            best = th
    return best if best is not None else H


# ------------------------------ JAX wrappers ------------------------------- #

def bn_stats(x2):
    M2, C2 = x2.shape
    TM = _pick_row_tile(M2)
    return pl.pallas_call(
        bn_stats_kernel,
        out_shape=jax.ShapeDtypeStruct((2, C2), jnp.float32),
        grid_spec=pltpu.PrefetchScalarGridSpec(
            num_scalar_prefetch=0,
            grid=(M2 // TM,),
            in_specs=[pl.BlockSpec((TM, C2), lambda i: (i, 0))],
            out_specs=pl.BlockSpec((2, C2), lambda i: (0, 0)),
        ),
        compiler_params=pltpu.CompilerParams(
            dimension_semantics=("arbitrary",),
            vmem_limit_bytes=VMEM_LIMIT),
    )(x2)


def bn_scale_shift(sums, count, gamma, beta):
    """Fold train-mode BN (batch stats, biased var) into per-channel scale/shift."""
    mean = sums[0] / count
    var = jnp.maximum(sums[1] / count - mean * mean, 0.0)
    scale = gamma * jax.lax.rsqrt(var + EPS)
    shift = beta - mean * scale
    return scale.reshape(1, -1), shift.reshape(1, -1)


def conv1_bn_relu_stats(x, scale, shift, wmat, bias):
    N, H, W, Cin = x.shape
    F = wmat.shape[1]
    TH = _pick_conv_row_tile(H, W)
    R = H // TH
    return pl.pallas_call(
        conv1_kernel,
        out_shape=(jax.ShapeDtypeStruct((N * H * W, F), jnp.bfloat16),
                   jax.ShapeDtypeStruct((N, 2, F), jnp.float32)),
        grid_spec=pltpu.PrefetchScalarGridSpec(
            num_scalar_prefetch=0,
            grid=(N, R),
            in_specs=[
                pl.BlockSpec((1, H, W, Cin), lambda n, r: (n, 0, 0, 0)),
                pl.BlockSpec((1, Cin), lambda n, r: (0, 0)),
                pl.BlockSpec((1, Cin), lambda n, r: (0, 0)),
                pl.BlockSpec((9 * Cin, F), lambda n, r: (0, 0)),
                pl.BlockSpec((1, F), lambda n, r: (0, 0)),
            ],
            out_specs=(
                pl.BlockSpec((TH * W, F), lambda n, r, R=R: (n * R + r, 0)),
                pl.BlockSpec((1, 2, F), lambda n, r: (n, 0, 0)),
            ),
            scratch_shapes=[pltpu.VMEM((H + 2, W + 2, Cin), jnp.bfloat16)],
        ),
        compiler_params=pltpu.CompilerParams(
            dimension_semantics=("parallel", "arbitrary"),
            vmem_limit_bytes=VMEM_LIMIT),
    )(x, scale, shift, wmat, bias)


def conv2_up_shortcut_add(h1, x2, scale, shift, w2, b2, wsc, bsc, N, H, W):
    F = b2.shape[1]
    Cin = wsc.shape[0]
    TA = _pick_conv_row_tile(H, W)
    R = H // TA
    w_spec = (pl.BlockSpec(w2.shape, lambda n, r: (0, 0)) if w2.ndim == 2
              else pl.BlockSpec(w2.shape, lambda n, r: (0, 0, 0)))
    return pl.pallas_call(
        conv2_kernel,
        out_shape=jax.ShapeDtypeStruct((N, H, 2, W, 2 * F), jnp.float32),
        grid_spec=pltpu.PrefetchScalarGridSpec(
            num_scalar_prefetch=0,
            grid=(N, R),
            in_specs=[
                pl.BlockSpec((H * W, F), lambda n, r: (n, 0)),
                pl.BlockSpec((TA * W, Cin), lambda n, r, R=R: (n * R + r, 0)),
                pl.BlockSpec((1, F), lambda n, r: (0, 0)),
                pl.BlockSpec((1, F), lambda n, r: (0, 0)),
                w_spec,
                pl.BlockSpec((1, F), lambda n, r: (0, 0)),
                pl.BlockSpec((Cin, F), lambda n, r: (0, 0)),
                pl.BlockSpec((1, F), lambda n, r: (0, 0)),
            ],
            out_specs=pl.BlockSpec((1, TA, 2, W, 2 * F),
                                   lambda n, r: (n, r, 0, 0, 0)),
            scratch_shapes=[pltpu.VMEM((H + 2, W + 2, F), jnp.bfloat16)],
        ),
        compiler_params=pltpu.CompilerParams(
            dimension_semantics=("parallel", "arbitrary"),
            vmem_limit_bytes=VMEM_LIMIT),
    )(h1, x2, scale, shift, w2, b2, wsc, bsc)


def phase_weights(w_hwio):
    """Per-phase 2x2 summed weights (4, 4*Cin, Cout) — used when F is large."""
    groups = ((slice(0, 1), slice(1, 3)),   # parity 0: offset0 <- {0}, offset1 <- {1,2}
              (slice(0, 2), slice(2, 3)))   # parity 1: offset0 <- {0,1}, offset1 <- {2}
    mats = []
    for pr in range(2):
        for pc in range(2):
            blocks = [w_hwio[groups[pr][i], groups[pc][j]].sum(axis=(0, 1))
                      for i in range(2) for j in range(2)]
            mats.append(jnp.concatenate(blocks, axis=0))
    return jnp.stack(mats, axis=0)


def combined_phase_weights(w_hwio):
    """All-phase weight (9*Cin, 4*Cout): 9-tap rows, phase-stacked columns — used for small F."""
    Fi, Fo = w_hwio.shape[2], w_hwio.shape[3]
    groups = ((slice(0, 1), slice(1, 3)), (slice(0, 2), slice(2, 3)))
    w_all = jnp.zeros((3, 3, Fi, 4, Fo), jnp.float32)
    for pr in range(2):
        for pc in range(2):
            p = 2 * pr + pc
            for i in range(2):
                for j in range(2):
                    dr, dc = _PHASE_OFFS[pr][i], _PHASE_OFFS[pc][j]
                    blk = w_hwio[groups[pr][i], groups[pc][j]].sum(axis=(0, 1))
                    w_all = w_all.at[dr, dc, :, p, :].set(blk)
    return w_all.reshape(9 * Fi, 4 * Fo)


# ------------------------------ module params ------------------------------ #

def init_params(key, in_dim, n_filters, k=3):
    keys = jax.random.split(key, 10)

    def conv_w(kk, kh, kw, cin, cout):
        bound = 1.0 / jnp.sqrt(jnp.float32(kh * kw * cin))
        return jax.random.uniform(kk, (kh, kw, cin, cout), jnp.float32, -bound, bound)

    return dict(
        bn1_gamma=1.0 + 0.1 * jax.random.normal(keys[0], (in_dim,), jnp.float32),
        bn1_beta=0.1 * jax.random.normal(keys[1], (in_dim,), jnp.float32),
        conv1_w=conv_w(keys[2], k, k, in_dim, n_filters),
        conv1_b=0.1 * jax.random.normal(keys[3], (n_filters,), jnp.float32),
        bn2_gamma=1.0 + 0.1 * jax.random.normal(keys[4], (n_filters,), jnp.float32),
        bn2_beta=0.1 * jax.random.normal(keys[5], (n_filters,), jnp.float32),
        conv2_w=conv_w(keys[6], k, k, n_filters, n_filters),
        conv2_b=0.1 * jax.random.normal(keys[7], (n_filters,), jnp.float32),
        sc_w=conv_w(keys[8], 1, 1, in_dim, n_filters),
        sc_b=0.1 * jax.random.normal(keys[9], (n_filters,), jnp.float32),
    )


@jax.jit
def resnet_block_up(params, x_nchw):
    x = jnp.transpose(x_nchw, (0, 2, 3, 1))                  # NCHW -> NHWC (boundary glue)
    N, H, W, Cin = x.shape
    F = params["conv1_b"].shape[0]
    M = N * H * W

    # ---- BN1 statistics over lane-dense (N*H, W*Cin) blocks ----
    s1 = bn_stats(x.reshape(N * H, W * Cin)).reshape(2, W, Cin).sum(axis=1)
    scale1, shift1 = bn_scale_shift(s1, M, params["bn1_gamma"], params["bn1_beta"])

    # ---- fused BN1+ReLU + conv1 (+ fused BN2 stats), h1 emitted in bf16 ----
    w1 = params["conv1_w"].reshape(9 * Cin, F).astype(jnp.bfloat16)
    h1, s2n = conv1_bn_relu_stats(x, scale1, shift1, w1, params["conv1_b"].reshape(1, F))
    s2 = s2n.sum(axis=0)                                      # (2, F), no HBM re-read of h1
    scale2, shift2 = bn_scale_shift(s2, M, params["bn2_gamma"], params["bn2_beta"])

    # ---- fused BN2+ReLU + upsample-folded conv2 + shortcut + residual ----
    combine = 4 * F <= 256                                    # combined matmul only when F is small
    w2 = (combined_phase_weights(params["conv2_w"]) if combine
          else phase_weights(params["conv2_w"])).astype(jnp.bfloat16)
    wsc = params["sc_w"].reshape(Cin, F).astype(jnp.bfloat16)

    out5 = conv2_up_shortcut_add(
        h1, x.reshape(M, Cin), scale2, shift2, w2,
        params["conv2_b"].reshape(1, F), wsc, params["sc_b"].reshape(1, F),
        N, H, W)
    out = out5.reshape(N, 2 * H, 2 * W, F)                    # free reinterpretation
    return jnp.transpose(out, (0, 3, 1, 2))                   # NHWC -> NCHW (boundary glue)


# --------------------------- pure-JAX reference ----------------------------- #

def reference(params, x_nchw):
    x = jnp.transpose(x_nchw, (0, 2, 3, 1))

    def bn_relu_ref(v, g, b):
        m = jnp.mean(v, axis=(0, 1, 2), keepdims=True)
        var = jnp.mean((v - m) ** 2, axis=(0, 1, 2), keepdims=True)
        return jnp.maximum((v - m) / jnp.sqrt(var + EPS) * g + b, 0.0)

    def conv_ref(v, w, b, pad):
        y = jax.lax.conv_general_dilated(
            v, w, (1, 1), [(pad, pad), (pad, pad)],
            dimension_numbers=("NHWC", "HWIO", "NHWC"))
        return y + b

    def up(v):
        return jnp.repeat(jnp.repeat(v, 2, axis=1), 2, axis=2)

    h = bn_relu_ref(x, params["bn1_gamma"], params["bn1_beta"])
    h = conv_ref(h, params["conv1_w"], params["conv1_b"], 1)
    h = bn_relu_ref(h, params["bn2_gamma"], params["bn2_beta"])
    h = conv_ref(up(h), params["conv2_w"], params["conv2_b"], 1)
    s = conv_ref(up(x), params["sc_w"], params["sc_b"], 0)
    return jnp.transpose(s + h, (0, 3, 1, 2))


if __name__ == "__main__":
    key = jax.random.PRNGKey(0)
    kx, kp = jax.random.split(key)

    N, C, H, W = 2, 4, 16, 16          # small SNGAN-like shapes
    n_filters = 32

    x = jax.random.normal(kx, (N, C, H, W), jnp.float32)   # PyTorch NCHW input
    params = init_params(kp, C, n_filters)

    out = jax.block_until_ready(resnet_block_up(params, x))
    assert out.shape == (N, n_filters, 2 * H, 2 * W), out.shape

    ref = jax.block_until_ready(reference(params, x))
    max_err = float(jnp.max(jnp.abs(out - ref)))
    assert jnp.allclose(out, ref, atol=5e-2, rtol=5e-2), max_err

    print("KERNEL_OK")
</pallas_src>

<mosaic_0001>
module attributes {stable_mosaic.version = 11 : i64} {
  func.func @bn_stats_kernel(%arg0: i32, %arg1: memref<32x64xf32, #tpu.memory_space<vmem>>, %arg2: memref<2x64xf32, #tpu.memory_space<vmem>>) attributes {dimension_semantics = [#tpu.dimension_semantics<arbitrary>], iteration_bounds = array<i64: 1>, scalar_prefetch = 0 : i64, scratch_operands = 0 : i64, tpu.core_type = #tpu.core_type<tc>, window_params = [{transform_indices = @transform_0, window_bounds = array<i64: 32, 64>}, {pipeline_mode = #tpu.pipeline_mode<synchronous>, transform_indices = @transform_1, window_bounds = array<i64: 2, 64>}]} {
    %c0_i32 = arith.constant 0 : i32
    %0 = arith.cmpi eq, %arg0, %c0_i32 : i32
    %1 = arith.extui %0 : i1 to i32
    %c0_i32_0 = arith.constant 0 : i32
    %2 = arith.cmpi ne, %1, %c0_i32_0 : i32
    scf.if %2 {
      %cst_7 = arith.constant 0.000000e+00 : f32
      %13 = vector.broadcast %cst_7 : f32 to vector<2x64xf32>
      %c0_8 = arith.constant 0 : index
      %c0_9 = arith.constant 0 : index
      %14 = vector.load %arg2[%c0_8, %c0_9] : memref<2x64xf32, #tpu.memory_space<vmem>>, vector<2x64xf32>
      tpu.vector_store %arg2[%c0_8, %c0_9], %13 {strides = array<i32>} : memref<2x64xf32, #tpu.memory_space<vmem>>, vector<2x64xf32>,
    } else {
    }
    %c0 = arith.constant 0 : index
    %c0_1 = arith.constant 0 : index
    %3 = vector.load %arg1[%c0, %c0_1] : memref<32x64xf32, #tpu.memory_space<vmem>>, vector<32x64xf32>
    %cst = arith.constant dense<0.000000e+00> : vector<64xf32>
    %4 = vector.multi_reduction <add>, %3, %cst [0] : vector<32x64xf32> to vector<64xf32>
    %5 = vector.shape_cast %4 : vector<64xf32> to vector<1x64xf32>
    %6 = arith.mulf %3, %3 : vector<32x64xf32>
    %cst_2 = arith.constant dense<0.000000e+00> : vector<64xf32>
    %7 = vector.multi_reduction <add>, %6, %cst_2 [0] : vector<32x64xf32> to vector<64xf32>
    %8 = vector.shape_cast %7 : vector<64xf32> to vector<1x64xf32>
    %c0_3 = arith.constant 0 : index
    %c0_4 = arith.constant 0 : index
    %9 = vector.load %arg2[%c0_3, %c0_4] : memref<2x64xf32, #tpu.memory_space<vmem>>, vector<2x64xf32>
    %10 = tpu.concatenate %5, %8 in 0 : vector<1x64xf32>, vector<1x64xf32> -> vector<2x64xf32>
    %11 = arith.addf %9, %10 : vector<2x64xf32>
    %c0_5 = arith.constant 0 : index
    %c0_6 = arith.constant 0 : index
    %12 = vector.load %arg2[%c0_5, %c0_6] : memref<2x64xf32, #tpu.memory_space<vmem>>, vector<2x64xf32>
    tpu.vector_store %arg2[%c0_5, %c0_6], %11 {strides = array<i32>} : memref<2x64xf32, #tpu.memory_space<vmem>>, vector<2x64xf32>,
    return
  }
  func.func @transform_0(%arg0: i32) -> (i32, i32) {
    %c0_i32 = arith.constant 0 : i32
    %c0_i32_0 = arith.constant 0 : i32
    return %arg0, %c0_i32 : i32, i32
  }
  func.func @transform_1(%arg0: i32) -> (i32, i32) {
    %c0_i32 = arith.constant 0 : i32
    %c0_i32_0 = arith.constant 0 : i32
    %c0_i32_1 = arith.constant 0 : i32
    return %c0_i32, %c0_i32_0 : i32, i32
  }
}

module attributes {stable_mosaic.version = 11 : i64} {
  func.func @conv1_kernel(%arg0: i32, %arg1: i32, %arg2: memref<1x16x16x4xf32, #tpu.memory_space<vmem>>, %arg3: memref<1x4xf32, #tpu.memory_space<vmem>>, %arg4: memref<1x4xf32, #tpu.memory_space<vmem>>, %arg5: memref<36x32xbf16, #tpu.memory_space<vmem>>, %arg6: memref<1x32xf32, #tpu.memory_space<vmem>>, %arg7: memref<256x32xbf16, #tpu.memory_space<vmem>>, %arg8: memref<1x2x32xf32, #tpu.memory_space<vmem>>, %arg9: memref<18x18x4xbf16, #tpu.memory_space<vmem>>) attributes {dimension_semantics = [#tpu.dimension_semantics<parallel>, #tpu.dimension_semantics<arbitrary>], iteration_bounds = array<i64: 2, 1>, scalar_prefetch = 0 : i64, scratch_operands = 1 : i64, tpu.core_type = #tpu.core_type<tc>, window_params = [{transform_indices = @transform_0, window_bounds = array<i64: 1, 16, 16, 4>}, {pipeline_mode = #tpu.pipeline_mode<synchronous>, transform_indices = @transform_1, window_bounds = array<i64: 1, 4>}, {pipeline_mode = #tpu.pipeline_mode<synchronous>, transform_indices = @transform_2, window_bounds = array<i64: 1, 4>}, {pipeline_mode = #tpu.pipeline_mode<synchronous>, transform_indices = @transform_3, window_bounds = array<i64: 36, 32>}, {pipeline_mode = #tpu.pipeline_mode<synchronous>, transform_indices = @transform_4, window_bounds = array<i64: 1, 32>}, {transform_indices = @transform_5, window_bounds = array<i64: 256, 32>}, {transform_indices = @transform_6, window_bounds = array<i64: 1, 2, 32>}]} {
    %c0_i32 = arith.constant 0 : i32
    %0 = arith.cmpi eq, %arg1, %c0_i32 : i32
    %1 = arith.extui %0 : i1 to i32
    %c0_i32_0 = arith.constant 0 : i32
    %2 = arith.cmpi ne, %1, %c0_i32_0 : i32
    scf.if %2 {
      %cst_18 = arith.constant 0.000000e+00 : bf16
      %47 = vector.broadcast %cst_18 : bf16 to vector<18x18x4xbf16>
      %c0_19 = arith.constant 0 : index
      %c0_20 = arith.constant 0 : index
      %c0_21 = arith.constant 0 : index
      %48 = vector.load %arg9[%c0_19, %c0_20, %c0_21] : memref<18x18x4xbf16, #tpu.memory_space<vmem>>, vector<18x18x4xbf16>
      tpu.vector_store %arg9[%c0_19, %c0_20, %c0_21], %47 {strides = array<i32>} : memref<18x18x4xbf16, #tpu.memory_space<vmem>>, vector<18x18x4xbf16>,
      %c0_22 = arith.constant 0 : index
      %c0_23 = arith.constant 0 : index
      %c0_24 = arith.constant 0 : index
      %c0_25 = arith.constant 0 : index
      %49 = vector.load %arg2[%c0_22, %c0_23, %c0_24, %c0_25] : memref<1x16x16x4xf32, #tpu.memory_space<vmem>>, vector<1x16x16x4xf32>
      %50 = vector.shape_cast %49 : vector<1x16x16x4xf32> to vector<16x16x4xf32>
      %c0_26 = arith.constant 0 : index
      %c0_27 = arith.constant 0 : index
      %51 = vector.load %arg3[%c0_26, %c0_27] : memref<1x4xf32, #tpu.memory_space<vmem>>, vector<1x4xf32>
      %52 = vector.shape_cast %51 : vector<1x4xf32> to vector<1x1x4xf32>
      %53 = vector.broadcast %52 : vector<1x1x4xf32> to vector<16x16x4xf32>
      %54 = arith.mulf %50, %53 : vector<16x16x4xf32>
      %c0_28 = arith.constant 0 : index
      %c0_29 = arith.constant 0 : index
      %55 = vector.load %arg4[%c0_28, %c0_29] : memref<1x4xf32, #tpu.memory_space<vmem>>, vector<1x4xf32>
      %56 = vector.shape_cast %55 : vector<1x4xf32> to vector<1x1x4xf32>
      %57 = vector.broadcast %56 : vector<1x1x4xf32> to vector<16x16x4xf32>
      %58 = arith.addf %54, %57 : vector<16x16x4xf32>
      %cst_30 = arith.constant 0.000000e+00 : f32
      %59 = vector.broadcast %cst_30 : f32 to vector<16x16x4xf32>
      %60 = arith.maximumf %58, %59 : vector<16x16x4xf32>
      %61 = arith.truncf %60 : vector<16x16x4xf32> to vector<16x16x4xbf16>
      %c1 = arith.constant 1 : index
      %c1_31 = arith.constant 1 : index
      %c0_32 = arith.constant 0 : index
      %62 = vector.load %arg9[%c1, %c1_31, %c0_32] : memref<18x18x4xbf16, #tpu.memory_space<vmem>>, vector<16x16x4xbf16>
      tpu.vector_store %arg9[%c1, %c1_31, %c0_32], %61 {strides = array<i32>} : memref<18x18x4xbf16, #tpu.memory_space<vmem>>, vector<16x16x4xbf16>,
    } else {
    }
    %c16_i32 = arith.constant 16 : i32
    %3 = arith.muli %arg1, %c16_i32 : i32
    %4 = tpu.assume_multiple %3, 8 : i32
    %5 = arith.index_cast %4 : i32 to index
    %c0 = arith.constant 0 : index
    %c0_1 = arith.constant 0 : index
    %6 = vector.load %arg9[%5, %c0, %c0_1] : memref<18x18x4xbf16, #tpu.memory_space<vmem>>, vector<18x18x4xbf16>
    %7 = vector.extract_strided_slice %6 {offsets = [0, 0, 0], sizes = [16, 16, 4], strides = [1, 1, 1]} : vector<18x18x4xbf16> to vector<16x16x4xbf16>
    %8 = vector.shape_cast %7 : vector<16x16x4xbf16> to vector<256x4xbf16>
    %9 = vector.extract_strided_slice %6 {offsets = [0, 1, 0], sizes = [16, 16, 4], strides = [1, 1, 1]} : vector<18x18x4xbf16> to vector<16x16x4xbf16>
    %10 = vector.shape_cast %9 : vector<16x16x4xbf16> to vector<256x4xbf16>
    %11 = vector.extract_strided_slice %6 {offsets = [0, 2, 0], sizes = [16, 16, 4], strides = [1, 1, 1]} : vector<18x18x4xbf16> to vector<16x16x4xbf16>
    %12 = vector.shape_cast %11 : vector<16x16x4xbf16> to vector<256x4xbf16>
    %13 = vector.extract_strided_slice %6 {offsets = [1, 0, 0], sizes = [16, 16, 4], strides = [1, 1, 1]} : vector<18x18x4xbf16> to vector<16x16x4xbf16>
    %14 = vector.shape_cast %13 : vector<16x16x4xbf16> to vector<256x4xbf16>
    %15 = vector.extract_strided_slice %6 {offsets = [1, 1, 0], sizes = [16, 16, 4], strides = [1, 1, 1]} : vector<18x18x4xbf16> to vector<16x16x4xbf16>
    %16 = vector.shape_cast %15 : vector<16x16x4xbf16> to vector<256x4xbf16>
    %17 = vector.extract_strided_slice %6 {offsets = [1, 2, 0], sizes = [16, 16, 4], strides = [1, 1, 1]} : vector<18x18x4xbf16> to vector<16x16x4xbf16>
    %18 = vector.shape_cast %17 : vector<16x16x4xbf16> to vector<256x4xbf16>
    %19 = vector.extract_strided_slice %6 {offsets = [2, 0, 0], sizes = [16, 16, 4], strides = [1, 1, 1]} : vector<18x18x4xbf16> to vector<16x16x4xbf16>
    %20 = vector.shape_cast %19 : vector<16x16x4xbf16> to vector<256x4xbf16>
    %21 = vector.extract_strided_slice %6 {offsets = [2, 1, 0], sizes = [16, 16, 4], strides = [1, 1, 1]} : vector<18x18x4xbf16> to vector<16x16x4xbf16>
    %22 = vector.shape_cast %21 : vector<16x16x4xbf16> to vector<256x4xbf16>
    %23 = vector.extract_strided_slice %6 {offsets = [2, 2, 0], sizes = [16, 16, 4], strides = [1, 1, 1]} : vector<18x18x4xbf16> to vector<16x16x4xbf16>
    %24 = vector.shape_cast %23 : vector<16x16x4xbf16> to vector<256x4xbf16>
    %25 = tpu.concatenate %8, %10, %12, %14, %16, %18, %20, %22, %24 in 1 : vector<256x4xbf16>, vector<256x4xbf16>, vector<256x4xbf16>, vector<256x4xbf16>, vector<256x4xbf16>, vector<256x4xbf16>, vector<256x4xbf16>, vector<256x4xbf16>, vector<256x4xbf16> -> vector<256x36xbf16>
    %c0_2 = arith.constant 0 : index
    %c0_3 = arith.constant 0 : index
    %26 = vector.load %arg5[%c0_2, %c0_3] : memref<36x32xbf16, #tpu.memory_space<vmem>>, vector<36x32xbf16>
    %cst = arith.constant dense<0.000000e+00> : vector<256x32xf32>
    %27 = tpu.matmul %25, %26, %cst {dimension_numbers = #tpu.dot_dimension_numbers<[1], [0], [0], [1], [0, 0, 1, 1], [], []>} : vector<256x36xbf16>, vector<36x32xbf16>, vector<256x32xf32> -> vector<256x32xf32>
    %c0_4 = arith.constant 0 : index
    %c0_5 = arith.constant 0 : index
    %28 = vector.load %arg6[%c0_4, %c0_5] : memref<1x32xf32, #tpu.memory_space<vmem>>, vector<1x32xf32>
    %29 = vector.broadcast %28 : vector<1x32xf32> to vector<256x32xf32>
    %30 = arith.addf %27, %29 : vector<256x32xf32>
    %31 = arith.truncf %30 : vector<256x32xf32> to vector<256x32xbf16>
    %c0_6 = arith.constant 0 : index
    %c0_7 = arith.constant 0 : index
    %32 = vector.load %arg7[%c0_6, %c0_7] : memref<256x32xbf16, #tpu.memory_space<vmem>>, vector<256x32xbf16>
    tpu.vector_store %arg7[%c0_6, %c0_7], %31 {strides = array<i32>} : memref<256x32xbf16, #tpu.memory_space<vmem>>, vector<256x32xbf16>,
    %33 = arith.extf %31 : vector<256x32xbf16> to vector<256x32xf32>
    %cst_8 = arith.constant dense<0.000000e+00> : vector<32xf32>
    %34 = vector.multi_reduction <add>, %33, %cst_8 [0] : vector<256x32xf32> to vector<32xf32>
    %35 = vector.shape_cast %34 : vector<32xf32> to vector<1x32xf32>
    %36 = arith.mulf %33, %33 : vector<256x32xf32>
    %cst_9 = arith.constant dense<0.000000e+00> : vector<32xf32>
    %37 = vector.multi_reduction <add>, %36, %cst_9 [0] : vector<256x32xf32> to vector<32xf32>
    %38 = vector.shape_cast %37 : vector<32xf32> to vector<1x32xf32>
    %39 = tpu.concatenate %35, %38 in 0 : vector<1x32xf32>, vector<1x32xf32> -> vector<2x32xf32>
    %c0_i32_10 = arith.constant 0 : i32
    %40 = arith.cmpi eq, %arg1, %c0_i32_10 : i32
    %41 = arith.extui %40 : i1 to i32
    %c0_i32_11 = arith.constant 0 : i32
    %42 = arith.cmpi ne, %41, %c0_i32_11 : i32
    scf.if %42 {
      %cst_18 = arith.constant 0.000000e+00 : f32
      %47 = vector.broadcast %cst_18 : f32 to vector<1x2x32xf32>
      %c0_19 = arith.constant 0 : index
      %c0_20 = arith.constant 0 : index
      %c0_21 = arith.constant 0 : index
      %48 = vector.load %arg8[%c0_19, %c0_20, %c0_21] : memref<1x2x32xf32, #tpu.memory_space<vmem>>, vector<1x2x32xf32>
      tpu.vector_store %arg8[%c0_19, %c0_20, %c0_21], %47 {strides = array<i32>} : memref<1x2x32xf32, #tpu.memory_space<vmem>>, vector<1x2x32xf32>,
    } else {
    }
    %c0_12 = arith.constant 0 : index
    %c0_13 = arith.constant 0 : index
    %c0_14 = arith.constant 0 : index
    %43 = vector.load %arg8[%c0_12, %c0_13, %c0_14] : memref<1x2x32xf32, #tpu.memory_space<vmem>>, vector<1x2x32xf32>
    %44 = vector.shape_cast %39 : vector<2x32xf32> to vector<1x2x32xf32>
    %45 = arith.addf %43, %44 : vector<1x2x32xf32>
    %c0_15 = arith.constant 0 : index
    %c0_16 = arith.constant 0 : index
    %c0_17 = arith.constant 0 : index
    %46 = vector.load %arg8[%c0_15, %c0_16, %c0_17] : memref<1x2x32xf32, #tpu.memory_space<vmem>>, vector<1x2x32xf32>
    tpu.vector_store %arg8[%c0_15, %c0_16, %c0_17], %45 {strides = array<i32>} : memref<1x2x32xf32, #tpu.memory_space<vmem>>, vector<1x2x32xf32>,
    return
  }
  func.func @transform_0(%arg0: i32, %arg1: i32) -> (i32, i32, i32, i32) {
    %c0_i32 = arith.constant 0 : i32
    %c0_i32_0 = arith.constant 0 : i32
    %c0_i32_1 = arith.constant 0 : i32
    %c0_i32_2 = arith.constant 0 : i32
    return %arg0, %c0_i32, %c0_i32_0, %c0_i32_1 : i32, i32, i32, i32
  }
  func.func @transform_1(%arg0: i32, %arg1: i32) -> (i32, i32) {
    %c0_i32 = arith.constant 0 : i32
    %c0_i32_0 = arith.constant 0 : i32
    %c0_i32_1 = arith.constant 0 : i32
    return %c0_i32, %c0_i32_0 : i32, i32
  }
  func.func @transform_2(%arg0: i32, %arg1: i32) -> (i32, i32) {
    %c0_i32 = arith.constant 0 : i32
    %c0_i32_0 = arith.constant 0 : i32
    %c0_i32_1 = arith.constant 0 : i32
    return %c0_i32, %c0_i32_0 : i32, i32
  }
  func.func @transform_3(%arg0: i32, %arg1: i32) -> (i32, i32) {
    %c0_i32 = arith.constant 0 : i32
    %c0_i32_0 = arith.constant 0 : i32
    %c0_i32_1 = arith.constant 0 : i32
    return %c0_i32, %c0_i32_0 : i32, i32
  }
  func.func @transform_4(%arg0: i32, %arg1: i32) -> (i32, i32) {
    %c0_i32 = arith.constant 0 : i32
    %c0_i32_0 = arith.constant 0 : i32
    %c0_i32_1 = arith.constant 0 : i32
    return %c0_i32, %c0_i32_0 : i32, i32
  }
  func.func @transform_5(%arg0: i32, %arg1: i32) -> (i32, i32) {
    %c1_i32 = arith.constant 1 : i32
    %0 = arith.muli %arg0, %c1_i32 : i32
    %1 = arith.addi %0, %arg1 : i32
    %c0_i32 = arith.constant 0 : i32
    %c0_i32_0 = arith.constant 0 : i32
    return %1, %c0_i32 : i32, i32
  }
  func.func @transform_6(%arg0: i32, %arg1: i32) -> (i32, i32, i32) {
    %c0_i32 = arith.constant 0 : i32
    %c0_i32_0 = arith.constant 0 : i32
    %c0_i32_1 = arith.constant 0 : i32
    return %arg0, %c0_i32, %c0_i32_0 : i32, i32, i32
  }
}

module attributes {stable_mosaic.version = 11 : i64} {
  func.func @conv2_kernel(%arg0: i32, %arg1: i32, %arg2: memref<256x32xbf16, #tpu.memory_space<vmem>>, %arg3: memref<256x4xf32, #tpu.memory_space<vmem>>, %arg4: memref<1x32xf32, #tpu.memory_space<vmem>>, %arg5: memref<1x32xf32, #tpu.memory_space<vmem>>, %arg6: memref<288x128xbf16, #tpu.memory_space<vmem>>, %arg7: memref<1x32xf32, #tpu.memory_space<vmem>>, %arg8: memref<4x32xbf16, #tpu.memory_space<vmem>>, %arg9: memref<1x32xf32, #tpu.memory_space<vmem>>, %arg10: memref<1x16x2x16x64xf32, #tpu.memory_space<vmem>>, %arg11: memref<18x18x32xbf16, #tpu.memory_space<vmem>>) attributes {dimension_semantics = [#tpu.dimension_semantics<parallel>, #tpu.dimension_semantics<arbitrary>], iteration_bounds = array<i64: 2, 1>, scalar_prefetch = 0 : i64, scratch_operands = 1 : i64, tpu.core_type = #tpu.core_type<tc>, window_params = [{transform_indices = @transform_0, window_bounds = array<i64: 256, 32>}, {transform_indices = @transform_1, window_bounds = array<i64: 256, 4>}, {pipeline_mode = #tpu.pipeline_mode<synchronous>, transform_indices = @transform_2, window_bounds = array<i64: 1, 32>}, {pipeline_mode = #tpu.pipeline_mode<synchronous>, transform_indices = @transform_3, window_bounds = array<i64: 1, 32>}, {pipeline_mode = #tpu.pipeline_mode<synchronous>, transform_indices = @transform_4, window_bounds = array<i64: 288, 128>}, {pipeline_mode = #tpu.pipeline_mode<synchronous>, transform_indices = @transform_5, window_bounds = array<i64: 1, 32>}, {pipeline_mode = #tpu.pipeline_mode<synchronous>, transform_indices = @transform_6, window_bounds = array<i64: 4, 32>}, {pipeline_mode = #tpu.pipeline_mode<synchronous>, transform_indices = @transform_7, window_bounds = array<i64: 1, 32>}, {transform_indices = @transform_8, window_bounds = array<i64: 1, 16, 2, 16, 64>}]} {
    %c0_i32 = arith.constant 0 : i32
    %0 = arith.cmpi eq, %arg1, %c0_i32 : i32
    %1 = arith.extui %0 : i1 to i32
    %c0_i32_0 = arith.constant 0 : i32
    %2 = arith.cmpi ne, %1, %c0_i32_0 : i32
    scf.if %2 {
      %cst_22 = arith.constant 0.000000e+00 : bf16
      %58 = vector.broadcast %cst_22 : bf16 to vector<18x18x32xbf16>
      %c0_23 = arith.constant 0 : index
      %c0_24 = arith.constant 0 : index
      %c0_25 = arith.constant 0 : index
      %59 = vector.load %arg11[%c0_23, %c0_24, %c0_25] : memref<18x18x32xbf16, #tpu.memory_space<vmem>>, vector<18x18x32xbf16>
      tpu.vector_store %arg11[%c0_23, %c0_24, %c0_25], %58 {strides = array<i32>} : memref<18x18x32xbf16, #tpu.memory_space<vmem>>, vector<18x18x32xbf16>,
      %c0_26 = arith.constant 0 : index
      %c0_27 = arith.constant 0 : index
      %60 = vector.load %arg2[%c0_26, %c0_27] : memref<256x32xbf16, #tpu.memory_space<vmem>>, vector<256x32xbf16>
      %61 = arith.extf %60 : vector<256x32xbf16> to vector<256x32xf32>
      %c0_28 = arith.constant 0 : index
      %c0_29 = arith.constant 0 : index
      %62 = vector.load %arg4[%c0_28, %c0_29] : memref<1x32xf32, #tpu.memory_space<vmem>>, vector<1x32xf32>
      %63 = vector.broadcast %62 : vector<1x32xf32> to vector<256x32xf32>
      %64 = arith.mulf %61, %63 : vector<256x32xf32>
      %c0_30 = arith.constant 0 : index
      %c0_31 = arith.constant 0 : index
      %65 = vector.load %arg5[%c0_30, %c0_31] : memref<1x32xf32, #tpu.memory_space<vmem>>, vector<1x32xf32>
      %66 = vector.broadcast %65 : vector<1x32xf32> to vector<256x32xf32>
      %67 = arith.addf %64, %66 : vector<256x32xf32>
      %cst_32 = arith.constant 0.000000e+00 : f32
      %68 = vector.broadcast %cst_32 : f32 to vector<256x32xf32>
      %69 = arith.maximumf %67, %68 : vector<256x32xf32>
      %70 = vector.shape_cast %69 : vector<256x32xf32> to vector<16x16x32xf32>
      %71 = arith.truncf %70 : vector<16x16x32xf32> to vector<16x16x32xbf16>
      %c1_33 = arith.constant 1 : index
      %c1_34 = arith.constant 1 : index
      %c0_35 = arith.constant 0 : index
      %72 = vector.load %arg11[%c1_33, %c1_34, %c0_35] : memref<18x18x32xbf16, #tpu.memory_space<vmem>>, vector<16x16x32xbf16>
      tpu.vector_store %arg11[%c1_33, %c1_34, %c0_35], %71 {strides = array<i32>} : memref<18x18x32xbf16, #tpu.memory_space<vmem>>, vector<16x16x32xbf16>,
    } else {
    }
    %c16_i32 = arith.constant 16 : i32
    %3 = arith.muli %arg1, %c16_i32 : i32
    %4 = tpu.assume_multiple %3, 8 : i32
    %5 = arith.index_cast %4 : i32 to index
    %c0 = arith.constant 0 : index
    %c0_1 = arith.constant 0 : index
    %6 = vector.load %arg11[%5, %c0, %c0_1] : memref<18x18x32xbf16, #tpu.memory_space<vmem>>, vector<18x18x32xbf16>
    %c0_2 = arith.constant 0 : index
    %c0_3 = arith.constant 0 : index
    %7 = vector.load %arg3[%c0_2, %c0_3] : memref<256x4xf32, #tpu.memory_space<vmem>>, vector<256x4xf32>
    %8 = arith.truncf %7 : vector<256x4xf32> to vector<256x4xbf16>
    %c0_4 = arith.constant 0 : index
    %c0_5 = arith.constant 0 : index
    %9 = vector.load %arg8[%c0_4, %c0_5] : memref<4x32xbf16, #tpu.memory_space<vmem>>, vector<4x32xbf16>
    %cst = arith.constant dense<0.000000e+00> : vector<256x32xf32>
    %10 = tpu.matmul %8, %9, %cst {dimension_numbers = #tpu.dot_dimension_numbers<[1], [0], [0], [1], [0, 0, 1, 1], [], []>} : vector<256x4xbf16>, vector<4x32xbf16>, vector<256x32xf32> -> vector<256x32xf32>
    %c0_6 = arith.constant 0 : index
    %c0_7 = arith.constant 0 : index
    %11 = vector.load %arg9[%c0_6, %c0_7] : memref<1x32xf32, #tpu.memory_space<vmem>>, vector<1x32xf32>
    %12 = vector.broadcast %11 : vector<1x32xf32> to vector<256x32xf32>
    %13 = arith.addf %10, %12 : vector<256x32xf32>
    %c0_8 = arith.constant 0 : index
    %c0_9 = arith.constant 0 : index
    %14 = vector.load %arg7[%c0_8, %c0_9] : memref<1x32xf32, #tpu.memory_space<vmem>>, vector<1x32xf32>
    %15 = vector.broadcast %14 : vector<1x32xf32> to vector<256x32xf32>
    %16 = arith.addf %13, %15 : vector<256x32xf32>
    %17 = vector.extract_strided_slice %6 {offsets = [0, 0, 0], sizes = [16, 16, 32], strides = [1, 1, 1]} : vector<18x18x32xbf16> to vector<16x16x32xbf16>
    %18 = vector.shape_cast %17 : vector<16x16x32xbf16> to vector<256x32xbf16>
    %19 = vector.extract_strided_slice %6 {offsets = [0, 1, 0], sizes = [16, 16, 32], strides = [1, 1, 1]} : vector<18x18x32xbf16> to vector<16x16x32xbf16>
    %20 = vector.shape_cast %19 : vector<16x16x32xbf16> to vector<256x32xbf16>
    %21 = vector.extract_strided_slice %6 {offsets = [0, 2, 0], sizes = [16, 16, 32], strides = [1, 1, 1]} : vector<18x18x32xbf16> to vector<16x16x32xbf16>
    %22 = vector.shape_cast %21 : vector<16x16x32xbf16> to vector<256x32xbf16>
    %23 = vector.extract_strided_slice %6 {offsets = [1, 0, 0], sizes = [16, 16, 32], strides = [1, 1, 1]} : vector<18x18x32xbf16> to vector<16x16x32xbf16>
    %24 = vector.shape_cast %23 : vector<16x16x32xbf16> to vector<256x32xbf16>
    %25 = vector.extract_strided_slice %6 {offsets = [1, 1, 0], sizes = [16, 16, 32], strides = [1, 1, 1]} : vector<18x18x32xbf16> to vector<16x16x32xbf16>
    %26 = vector.shape_cast %25 : vector<16x16x32xbf16> to vector<256x32xbf16>
    %27 = vector.extract_strided_slice %6 {offsets = [1, 2, 0], sizes = [16, 16, 32], strides = [1, 1, 1]} : vector<18x18x32xbf16> to vector<16x16x32xbf16>
    %28 = vector.shape_cast %27 : vector<16x16x32xbf16> to vector<256x32xbf16>
    %29 = vector.extract_strided_slice %6 {offsets = [2, 0, 0], sizes = [16, 16, 32], strides = [1, 1, 1]} : vector<18x18x32xbf16> to vector<16x16x32xbf16>
    %30 = vector.shape_cast %29 : vector<16x16x32xbf16> to vector<256x32xbf16>
    %31 = vector.extract_strided_slice %6 {offsets = [2, 1, 0], sizes = [16, 16, 32], strides = [1, 1, 1]} : vector<18x18x32xbf16> to vector<16x16x32xbf16>
    %32 = vector.shape_cast %31 : vector<16x16x32xbf16> to vector<256x32xbf16>
    %33 = vector.extract_strided_slice %6 {offsets = [2, 2, 0], sizes = [16, 16, 32], strides = [1, 1, 1]} : vector<18x18x32xbf16> to vector<16x16x32xbf16>
    %34 = vector.shape_cast %33 : vector<16x16x32xbf16> to vector<256x32xbf16>
    %35 = tpu.concatenate %18, %20, %22, %24, %26, %28, %30, %32, %34 in 1 : vector<256x32xbf16>, vector<256x32xbf16>, vector<256x32xbf16>, vector<256x32xbf16>, vector<256x32xbf16>, vector<256x32xbf16>, vector<256x32xbf16>, vector<256x32xbf16>, vector<256x32xbf16> -> vector<256x288xbf16>
    %c0_10 = arith.constant 0 : index
    %c0_11 = arith.constant 0 : index
    %36 = vector.load %arg6[%c0_10, %c0_11] : memref<288x128xbf16, #tpu.memory_space<vmem>>, vector<288x128xbf16>
    %cst_12 = arith.constant dense<0.000000e+00> : vector<256x128xf32>
    %37 = tpu.matmul %35, %36, %cst_12 {dimension_numbers = #tpu.dot_dimension_numbers<[1], [0], [0], [1], [0, 0, 1, 1], [], []>} : vector<256x288xbf16>, vector<288x128xbf16>, vector<256x128xf32> -> vector<256x128xf32>
    %38 = vector.extract_strided_slice %37 {offsets = [0, 0], sizes = [256, 32], strides = [1, 1]} : vector<256x128xf32> to vector<256x32xf32>
    %39 = arith.addf %38, %16 : vector<256x32xf32>
    %40 = vector.extract_strided_slice %37 {offsets = [0, 32], sizes = [256, 32], strides = [1, 1]} : vector<256x128xf32> to vector<256x32xf32>
    %41 = arith.addf %40, %16 : vector<256x32xf32>
    %42 = vector.extract_strided_slice %37 {offsets = [0, 64], sizes = [256, 32], strides = [1, 1]} : vector<256x128xf32> to vector<256x32xf32>
    %43 = arith.addf %42, %16 : vector<256x32xf32>
    %44 = vector.extract_strided_slice %37 {offsets = [0, 96], sizes = [256, 32], strides = [1, 1]} : vector<256x128xf32> to vector<256x32xf32>
    %45 = arith.addf %44, %16 : vector<256x32xf32>
    %46 = vector.shape_cast %39 : vector<256x32xf32> to vector<16x16x32xf32>
    %47 = vector.shape_cast %41 : vector<256x32xf32> to vector<16x16x32xf32>
    %48 = tpu.concatenate %46, %47 in 2 : vector<16x16x32xf32>, vector<16x16x32xf32> -> vector<16x16x64xf32>
    %c0_13 = arith.constant 0 : index
    %c0_14 = arith.constant 0 : index
    %c0_15 = arith.constant 0 : index
    %c0_16 = arith.constant 0 : index
    %c0_17 = arith.constant 0 : index
    %49 = vector.load %arg10[%c0_13, %c0_14, %c0_15, %c0_16, %c0_17] : memref<1x16x2x16x64xf32, #tpu.memory_space<vmem>>, vector<1x16x1x16x64xf32>
    %50 = vector.shape_cast %49 : vector<1x16x1x16x64xf32> to vector<16x16x64xf32>
    %51 = vector.shape_cast %48 : vector<16x16x64xf32> to vector<1x16x1x16x64xf32>
    tpu.vector_store %arg10[%c0_13, %c0_14, %c0_15, %c0_16, %c0_17], %51 {strides = array<i32>} : memref<1x16x2x16x64xf32, #tpu.memory_space<vmem>>, vector<1x16x1x16x64xf32>,
    %52 = vector.shape_cast %43 : vector<256x32xf32> to vector<16x16x32xf32>
    %53 = vector.shape_cast %45 : vector<256x32xf32> to vector<16x16x32xf32>
    %54 = tpu.concatenate %52, %53 in 2 : vector<16x16x32xf32>, vector<16x16x32xf32> -> vector<16x16x64xf32>
    %c0_18 = arith.constant 0 : index
    %c0_19 = arith.constant 0 : index
    %c1 = arith.constant 1 : index
    %c0_20 = arith.constant 0 : index
    %c0_21 = arith.constant 0 : index
    %55 = vector.load %arg10[%c0_18, %c0_19, %c1, %c0_20, %c0_21] : memref<1x16x2x16x64xf32, #tpu.memory_space<vmem>>, vector<1x16x1x16x64xf32>
    %56 = vector.shape_cast %55 : vector<1x16x1x16x64xf32> to vector<16x16x64xf32>
    %57 = vector.shape_cast %54 : vector<16x16x64xf32> to vector<1x16x1x16x64xf32>
    tpu.vector_store %arg10[%c0_18, %c0_19, %c1, %c0_20, %c0_21], %57 {strides = array<i32>} : memref<1x16x2x16x64xf32, #tpu.memory_space<vmem>>, vector<1x16x1x16x64xf32>,
    return
  }
  func.func @transform_0(%arg0: i32, %arg1: i32) -> (i32, i32) {
    %c0_i32 = arith.constant 0 : i32
    %c0_i32_0 = arith.constant 0 : i32
    return %arg0, %c0_i32 : i32, i32
  }
  func.func @transform_1(%arg0: i32, %arg1: i32) -> (i32, i32) {
    %c1_i32 = arith.constant 1 : i32
    %0 = arith.muli %arg0, %c1_i32 : i32
    %1 = arith.addi %0, %arg1 : i32
    %c0_i32 = arith.constant 0 : i32
    %c0_i32_0 = arith.constant 0 : i32
    return %1, %c0_i32 : i32, i32
  }
  func.func @transform_2(%arg0: i32, %arg1: i32) -> (i32, i32) {
    %c0_i32 = arith.constant 0 : i32
    %c0_i32_0 = arith.constant 0 : i32
    %c0_i32_1 = arith.constant 0 : i32
    return %c0_i32, %c0_i32_0 : i32, i32
  }
  func.func @transform_3(%arg0: i32, %arg1: i32) -> (i32, i32) {
    %c0_i32 = arith.constant 0 : i32
    %c0_i32_0 = arith.constant 0 : i32
    %c0_i32_1 = arith.constant 0 : i32
    return %c0_i32, %c0_i32_0 : i32, i32
  }
  func.func @transform_4(%arg0: i32, %arg1: i32) -> (i32, i32) {
    %c0_i32 = arith.constant 0 : i32
    %c0_i32_0 = arith.constant 0 : i32
    %c0_i32_1 = arith.constant 0 : i32
    return %c0_i32, %c0_i32_0 : i32, i32
  }
  func.func @transform_5(%arg0: i32, %arg1: i32) -> (i32, i32) {
    %c0_i32 = arith.constant 0 : i32
    %c0_i32_0 = arith.constant 0 : i32
    %c0_i32_1 = arith.constant 0 : i32
    return %c0_i32, %c0_i32_0 : i32, i32
  }
  func.func @transform_6(%arg0: i32, %arg1: i32) -> (i32, i32) {
    %c0_i32 = arith.constant 0 : i32
    %c0_i32_0 = arith.constant 0 : i32
    %c0_i32_1 = arith.constant 0 : i32
    return %c0_i32, %c0_i32_0 : i32, i32
  }
  func.func @transform_7(%arg0: i32, %arg1: i32) -> (i32, i32) {
    %c0_i32 = arith.constant 0 : i32
    %c0_i32_0 = arith.constant 0 : i32
    %c0_i32_1 = arith.constant 0 : i32
    return %c0_i32, %c0_i32_0 : i32, i32
  }
  func.func @transform_8(%arg0: i32, %arg1: i32) -> (i32, i32, i32, i32, i32) {
    %c0_i32 = arith.constant 0 : i32
    %c0_i32_0 = arith.constant 0 : i32
    %c0_i32_1 = arith.constant 0 : i32
    %c0_i32_2 = arith.constant 0 : i32
    return %arg0, %arg1, %c0_i32, %c0_i32_0, %c0_i32_1 : i32, i32, i32, i32, i32
  }
}

</mosaic_0001>

<llo_original>
// kernel: resnet_block_up.3
$region0: #{resnet_block_up.3}
  #allocation0 [shape = 'u32[]', space=smem, size = 0x4, offset = 0x4, fixed_abs, tag = 'smem constant byte address 0x4 - core index']
  #allocation1 [shape = 'u32[72,128]{1,0:T(1,128)}', space=vmem, size = 0x9000, scoped, tag = 'internal scratch']
  %s0 = inlined_call_operand.vmem [shape: f32[32,64], index: 0, kind: input, shape index: {}]
  %s1 = inlined_call_operand.vmem [shape: f32[2,64], index: 1, kind: output, shape index: {}]
  %s2 = sld [smem:[#allocation0]]
  $region18: #{resnet_block_up.3} parent=0
    _
  %s4 = ssub.s32 1, %s2
  %s5 = scalar_select 0, %s4, %s2
  // Predicated region
  $region2: #{resnet_block_up.3} parent=0 // pred_check
    _
  $region3: #{resnet_block_up.3} parent=0 // pred_check_branch
    %7 = sbr.rel (0) target = $region5
  $region4: #{resnet_block_up.3} parent=0 // pred_region
    _
  $region5: #{resnet_block_up.3} parent=0 // pred_fallthru
    _
  %p8 = scmp.eq.s32.totalorder 0, 0
  // Predicated region
  $region6: #{resnet_block_up.3} parent=0 // pred_check
    %p9 = pneg %p8
  $region7: #{resnet_block_up.3} parent=0 // pred_check_branch
    %11 = sbr.rel (%p9) target = $region9
  $region8: #{resnet_block_up.3} parent=0 // pred_region
    %vm12 = vcmask 517120
    %13 = vst.msk [vmem:[%s1] sm:$0x3] %vm12, 0.0
  $region9: #{resnet_block_up.3} parent=0 // pred_fallthru
    _
  %v14 = vld [vmem:[%s0] sm:$0xff]
  %v15 = vld [vmem:[%s0 + $0x8] sm:$0xff]
  %v16 = vld [vmem:[%s0 + $0x10] sm:$0xff]
  %v17 = vld [vmem:[%s0 + $0x18] sm:$0xff]
  %vm18 = vcmask 523264
  %v19 = vsel %vm18, %v14, 0.0
  %v20 = vsel %vm18, %v15, 0.0
  %v21 = vadd.f32 %v19, %v20
  %v22 = vsel %vm18, %v16, 0.0
  %v23 = vadd.f32 %v21, %v22
  %v24 = vsel %vm18, %v17, 0.0
  %v25 = vadd.f32 %v23, %v24
  %v26 = vrot.slane %v25, 4
  %v27 = vadd.f32 %v25, %v26
  %v28 = vrot.slane %v27, 2
  %v29 = vadd.f32 %v27, %v28
  %v30 = vrot.slane %v29, 1
  %v31 = vadd.f32 %v29, %v30
  %v32 = vmul.f32 %v14, %v14
  %v33 = vmul.f32 %v15, %v15
  %v34 = vmul.f32 %v16, %v16
  %v35 = vmul.f32 %v17, %v17
  %v36 = vsel %vm18, %v32, 0.0
  %v37 = vsel %vm18, %v33, 0.0
  %v38 = vadd.f32 %v36, %v37
  %v39 = vsel %vm18, %v34, 0.0
  %v40 = vadd.f32 %v38, %v39
  %v41 = vsel %vm18, %v35, 0.0
  %v42 = vadd.f32 %v40, %v41
  %v43 = vrot.slane %v42, 4
  %v44 = vadd.f32 %v42, %v43
  %v45 = vrot.slane %v44, 2
  %v46 = vadd.f32 %v44, %v45
  %v47 = vrot.slane %v46, 1
  %v48 = vadd.f32 %v46, %v47
  %v49 = vld [vmem:[%s1] sm:$0x3]
  %vm50 = vcmask 1040384
  %v51 = vsel %vm50, %v31, %v48
  %v52 = vadd.f32 %v49, %v51
  %vm53 = vcmask 517120
  %54 = vst.msk [vmem:[%s1] sm:$0x3] %vm53, %v52
  // Predicated region
  $region10: #{resnet_block_up.3} parent=0 // pred_check
    _
  $region11: #{resnet_block_up.3} parent=0 // pred_check_branch
    %56 = sbr.rel (0) target = $region13
  $region12: #{resnet_block_up.3} parent=0 // pred_region
    _
  $region13: #{resnet_block_up.3} parent=0 // pred_fallthru
    _
  // Predicated region
  $region14: #{resnet_block_up.3} parent=0 // pred_check
    _
  $region15: #{resnet_block_up.3} parent=0 // pred_check_branch
    %58 = sbr.rel (0) target = $region17
  $region16: #{resnet_block_up.3} parent=0 // pred_region
    _
  $region17: #{resnet_block_up.3} parent=0 // pred_fallthru
    _

// kernel: resnet_block_up.4
$region0: #{resnet_block_up.4}
  #allocation0 [shape = 'u32[]', space=smem, size = 0x4, offset = 0x4, fixed_abs, tag = 'smem constant byte address 0x4 - core index']
  #allocation1 [shape = 'u32[72,128]{1,0:T(1,128)}', space=vmem, size = 0x9000, scoped, tag = 'internal scratch']
  #allocation2 [shape = 'bf16[18,18,4]{2,1,0:T(8,128)(2,1)}', space=vmem, size = 0x1b000, scoped, tag = 'scratch operand']
  %s0 = inlined_call_operand.vmem [shape: f32[2,16,16,4], index: 0, kind: input, shape index: {}]
  %s1 = inlined_call_operand.vmem [shape: f32[1,4], index: 1, kind: input, shape index: {}]
  %s2 = inlined_call_operand.vmem [shape: f32[1,4], index: 2, kind: input, shape index: {}]
  %s3 = inlined_call_operand.vmem [shape: bf16[36,32], index: 3, kind: input, shape index: {}]
  %s4 = inlined_call_operand.vmem [shape: f32[1,32], index: 4, kind: input, shape index: {}]
  %s5 = inlined_call_operand.vmem [shape: bf16[512,32], index: 5, kind: output, shape index: {0}]
  %s6 = inlined_call_operand.vmem [shape: f32[2,2,32], index: 6, kind: output, shape index: {1}]
  %7 = xla_tuple %s5, %s6
  %s8 = sld [smem:[#allocation0]]
  $region69: #{resnet_block_up.4} parent=0
    _
  %s10 = ssub.s32 1, %s8
  %s11 = scalar_select 0, %s10, %s8
  loop: start=0, step=1, limit=4
  $region2: #{resnet_block_up.4} parent=0 // loop_pre_header
    _
  $region3: #{resnet_block_up.4} parent=0 // loop_header
    %s13 = sphi 0, %s17
    %p14 = scmp.ge.s32.totalorder %s13, 4
    %s20 = sphi 0, %s32
    %s21 = sphi 0, %s28
    %s22 = sphi 0, %s20
    %s23 = sphi 0, %s21
    %s24 = sphi 0, %s22
    %s25 = sphi 0, %s23
    %s35 = sphi 0, %s37
    %s38 = sphi 0, %s35
    %s39 = sphi 0, %s38
    %s55 = sphi 0, %s39
    %s59 = sphi 0, %s59
    %s61 = sphi 0, %s59
    %s62 = sphi 0, %s61
    %s76 = sphi 0, %s62
    %s80 = sphi 0, %s80
    %s82 = sphi 0, %s80
    %s83 = sphi 0, %s82
    %s97 = sphi 0, %s83
    %s101 = sphi 0, %s101
    %s103 = sphi 0, %s101
    %s104 = sphi 0, %s103
    %s118 = sphi 0, %s104
    %s122 = sphi 0, %s122
    %s124 = sphi 0, %s122
    %s125 = sphi 0, %s124
    %s139 = sphi 0, %s125
    %s147 = sphi 0, %s149
    %s150 = sphi 0, %s147
    %s151 = sphi 0, %s150
    %s167 = sphi 0, %s151
    %s173 = sphi 0, %s175
    %s176 = sphi 0, %s173
    %s177 = sphi 0, %s176
    %s193 = sphi 0, %s177
  $region4: #{resnet_block_up.4} parent=0 // loop_header_branch
    %16 = sbr.rel (%p14) target = $region8
  $region5: #{resnet_block_up.4} parent=0 // loop_body
    %s18 = ssub.s32 %s13, 1
    %s19 = ssub.s32 %s13, 2
    %s26 = sadd.s32 1, %s21
    %p27 = scmp.ge.s32.totalorder %s26, 1
    %s28 = scalar_select %p27, 0, %s26
    %s29 = sadd.s32 1, %s20
    %s30 = scalar_select %p27, %s29, %s20
    %p31 = scmp.ge.s32.totalorder %s30, 2
    %s32 = scalar_select %p31, 0, %s30
    %s33 = ssub.s32 %s20, %s32
    %p34 = scmp.eq.s32.totalorder %s33, 0
    %s36 = sadd.s32 %s35, 1
    %s37 = scalar_select %p34, %s35, %s36
    %p40 = pneg %p34
    %p41 = scmp.eq.s32.totalorder %s13, 1
    %p42 = por %p40, %p41
    %p43 = scmp.ne.s32.totalorder %s35, %s38
    %p44 = scmp.eq.s32.totalorder %s13, 0
    %p45 = por %p43, %p44
    %p46 = scmp.ne.s32.totalorder %s35, %s38
    %p47 = scmp.eq.s32.totalorder %s18, 1
    %p48 = por %p46, %p47
    %p49 = scmp.ne.s32.totalorder %s38, %s39
    %p50 = scmp.eq.s32.totalorder %s18, 0
    %p51 = por %p49, %p50
    %p52 = scmp.ne.s32.totalorder %s38, %s39
    %p53 = scmp.eq.s32.totalorder %s19, 1
    %p54 = por %p52, %p53
    %p56 = scmp.ne.s32.totalorder %s39, %s55
    %p57 = scmp.eq.s32.totalorder %s19, 0
    %p58 = por %p56, %p57
    %s60 = sadd.s32 %s59, 1
    %p63 = scmp.eq.s32.totalorder %s13, 1
    %p64 = scmp.ne.s32.totalorder %s59, %s61
    %p65 = scmp.eq.s32.totalorder %s13, 0
    %p66 = por %p64, %p65
    %p67 = scmp.ne.s32.totalorder %s59, %s61
    %p68 = scmp.eq.s32.totalorder %s18, 1
    %p69 = por %p67, %p68
    %p70 = scmp.ne.s32.totalorder %s61, %s62
    %p71 = scmp.eq.s32.totalorder %s18, 0
    %p72 = por %p70, %p71
    %p73 = scmp.ne.s32.totalorder %s61, %s62
    %p74 = scmp.eq.s32.totalorder %s19, 1
    %p75 = por %p73, %p74
    %p77 = scmp.ne.s32.totalorder %s62, %s76
    %p78 = scmp.eq.s32.totalorder %s19, 0
    %p79 = por %p77, %p78
    %s81 = sadd.s32 %s80, 1
    %p84 = scmp.eq.s32.totalorder %s13, 1
    %p85 = scmp.ne.s32.totalorder %s80, %s82
    %p86 = scmp.eq.s32.totalorder %s13, 0
    %p87 = por %p85, %p86
    %p88 = scmp.ne.s32.totalorder %s80, %s82
    %p89 = scmp.eq.s32.totalorder %s18, 1
    %p90 = por %p88, %p89
    %p91 = scmp.ne.s32.totalorder %s82, %s83
    %p92 = scmp.eq.s32.totalorder %s18, 0
    %p93 = por %p91, %p92
    %p94 = scmp.ne.s32.totalorder %s82, %s83
    %p95 = scmp.eq.s32.totalorder %s19, 1
    %p96 = por %p94, %p95
    %p98 = scmp.ne.s32.totalorder %s83, %s97
    %p99 = scmp.eq.s32.totalorder %s19, 0
    %p100 = por %p98, %p99
    %s102 = sadd.s32 %s101, 1
    %p105 = scmp.eq.s32.totalorder %s13, 1
    %p106 = scmp.ne.s32.totalorder %s101, %s103
    %p107 = scmp.eq.s32.totalorder %s13, 0
    %p108 = por %p106, %p107
    %p109 = scmp.ne.s32.totalorder %s101, %s103
    %p110 = scmp.eq.s32.totalorder %s18, 1
    %p111 = por %p109, %p110
    %p112 = scmp.ne.s32.totalorder %s103, %s104
    %p113 = scmp.eq.s32.totalorder %s18, 0
    %p114 = por %p112, %p113
    %p115 = scmp.ne.s32.totalorder %s103, %s104
    %p116 = scmp.eq.s32.totalorder %s19, 1
    %p117 = por %p115, %p116
    %p119 = scmp.ne.s32.totalorder %s104, %s118
    %p120 = scmp.eq.s32.totalorder %s19, 0
    %p121 = por %p119, %p120
    %s123 = sadd.s32 %s122, 1
    %p126 = scmp.eq.s32.totalorder %s13, 1
    %p127 = scmp.ne.s32.totalorder %s122, %s124
    %p128 = scmp.eq.s32.totalorder %s13, 0
    %p129 = por %p127, %p128
    %p130 = scmp.ne.s32.totalorder %s122, %s124
    %p131 = scmp.eq.s32.totalorder %s18, 1
    %p132 = por %p130, %p131
    %p133 = scmp.ne.s32.totalorder %s124, %s125
    %p134 = scmp.eq.s32.totalorder %s18, 0
    %p135 = por %p133, %p134
    %p136 = scmp.ne.s32.totalorder %s124, %s125
    %p137 = scmp.eq.s32.totalorder %s19, 1
    %p138 = por %p136, %p137
    %p140 = scmp.ne.s32.totalorder %s125, %s139
    %p141 = scmp.eq.s32.totalorder %s19, 0
    %p142 = por %p140, %p141
    %s143 = sadd.s32 %s20, %s21
    %s144 = sadd.s32 %s32, %s28
    %s145 = ssub.s32 %s143, %s144
    %p146 = scmp.eq.s32.totalorder %s145, 0
    %s148 = sadd.s32 %s147, 1
    %s149 = scalar_select %p146, %s147, %s148
    %p152 = pneg %p146
    %p153 = scmp.eq.s32.totalorder %s13, 1
    %p154 = por %p152, %p153
    %p155 = scmp.ne.s32.totalorder %s147, %s150
    %p156 = scmp.eq.s32.totalorder %s13, 0
    %p157 = por %p155, %p156
    %p158 = scmp.ne.s32.totalorder %s147, %s150
    %p159 = scmp.eq.s32.totalorder %s18, 1
    %p160 = por %p158, %p159
    %p161 = scmp.ne.s32.totalorder %s150, %s151
    %p162 = scmp.eq.s32.totalorder %s18, 0
    %p163 = por %p161, %p162
    %p164 = scmp.ne.s32.totalorder %s150, %s151
    %p165 = scmp.eq.s32.totalorder %s19, 1
    %p166 = por %p164, %p165
    %p168 = scmp.ne.s32.totalorder %s151, %s167
    %p169 = scmp.eq.s32.totalorder %s19, 0
    %p170 = por %p168, %p169
    %s171 = ssub.s32 %s20, %s32
    %p172 = scmp.eq.s32.totalorder %s171, 0
    %s174 = sadd.s32 %s173, 1
    %s175 = scalar_select %p172, %s173, %s174
    %p178 = pneg %p172
    %p179 = scmp.eq.s32.totalorder %s13, 1
    %p180 = por %p178, %p179
    %p181 = scmp.ne.s32.totalorder %s173, %s176
    %p182 = scmp.eq.s32.totalorder %s13, 0
    %p183 = por %p181, %p182
    %p184 = scmp.ne.s32.totalorder %s173, %s176
    %p185 = scmp.eq.s32.totalorder %s18, 1
    %p186 = por %p184, %p185
    %p187 = scmp.ne.s32.totalorder %s176, %s177
    %p188 = scmp.eq.s32.totalorder %s18, 0
    %p189 = por %p187, %p188
    %p190 = scmp.ne.s32.totalorder %s176, %s177
    %p191 = scmp.eq.s32.totalorder %s19, 1
    %p192 = por %p190, %p191
    %p194 = scmp.ne.s32.totalorder %s177, %s193
    %p195 = scmp.eq.s32.totalorder %s19, 0
    %p196 = por %p194, %p195
    %p197 = scmp.le.s32.totalorder 1, %s13
    %p198 = scmp.lt.s32.totalorder %s13, 3
    %p199 = pnand %p197, %p198
    %p200 = pneg %p199
    // Predicated region
    $region9: #{resnet_block_up.4} parent=5 // pred_check
      _
    $region10: #{resnet_block_up.4} parent=5 // pred_check_branch
      %202 = sbr.rel (%p199) target = $region12
    $region11: #{resnet_block_up.4} parent=5 // pred_region
      %s203 = ssub.s32 %s13, 1
      // Predicated region
      $region13: #{resnet_block_up.4} parent=11 // pred_check
        %p204 = pneg %p72
      $region14: #{resnet_block_up.4} parent=11 // pred_check_branch
        %206 = sbr.rel (%p204) target = $region16
      $region15: #{resnet_block_up.4} parent=11 // pred_region
        _
      $region16: #{resnet_block_up.4} parent=11 // pred_fallthru
        _
      // Predicated region
      $region17: #{resnet_block_up.4} parent=11 // pred_check
        %p207 = pneg %p93
      $region18: #{resnet_block_up.4} parent=11 // pred_check_branch
        %209 = sbr.rel (%p207) target = $region20
      $region19: #{resnet_block_up.4} parent=11 // pred_region
        _
      $region20: #{resnet_block_up.4} parent=11 // pred_fallthru
        _
      // Predicated region
      $region21: #{resnet_block_up.4} parent=11 // pred_check
        %p210 = pneg %p114
      $region22: #{resnet_block_up.4} parent=11 // pred_check_branch
        %212 = sbr.rel (%p210) target = $region24
      $region23: #{resnet_block_up.4} parent=11 // pred_region
        _
      $region24: #{resnet_block_up.4} parent=11 // pred_fallthru
        _
      // Predicated region
      $region25: #{resnet_block_up.4} parent=11 // pred_check
        %p213 = pneg %p135
      $region26: #{resnet_block_up.4} parent=11 // pred_check_branch
        %215 = sbr.rel (%p213) target = $region28
      $region27: #{resnet_block_up.4} parent=11 // pred_region
        _
      $region28: #{resnet_block_up.4} parent=11 // pred_fallthru
        _
    $region12: #{resnet_block_up.4} parent=5 // pred_fallthru
      _
    %p216 = scmp.lt.s32.totalorder %s13, 2
    // Predicated region
    $region29: #{resnet_block_up.4} parent=5 // pred_check
      %p217 = pneg %p216
    $region30: #{resnet_block_up.4} parent=5 // pred_check_branch
      %219 = sbr.rel (%p217) target = $region32
    $region31: #{resnet_block_up.4} parent=5 // pred_region
      // Predicated region
      $region33: #{resnet_block_up.4} parent=31 // pred_check
        %p220 = pneg %p45
      $region34: #{resnet_block_up.4} parent=31 // pred_check_branch
        %222 = sbr.rel (%p220) target = $region36
      $region35: #{resnet_block_up.4} parent=31 // pred_region
        %p223 = scmp.lt.s32.totalorder %s20, 1
        %s224 = scalar_select %p223, %s20, 1
        %s225 = smul.addr %s224, 32
        %s226 = smul.addr %s225, 8
        %s227 = scalar_lea.vmem %s0, %s226
      $region36: #{resnet_block_up.4} parent=31 // pred_fallthru
        _
    $region32: #{resnet_block_up.4} parent=5 // pred_fallthru
      _
    %p228 = scmp.le.s32.totalorder 1, %s13
    %p229 = scmp.lt.s32.totalorder %s13, 3
    %p230 = pnand %p228, %p229
    %p231 = pneg %p230
    // Predicated region
    $region37: #{resnet_block_up.4} parent=5 // pred_check
      _
    $region38: #{resnet_block_up.4} parent=5 // pred_check_branch
      %233 = sbr.rel (%p230) target = $region40
    $region39: #{resnet_block_up.4} parent=5 // pred_region
      %s234 = ssub.s32 %s13, 1
      %p235 = scmp.lt.s32.totalorder %s22, 1
      %s236 = scalar_select %p235, %s22, 1
      %s237 = smul.addr %s236, 32
      %s238 = smul.addr %s237, 8
      %s239 = scalar_lea.vmem %s0, %s238
      %p240 = pneg %p51
      %p241 = pneg %p48
      %p242 = pneg %p72
      %p243 = pneg %p69
      %p244 = pneg %p93
      %p245 = pneg %p90
      %p246 = pneg %p114
      %p247 = pneg %p111
      %p248 = pneg %p135
      %p249 = pneg %p132
      %p250 = pneg %p163
      %p251 = pneg %p160
      %s252 = sadd.s32 %s22, %s23
      %s253 = smul.u32 32, %s252
      %p254 = scmp.lt.s32.totalorder %s253, 63
      %s255 = scalar_select %p254, %s253, 63
      %s256 = smul.addr %s255, 4
      %s257 = scalar_lea.vmem %s5, %s256
      %p258 = pneg %p189
      %p259 = pneg %p186
      %p260 = scmp.lt.s32.totalorder %s22, 1
      %s261 = scalar_select %p260, %s22, 1
      %s262 = smul.addr %s261, 2
      %s263 = scalar_lea.vmem %s6, %s262
      %p264 = scmp.lt.s32.totalorder %s22, 1
      %s265 = scalar_select %p264, %s22, 1
      %s266 = smul.addr %s265, 32
      %s267 = smul.addr %s266, 8
      %s268 = scalar_lea.vmem %s0, %s267
      %s269 = sadd.s32 %s22, %s23
      %s270 = smul.u32 32, %s269
      %p271 = scmp.lt.s32.totalorder %s270, 63
      %s272 = scalar_select %p271, %s270, 63
      %s273 = smul.addr %s272, 4
      %s274 = scalar_lea.vmem %s5, %s273
      %s275 = sadd.s32 %s22, %s23
      %s276 = smul.u32 32, %s275
      %p277 = scmp.lt.s32.totalorder %s22, 1
      %s278 = scalar_select %p277, %s22, 1
      %s279 = smul.addr %s278, 2
      %s280 = scalar_lea.vmem %s6, %s279
      %p282 = scmp.eq.s32.totalorder %s23, 0
      // Predicated region
      $region41: #{resnet_block_up.4} parent=39 // pred_check
        %p283 = pneg %p282
      $region42: #{resnet_block_up.4} parent=39 // pred_check_branch
        %285 = sbr.rel (%p283) target = $region44
      $region43: #{resnet_block_up.4} parent=39 // pred_region
        %vm286 = vcmask 27648
        %287 = vst.msk [vmem:[#allocation2] sm:$0xf] %vm286, 0
        %288 = vst.msk [vmem:[#allocation2 + $0x4] sm:$0xf] %vm286, 0
        %vm289 = vcmask 24576
        %290 = vst.msk [vmem:[#allocation2 + $0x8] sm:$0x1] %vm289, 0
        %291 = vst.msk [vmem:[#allocation2 + $0xc] sm:$0xf] %vm286, 0
        %292 = vst.msk [vmem:[#allocation2 + $0x10] sm:$0xf] %vm286, 0
        %293 = vst.msk [vmem:[#allocation2 + $0x14] sm:$0x1] %vm289, 0
        %294 = vst.msk [vmem:[#allocation2 + $0x18] sm:$0xf] %vm286, 0
        %295 = vst.msk [vmem:[#allocation2 + $0x1c] sm:$0xf] %vm286, 0
        %296 = vst.msk [vmem:[#allocation2 + $0x20] sm:$0x1] %vm289, 0
        %297 = vst.msk [vmem:[#allocation2 + $0x24] sm:$0xf] %vm286, 0
        %298 = vst.msk [vmem:[#allocation2 + $0x28] sm:$0xf] %vm286, 0
        %299 = vst.msk [vmem:[#allocation2 + $0x2c] sm:$0x1] %vm289, 0
        %300 = vst.msk [vmem:[#allocation2 + $0x30] sm:$0xf] %vm286, 0
        %301 = vst.msk [vmem:[#allocation2 + $0x34] sm:$0xf] %vm286, 0
        %302 = vst.msk [vmem:[#allocation2 + $0x38] sm:$0x1] %vm289, 0
        %303 = vst.msk [vmem:[#allocation2 + $0x3c] sm:$0xf] %vm286, 0
        %304 = vst.msk [vmem:[#allocation2 + $0x40] sm:$0xf] %vm286, 0
        %305 = vst.msk [vmem:[#allocation2 + $0x44] sm:$0x1] %vm289, 0
        %306 = vst.msk [vmem:[#allocation2 + $0x48] sm:$0xf] %vm286, 0
        %307 = vst.msk [vmem:[#allocation2 + $0x4c] sm:$0xf] %vm286, 0
        %308 = vst.msk [vmem:[#allocation2 + $0x50] sm:$0x1] %vm289, 0
        %309 = vst.msk [vmem:[#allocation2 + $0x54] sm:$0xf] %vm286, 0
        %310 = vst.msk [vmem:[#allocation2 + $0x58] sm:$0xf] %vm286, 0
        %311 = vst.msk [vmem:[#allocation2 + $0x5c] sm:$0x1] %vm289, 0
        %312 = vst.msk [vmem:[#allocation2 + $0x60] sm:$0xf] %vm286, 0
        %313 = vst.msk [vmem:[#allocation2 + $0x64] sm:$0xf] %vm286, 0
        %314 = vst.msk [vmem:[#allocation2 + $0x68] sm:$0x1] %vm289, 0
        %315 = vst.msk [vmem:[#allocation2 + $0x6c] sm:$0xf] %vm286, 0
        %316 = vst.msk [vmem:[#allocation2 + $0x70] sm:$0xf] %vm286, 0
        %317 = vst.msk [vmem:[#allocation2 + $0x74] sm:$0x1] %vm289, 0
        %318 = vst.msk [vmem:[#allocation2 + $0x78] sm:$0xf] %vm286, 0
        %319 = vst.msk [vmem:[#allocation2 + $0x7c] sm:$0xf] %vm286, 0
        %320 = vst.msk [vmem:[#allocation2 + $0x80] sm:$0x1] %vm289, 0
        %321 = vst.msk [vmem:[#allocation2 + $0x84] sm:$0xf] %vm286, 0
        %322 = vst.msk [vmem:[#allocation2 + $0x88] sm:$0xf] %vm286, 0
        %323 = vst.msk [vmem:[#allocation2 + $0x8c] sm:$0x1] %vm289, 0
        %324 = vst.msk [vmem:[#allocation2 + $0x90] sm:$0xf] %vm286, 0
        %325 = vst.msk [vmem:[#allocation2 + $0x94] sm:$0xf] %vm286, 0
        %326 = vst.msk [vmem:[#allocation2 + $0x98] sm:$0x1] %vm289, 0
        %327 = vst.msk [vmem:[#allocation2 + $0x9c] sm:$0xf] %vm286, 0
        %328 = vst.msk [vmem:[#allocation2 + $0xa0] sm:$0xf] %vm286, 0
        %329 = vst.msk [vmem:[#allocation2 + $0xa4] sm:$0x1] %vm289, 0
        %330 = vst.msk [vmem:[#allocation2 + $0xa8] sm:$0xf] %vm286, 0
        %331 = vst.msk [vmem:[#allocation2 + $0xac] sm:$0xf] %vm286, 0
        %332 = vst.msk [vmem:[#allocation2 + $0xb0] sm:$0x1] %vm289, 0
        %333 = vst.msk [vmem:[#allocation2 + $0xb4] sm:$0xf] %vm286, 0
        %334 = vst.msk [vmem:[#allocation2 + $0xb8] sm:$0xf] %vm286, 0
        %335 = vst.msk [vmem:[#allocation2 + $0xbc] sm:$0x1] %vm289, 0
        %336 = vst.msk [vmem:[#allocation2 + $0xc0] sm:$0xf] %vm286, 0
        %337 = vst.msk [vmem:[#allocation2 + $0xc4] sm:$0xf] %vm286, 0
        %338 = vst.msk [vmem:[#allocation2 + $0xc8] sm:$0x1] %vm289, 0
        %339 = vst.msk [vmem:[#allocation2 + $0xcc] sm:$0xf] %vm286, 0
        %340 = vst.msk [vmem:[#allocation2 + $0xd0] sm:$0xf] %vm286, 0
        %341 = vst.msk [vmem:[#allocation2 + $0xd4] sm:$0x1] %vm289, 0
        %v342 = vld [vmem:[%s268] sm:$0xff]
        %v343 = vld [vmem:[%s268 + $0x8] sm:$0xff]
        %v344 = vld [vmem:[%s268 + $0x10] sm:$0xff]
        %v345 = vld [vmem:[%s268 + $0x18] sm:$0xff]
        %v346 = vld [vmem:[%s268 + $0x20] sm:$0xff]
        %v347 = vld [vmem:[%s268 + $0x28] sm:$0xff]
        %v348 = vld [vmem:[%s268 + $0x30] sm:$0xff]
        %v349 = vld [vmem:[%s268 + $0x38] sm:$0xff]
        %v350 = vld [vmem:[%s268 + $0x40] sm:$0xff]
        %v351 = vld [vmem:[%s268 + $0x48] sm:$0xff]
        %v352 = vld [vmem:[%s268 + $0x50] sm:$0xff]
        %v353 = vld [vmem:[%s268 + $0x58] sm:$0xff]
        %v354 = vld [vmem:[%s268 + $0x60] sm:$0xff]
        %v355 = vld [vmem:[%s268 + $0x68] sm:$0xff]
        %v356 = vld [vmem:[%s268 + $0x70] sm:$0xff]
        %v357 = vld [vmem:[%s268 + $0x78] sm:$0xff]
        %v358 = vld [vmem:[%s268 + $0x80] sm:$0xff]
        %v359 = vld [vmem:[%s268 + $0x88] sm:$0xff]
        %v360 = vld [vmem:[%s268 + $0x90] sm:$0xff]
        %v361 = vld [vmem:[%s268 + $0x98] sm:$0xff]
        %v362 = vld [vmem:[%s268 + $0xa0] sm:$0xff]
        %v363 = vld [vmem:[%s268 + $0xa8] sm:$0xff]
        %v364 = vld [vmem:[%s268 + $0xb0] sm:$0xff]
        %v365 = vld [vmem:[%s268 + $0xb8] sm:$0xff]
        %v366 = vld [vmem:[%s268 + $0xc0] sm:$0xff]
        %v367 = vld [vmem:[%s268 + $0xc8] sm:$0xff]
        %v368 = vld [vmem:[%s268 + $0xd0] sm:$0xff]
        %v369 = vld [vmem:[%s268 + $0xd8] sm:$0xff]
        %v370 = vld [vmem:[%s268 + $0xe0] sm:$0xff]
        %v371 = vld [vmem:[%s268 + $0xe8] sm:$0xff]
        %v372 = vld [vmem:[%s268 + $0xf0] sm:$0xff]
        %v373 = vld [vmem:[%s268 + $0xf8] sm:$0xff]
        %v374 = vld [vmem:[%s1] sm:$0x1]
        %v376 = vperm.slane %v374, 0
        %v378 = vmul.f32 %v342, %v376
        %v379 = vmul.f32 %v343, %v376
        %v380 = vmul.f32 %v344, %v376
        %v381 = vmul.f32 %v345, %v376
        %v382 = vmul.f32 %v346, %v376
        %v383 = vmul.f32 %v347, %v376
        %v384 = vmul.f32 %v348, %v376
        %v385 = vmul.f32 %v349, %v376
        %v386 = vmul.f32 %v350, %v376
        %v387 = vmul.f32 %v351, %v376
        %v388 = vmul.f32 %v352, %v376
        %v389 = vmul.f32 %v353, %v376
        %v390 = vmul.f32 %v354, %v376
        %v391 = vmul.f32 %v355, %v376
        %v392 = vmul.f32 %v356, %v376
        %v393 = vmul.f32 %v357, %v376
        %v394 = vmul.f32 %v358, %v376
        %v395 = vmul.f32 %v359, %v376
        %v396 = vmul.f32 %v360, %v376
        %v397 = vmul.f32 %v361, %v376
        %v398 = vmul.f32 %v362, %v376
        %v399 = vmul.f32 %v363, %v376
        %v400 = vmul.f32 %v364, %v376
        %v401 = vmul.f32 %v365, %v376
        %v402 = vmul.f32 %v366, %v376
        %v403 = vmul.f32 %v367, %v376
        %v404 = vmul.f32 %v368, %v376
        %v405 = vmul.f32 %v369, %v376
        %v406 = vmul.f32 %v370, %v376
        %v407 = vmul.f32 %v371, %v376
        %v408 = vmul.f32 %v372, %v376
        %v409 = vmul.f32 %v373, %v376
        %v410 = vld [vmem:[%s2] sm:$0x1]
        %v412 = vperm.slane %v410, 0
        %v414 = vadd.f32 %v378, %v412
        %v415 = vadd.f32 %v379, %v412
        %v416 = vadd.f32 %v380, %v412
        %v417 = vadd.f32 %v381, %v412
        %v418 = vadd.f32 %v382, %v412
        %v419 = vadd.f32 %v383, %v412
        %v420 = vadd.f32 %v384, %v412
        %v421 = vadd.f32 %v385, %v412
        %v422 = vadd.f32 %v386, %v412
        %v423 = vadd.f32 %v387, %v412
        %v424 = vadd.f32 %v388, %v412
        %v425 = vadd.f32 %v389, %v412
        %v426 = vadd.f32 %v390, %v412
        %v427 = vadd.f32 %v391, %v412
        %v428 = vadd.f32 %v392, %v412
        %v429 = vadd.f32 %v393, %v412
        %v430 = vadd.f32 %v394, %v412
        %v431 = vadd.f32 %v395, %v412
        %v432 = vadd.f32 %v396, %v412
        %v433 = vadd.f32 %v397, %v412
        %v434 = vadd.f32 %v398, %v412
        %v435 = vadd.f32 %v399, %v412
        %v436 = vadd.f32 %v400, %v412
        %v437 = vadd.f32 %v401, %v412
        %v438 = vadd.f32 %v402, %v412
        %v439 = vadd.f32 %v403, %v412
        %v440 = vadd.f32 %v404, %v412
        %v441 = vadd.f32 %v405, %v412
        %v442 = vadd.f32 %v406, %v412
        %v443 = vadd.f32 %v407, %v412
        %v444 = vadd.f32 %v408, %v412
        %v445 = vadd.f32 %v409, %v412
        %v446 = vmax.f32 %v414, 0.0
        %v447 = vmax.f32 %v415, 0.0
        %v448 = vmax.f32 %v416, 0.0
        %v449 = vmax.f32 %v417, 0.0
        %v450 = vmax.f32 %v418, 0.0
        %v451 = vmax.f32 %v419, 0.0
        %v452 = vmax.f32 %v420, 0.0
        %v453 = vmax.f32 %v421, 0.0
        %v454 = vmax.f32 %v422, 0.0
        %v455 = vmax.f32 %v423, 0.0
        %v456 = vmax.f32 %v424, 0.0
        %v457 = vmax.f32 %v425, 0.0
        %v458 = vmax.f32 %v426, 0.0
        %v459 = vmax.f32 %v427, 0.0
        %v460 = vmax.f32 %v428, 0.0
        %v461 = vmax.f32 %v429, 0.0
        %v462 = vmax.f32 %v430, 0.0
        %v463 = vmax.f32 %v431, 0.0
        %v464 = vmax.f32 %v432, 0.0
        %v465 = vmax.f32 %v433, 0.0
        %v466 = vmax.f32 %v434, 0.0
        %v467 = vmax.f32 %v435, 0.0
        %v468 = vmax.f32 %v436, 0.0
        %v469 = vmax.f32 %v437, 0.0
        %v470 = vmax.f32 %v438, 0.0
        %v471 = vmax.f32 %v439, 0.0
        %v472 = vmax.f32 %v440, 0.0
        %v473 = vmax.f32 %v441, 0.0
        %v474 = vmax.f32 %v442, 0.0
        %v475 = vmax.f32 %v443, 0.0
        %v476 = vmax.f32 %v444, 0.0
        %v477 = vmax.f32 %v445, 0.0
        %v478 = vpack.c.bf16 %v446, %v446
        %v479 = vpack.c.bf16 %v447, %v447
        %v480 = vpack.c.bf16 %v448, %v448
        %v481 = vpack.c.bf16 %v449, %v449
        %v482 = vpack.c.bf16 %v450, %v450
        %v483 = vpack.c.bf16 %v451, %v451
        %v484 = vpack.c.bf16 %v452, %v452
        %v485 = vpack.c.bf16 %v453, %v453
        %v486 = vpack.c.bf16 %v454, %v454
        %v487 = vpack.c.bf16 %v455, %v455
        %v488 = vpack.c.bf16 %v456, %v456
        %v489 = vpack.c.bf16 %v457, %v457
        %v490 = vpack.c.bf16 %v458, %v458
        %v491 = vpack.c.bf16 %v459, %v459
        %v492 = vpack.c.bf16 %v460, %v460
        %v493 = vpack.c.bf16 %v461, %v461
        %v494 = vpack.c.bf16 %v462, %v462
        %v495 = vpack.c.bf16 %v463, %v463
        %v496 = vpack.c.bf16 %v464, %v464
        %v497 = vpack.c.bf16 %v465, %v465
        %v498 = vpack.c.bf16 %v466, %v466
        %v499 = vpack.c.bf16 %v467, %v467
        %v500 = vpack.c.bf16 %v468, %v468
        %v501 = vpack.c.bf16 %v469, %v469
        %v502 = vpack.c.bf16 %v470, %v470
        %v503 = vpack.c.bf16 %v471, %v471
        %v504 = vpack.c.bf16 %v472, %v472
        %v505 = vpack.c.bf16 %v473, %v473
        %v506 = vpack.c.bf16 %v474, %v474
        %v507 = vpack.c.bf16 %v475, %v475
        %v508 = vpack.c.bf16 %v476, %v476
        %v509 = vpack.c.bf16 %v477, %v477
        %vm510 = vsmask.f32 256
        %vm511 = vsmask.f32 4368
        %vm512 = vmor %vm510, %vm511
        %v514 = vshrl.u32 %v478, 16
        %v516 = vrot.slane %v514, 7
        %v517 = vshll.u32 %v478, 16
        %v519 = vor.u32 %v516, %v517
        %v520 = vrot.slane %v516, 4
        %v522 = vshrl.u32 %v479, 16
        %v524 = vrot.slane %v522, 7
        %v525 = vshll.u32 %v479, 16
        %v527 = vor.u32 %v524, %v525
        %v528 = vsel %vm512, %v520, %v527
        %v529 = vrot.slane %v524, 4
        %v531 = vshrl.u32 %v480, 16
        %v533 = vrot.slane %v531, 7
        %v534 = vshll.u32 %v480, 16
        %v536 = vor.u32 %v533, %v534
        %v537 = vrot.slane %v533, 4
        %v539 = vshrl.u32 %v481, 16
        %v541 = vrot.slane %v539, 7
        %v542 = vshll.u32 %v481, 16
        %v544 = vor.u32 %v541, %v542
        %v545 = vsel %vm512, %v537, %v544
        %v546 = vrot.slane %v541, 4
        %v548 = vshrl.u32 %v482, 16
        %v550 = vrot.slane %v548, 7
        %v551 = vshll.u32 %v482, 16
        %v553 = vor.u32 %v550, %v551
        %v554 = vrot.slane %v550, 4
        %v556 = vshrl.u32 %v483, 16
        %v558 = vrot.slane %v556, 7
        %v559 = vshll.u32 %v483, 16
        %v561 = vor.u32 %v558, %v559
        %v562 = vsel %vm512, %v554, %v561
        %v563 = vrot.slane %v558, 4
        %v565 = vshrl.u32 %v484, 16
        %v567 = vrot.slane %v565, 7
        %v568 = vshll.u32 %v484, 16
        %v570 = vor.u32 %v567, %v568
        %v571 = vrot.slane %v567, 4
        %v573 = vshrl.u32 %v485, 16
        %v575 = vrot.slane %v573, 7
        %v576 = vshll.u32 %v485, 16
        %v578 = vor.u32 %v575, %v576
        %v579 = vsel %vm512, %v571, %v578
        %v580 = vrot.slane %v575, 4
        %v582 = vshrl.u32 %v486, 16
        %v584 = vrot.slane %v582, 7
        %v585 = vshll.u32 %v486, 16
        %v587 = vor.u32 %v584, %v585
        %v588 = vrot.slane %v584, 4
        %v590 = vshrl.u32 %v487, 16
        %v592 = vrot.slane %v590, 7
        %v593 = vshll.u32 %v487, 16
        %v595 = vor.u32 %v592, %v593
        %v596 = vsel %vm512, %v588, %v595
        %v597 = vrot.slane %v592, 4
        %v599 = vshrl.u32 %v488, 16
        %v601 = vrot.slane %v599, 7
        %v602 = vshll.u32 %v488, 16
        %v604 = vor.u32 %v601, %v602
        %v605 = vrot.slane %v601, 4
        %v607 = vshrl.u32 %v489, 16
        %v609 = vrot.slane %v607, 7
        %v610 = vshll.u32 %v489, 16
        %v612 = vor.u32 %v609, %v610
        %v613 = vsel %vm512, %v605, %v612
        %v614 = vrot.slane %v609, 4
        %v616 = vshrl.u32 %v490, 16
        %v618 = vrot.slane %v616, 7
        %v619 = vshll.u32 %v490, 16
        %v621 = vor.u32 %v618, %v619
        %v622 = vrot.slane %v618, 4
        %v624 = vshrl.u32 %v491, 16
        %v626 = vrot.slane %v624, 7
        %v627 = vshll.u32 %v491, 16
        %v629 = vor.u32 %v626, %v627
        %v630 = vsel %vm512, %v622, %v629
        %v631 = vrot.slane %v626, 4
        %v633 = vshrl.u32 %v492, 16
        %v635 = vrot.slane %v633, 7
        %v636 = vshll.u32 %v492, 16
        %v638 = vor.u32 %v635, %v636
        %v639 = vrot.slane %v635, 4
        %v641 = vshrl.u32 %v493, 16
        %v643 = vrot.slane %v641, 7
        %v644 = vshll.u32 %v493, 16
        %v646 = vor.u32 %v643, %v644
        %v647 = vsel %vm512, %v639, %v646
        %v648 = vrot.slane %v643, 4
        %v650 = vshrl.u32 %v494, 16
        %v652 = vrot.slane %v650, 7
        %v653 = vshll.u32 %v494, 16
        %v655 = vor.u32 %v652, %v653
        %v656 = vrot.slane %v652, 4
        %v658 = vshrl.u32 %v495, 16
        %v660 = vrot.slane %v658, 7
        %v661 = vshll.u32 %v495, 16
        %v663 = vor.u32 %v660, %v661
        %v664 = vsel %vm512, %v656, %v663
        %v665 = vrot.slane %v660, 4
        %v667 = vshrl.u32 %v496, 16
        %v669 = vrot.slane %v667, 7
        %v670 = vshll.u32 %v496, 16
        %v672 = vor.u32 %v669, %v670
        %v673 = vrot.slane %v669, 4
        %v675 = vshrl.u32 %v497, 16
        %v677 = vrot.slane %v675, 7
        %v678 = vshll.u32 %v497, 16
        %v680 = vor.u32 %v677, %v678
        %v681 = vsel %vm512, %v673, %v680
        %v682 = vrot.slane %v677, 4
        %v684 = vshrl.u32 %v498, 16
        %v686 = vrot.slane %v684, 7
        %v687 = vshll.u32 %v498, 16
        %v689 = vor.u32 %v686, %v687
        %v690 = vrot.slane %v686, 4
        %v692 = vshrl.u32 %v499, 16
        %v694 = vrot.slane %v692, 7
        %v695 = vshll.u32 %v499, 16
        %v697 = vor.u32 %v694, %v695
        %v698 = vsel %vm512, %v690, %v697
        %v699 = vrot.slane %v694, 4
        %v701 = vshrl.u32 %v500, 16
        %v703 = vrot.slane %v701, 7
        %v704 = vshll.u32 %v500, 16
        %v706 = vor.u32 %v703, %v704
        %v707 = vrot.slane %v703, 4
        %v709 = vshrl.u32 %v501, 16
        %v711 = vrot.slane %v709, 7
        %v712 = vshll.u32 %v501, 16
        %v714 = vor.u32 %v711, %v712
        %v715 = vsel %vm512, %v707, %v714
        %v716 = vrot.slane %v711, 4
        %v718 = vshrl.u32 %v502, 16
        %v720 = vrot.slane %v718, 7
        %v721 = vshll.u32 %v502, 16
        %v723 = vor.u32 %v720, %v721
        %v724 = vrot.slane %v720, 4
        %v726 = vshrl.u32 %v503, 16
        %v728 = vrot.slane %v726, 7
        %v729 = vshll.u32 %v503, 16
        %v731 = vor.u32 %v728, %v729
        %v732 = vsel %vm512, %v724, %v731
        %v733 = vrot.slane %v728, 4
        %v735 = vshrl.u32 %v504, 16
        %v737 = vrot.slane %v735, 7
        %v738 = vshll.u32 %v504, 16
        %v740 = vor.u32 %v737, %v738
        %v741 = vrot.slane %v737, 4
        %v743 = vshrl.u32 %v505, 16
        %v745 = vrot.slane %v743, 7
        %v746 = vshll.u32 %v505, 16
        %v748 = vor.u32 %v745, %v746
        %v749 = vsel %vm512, %v741, %v748
        %v750 = vrot.slane %v745, 4
        %v752 = vshrl.u32 %v506, 16
        %v754 = vrot.slane %v752, 7
        %v755 = vshll.u32 %v506, 16
        %v757 = vor.u32 %v754, %v755
        %v758 = vrot.slane %v754, 4
        %v760 = vshrl.u32 %v507, 16
        %v762 = vrot.slane %v760, 7
        %v763 = vshll.u32 %v507, 16
        %v765 = vor.u32 %v762, %v763
        %v766 = vsel %vm512, %v758, %v765
        %v767 = vrot.slane %v762, 4
        %v769 = vshrl.u32 %v508, 16
        %v771 = vrot.slane %v769, 7
        %v772 = vshll.u32 %v508, 16
        %v774 = vor.u32 %v771, %v772
        %v775 = vrot.slane %v771, 4
        %v777 = vshrl.u32 %v509, 16
        %v779 = vrot.slane %v777, 7
        %v780 = vshll.u32 %v509, 16
        %v782 = vor.u32 %v779, %v780
        %v783 = vsel %vm512, %v775, %v782
        %v784 = vrot.slane %v779, 4
        %s833 = scalar_lea.vmem [#allocation2], 12
        %vm834 = vcmask 27648
        %vm835 = vsmask.f32 7938
        %vm836 = vmand %vm834, %vm835
        %v837 = vld [vmem:[%s833] sm:$0xf]
        %v838 = vsel %vm836, %v519, %v837
        %839 = vst [vmem:[%s833] sm:$0xf] %v838
        %840 = vst.msk [vmem:[%s833 + $0x4] sm:$0xf] %vm286, %v528
        %vm841 = vcmask 24576
        %vm842 = vmand %vm841, %vm510
        %v843 = vld [vmem:[%s833 + $0x8] sm:$0x1]
        %v844 = vsel %vm842, %v529, %v843
        %845 = vst [vmem:[%s833 + $0x8] sm:$0x1] %v844
        %v846 = vld [vmem:[%s833 + $0xc] sm:$0xf]
        %v847 = vsel %vm836, %v536, %v846
        %848 = vst [vmem:[%s833 + $0xc] sm:$0xf] %v847
        %849 = vst.msk [vmem:[%s833 + $0x10] sm:$0xf] %vm286, %v545
        %v850 = vld [vmem:[%s833 + $0x14] sm:$0x1]
        %v851 = vsel %vm842, %v546, %v850
        %852 = vst [vmem:[%s833 + $0x14] sm:$0x1] %v851
        %v853 = vld [vmem:[%s833 + $0x18] sm:$0xf]
        %v854 = vsel %vm836, %v553, %v853
        %855 = vst [vmem:[%s833 + $0x18] sm:$0xf] %v854
        %856 = vst.msk [vmem:[%s833 + $0x1c] sm:$0xf] %vm286, %v562
        %v857 = vld [vmem:[%s833 + $0x20] sm:$0x1]
        %v858 = vsel %vm842, %v563, %v857
        %859 = vst [vmem:[%s833 + $0x20] sm:$0x1] %v858
        %v860 = vld [vmem:[%s833 + $0x24] sm:$0xf]
        %v861 = vsel %vm836, %v570, %v860
        %862 = vst [vmem:[%s833 + $0x24] sm:$0xf] %v861
        %863 = vst.msk [vmem:[%s833 + $0x28] sm:$0xf] %vm286, %v579
        %v864 = vld [vmem:[%s833 + $0x2c] sm:$0x1]
        %v865 = vsel %vm842, %v580, %v864
        %866 = vst [vmem:[%s833 + $0x2c] sm:$0x1] %v865
        %v867 = vld [vmem:[%s833 + $0x30] sm:$0xf]
        %v868 = vsel %vm836, %v587, %v867
        %869 = vst [vmem:[%s833 + $0x30] sm:$0xf] %v868
        %870 = vst.msk [vmem:[%s833 + $0x34] sm:$0xf] %vm286, %v596
        %v871 = vld [vmem:[%s833 + $0x38] sm:$0x1]
        %v872 = vsel %vm842, %v597, %v871
        %873 = vst [vmem:[%s833 + $0x38] sm:$0x1] %v872
        %v874 = vld [vmem:[%s833 + $0x3c] sm:$0xf]
        %v875 = vsel %vm836, %v604, %v874
        %876 = vst [vmem:[%s833 + $0x3c] sm:$0xf] %v875
        %877 = vst.msk [vmem:[%s833 + $0x40] sm:$0xf] %vm286, %v613
        %v878 = vld [vmem:[%s833 + $0x44] sm:$0x1]
        %v879 = vsel %vm842, %v614, %v878
        %880 = vst [vmem:[%s833 + $0x44] sm:$0x1] %v879
        %v881 = vld [vmem:[%s833 + $0x48] sm:$0xf]
        %v882 = vsel %vm836, %v621, %v881
        %883 = vst [vmem:[%s833 + $0x48] sm:$0xf] %v882
        %884 = vst.msk [vmem:[%s833 + $0x4c] sm:$0xf] %vm286, %v630
        %v885 = vld [vmem:[%s833 + $0x50] sm:$0x1]
        %v886 = vsel %vm842, %v631, %v885
        %887 = vst [vmem:[%s833 + $0x50] sm:$0x1] %v886
        %v888 = vld [vmem:[%s833 + $0x54] sm:$0xf]
        %v889 = vsel %vm836, %v638, %v888
        %890 = vst [vmem:[%s833 + $0x54] sm:$0xf] %v889
        %891 = vst.msk [vmem:[%s833 + $0x58] sm:$0xf] %vm286, %v647
        %v892 = vld [vmem:[%s833 + $0x5c] sm:$0x1]
        %v893 = vsel %vm842, %v648, %v892
        %894 = vst [vmem:[%s833 + $0x5c] sm:$0x1] %v893
        %v895 = vld [vmem:[%s833 + $0x60] sm:$0xf]
        %v896 = vsel %vm836, %v655, %v895
        %897 = vst [vmem:[%s833 + $0x60] sm:$0xf] %v896
        %898 = vst.msk [vmem:[%s833 + $0x64] sm:$0xf] %vm286, %v664
        %v899 = vld [vmem:[%s833 + $0x68] sm:$0x1]
        %v900 = vsel %vm842, %v665, %v899
        %901 = vst [vmem:[%s833 + $0x68] sm:$0x1] %v900
        %v902 = vld [vmem:[%s833 + $0x6c] sm:$0xf]
        %v903 = vsel %vm836, %v672, %v902
        %904 = vst [vmem:[%s833 + $0x6c] sm:$0xf] %v903
        %905 = vst.msk [vmem:[%s833 + $0x70] sm:$0xf] %vm286, %v681
        %v906 = vld [vmem:[%s833 + $0x74] sm:$0x1]
        %v907 = vsel %vm842, %v682, %v906
        %908 = vst [vmem:[%s833 + $0x74] sm:$0x1] %v907
        %v909 = vld [vmem:[%s833 + $0x78] sm:$0xf]
        %v910 = vsel %vm836, %v689, %v909
        %911 = vst [vmem:[%s833 + $0x78] sm:$0xf] %v910
        %912 = vst.msk [vmem:[%s833 + $0x7c] sm:$0xf] %vm286, %v698
        %v913 = vld [vmem:[%s833 + $0x80] sm:$0x1]
        %v914 = vsel %vm842, %v699, %v913
        %915 = vst [vmem:[%s833 + $0x80] sm:$0x1] %v914
        %v916 = vld [vmem:[%s833 + $0x84] sm:$0xf]
        %v917 = vsel %vm836, %v706, %v916
        %918 = vst [vmem:[%s833 + $0x84] sm:$0xf] %v917
        %919 = vst.msk [vmem:[%s833 + $0x88] sm:$0xf] %vm286, %v715
        %v920 = vld [vmem:[%s833 + $0x8c] sm:$0x1]
        %v921 = vsel %vm842, %v716, %v920
        %922 = vst [vmem:[%s833 + $0x8c] sm:$0x1] %v921
        %v923 = vld [vmem:[%s833 + $0x90] sm:$0xf]
        %v924 = vsel %vm836, %v723, %v923
        %925 = vst [vmem:[%s833 + $0x90] sm:$0xf] %v924
        %926 = vst.msk [vmem:[%s833 + $0x94] sm:$0xf] %vm286, %v732
        %v927 = vld [vmem:[%s833 + $0x98] sm:$0x1]
        %v928 = vsel %vm842, %v733, %v927
        %929 = vst [vmem:[%s833 + $0x98] sm:$0x1] %v928
        %v930 = vld [vmem:[%s833 + $0x9c] sm:$0xf]
        %v931 = vsel %vm836, %v740, %v930
        %932 = vst [vmem:[%s833 + $0x9c] sm:$0xf] %v931
        %933 = vst.msk [vmem:[%s833 + $0xa0] sm:$0xf] %vm286, %v749
        %v934 = vld [vmem:[%s833 + $0xa4] sm:$0x1]
        %v935 = vsel %vm842, %v750, %v934
        %936 = vst [vmem:[%s833 + $0xa4] sm:$0x1] %v935
        %v937 = vld [vmem:[%s833 + $0xa8] sm:$0xf]
        %v938 = vsel %vm836, %v757, %v937
        %939 = vst [vmem:[%s833 + $0xa8] sm:$0xf] %v938
        %940 = vst.msk [vmem:[%s833 + $0xac] sm:$0xf] %vm286, %v766
        %v941 = vld [vmem:[%s833 + $0xb0] sm:$0x1]
        %v942 = vsel %vm842, %v767, %v941
        %943 = vst [vmem:[%s833 + $0xb0] sm:$0x1] %v942
        %v944 = vld [vmem:[%s833 + $0xb4] sm:$0xf]
        %v945 = vsel %vm836, %v774, %v944
        %946 = vst [vmem:[%s833 + $0xb4] sm:$0xf] %v945
        %947 = vst.msk [vmem:[%s833 + $0xb8] sm:$0xf] %vm286, %v783
        %v948 = vld [vmem:[%s833 + $0xbc] sm:$0x1]
        %v949 = vsel %vm842, %v784, %v948
        %950 = vst [vmem:[%s833 + $0xbc] sm:$0x1] %v949
      $region44: #{resnet_block_up.4} parent=39 // pred_fallthru
        _
      %s951 = smul.u32 %s23, 16
      %s952 = smul.u32 %s951, 3
      %s953 = smul.addr %s952, 4
      %s954 = scalar_lea.vmem [#allocation2], %s953
      %v955 = vld [vmem:[%s954] sm:$0xf]
      %v956 = vld [vmem:[%s954 + $0x4] sm:$0xf]
      %v957 = vld [vmem:[%s954 + $0x8] sm:$0x1]
      %v958 = vld [vmem:[%s954 + $0xc] sm:$0xf]
      %v959 = vld [vmem:[%s954 + $0x10] sm:$0xf]
      %v960 = vld [vmem:[%s954 + $0x14] sm:$0x1]
      %v961 = vld [vmem:[%s954 + $0x18] sm:$0xf]
      %v962 = vld [vmem:[%s954 + $0x1c] sm:$0xf]
      %v963 = vld [vmem:[%s954 + $0x20] sm:$0x1]
      %v964 = vld [vmem:[%s954 + $0x24] sm:$0xf]
      %v965 = vld [vmem:[%s954 + $0x28] sm:$0xf]
      %v966 = vld [vmem:[%s954 + $0x2c] sm:$0x1]
      %v967 = vld [vmem:[%s954 + $0x30] sm:$0xf]
      %v968 = vld [vmem:[%s954 + $0x34] sm:$0xf]
      %v969 = vld [vmem:[%s954 + $0x38] sm:$0x1]
      %v970 = vld [vmem:[%s954 + $0x3c] sm:$0xf]
      %v971 = vld [vmem:[%s954 + $0x40] sm:$0xf]
      %v972 = vld [vmem:[%s954 + $0x44] sm:$0x1]
      %v973 = vld [vmem:[%s954 + $0x48] sm:$0xf]
      %v974 = vld [vmem:[%s954 + $0x4c] sm:$0xf]
      %v975 = vld [vmem:[%s954 + $0x50] sm:$0x1]
      %v976 = vld [vmem:[%s954 + $0x54] sm:$0xf]
      %v977 = vld [vmem:[%s954 + $0x58] sm:$0xf]
      %v978 = vld [vmem:[%s954 + $0x5c] sm:$0x1]
      %v979 = vld [vmem:[%s954 + $0x60] sm:$0xf]
      %v980 = vld [vmem:[%s954 + $0x64] sm:$0xf]
      %v981 = vld [vmem:[%s954 + $0x68] sm:$0x1]
      %v982 = vld [vmem:[%s954 + $0x6c] sm:$0xf]
      %v983 = vld [vmem:[%s954 + $0x70] sm:$0xf]
      %v984 = vld [vmem:[%s954 + $0x74] sm:$0x1]
      %v985 = vld [vmem:[%s954 + $0x78] sm:$0xf]
      %v986 = vld [vmem:[%s954 + $0x7c] sm:$0xf]
      %v987 = vld [vmem:[%s954 + $0x80] sm:$0x1]
      %v988 = vld [vmem:[%s954 + $0x84] sm:$0xf]
      %v989 = vld [vmem:[%s954 + $0x88] sm:$0xf]
      %v990 = vld [vmem:[%s954 + $0x8c] sm:$0x1]
      %v991 = vld [vmem:[%s954 + $0x90] sm:$0xf]
      %v992 = vld [vmem:[%s954 + $0x94] sm:$0xf]
      %v993 = vld [vmem:[%s954 + $0x98] sm:$0x1]
      %v994 = vld [vmem:[%s954 + $0x9c] sm:$0xf]
      %v995 = vld [vmem:[%s954 + $0xa0] sm:$0xf]
      %v996 = vld [vmem:[%s954 + $0xa4] sm:$0x1]
      %v997 = vld [vmem:[%s954 + $0xa8] sm:$0xf]
      %v998 = vld [vmem:[%s954 + $0xac] sm:$0xf]
      %v999 = vld [vmem:[%s954 + $0xb0] sm:$0x1]
      %v1000 = vld [vmem:[%s954 + $0xb4] sm:$0xf]
      %v1001 = vld [vmem:[%s954 + $0xb8] sm:$0xf]
      %v1002 = vld [vmem:[%s954 + $0xbc] sm:$0x1]
      %v1003 = vld [vmem:[%s954 + $0xc0] sm:$0xf]
      %v1004 = vld [vmem:[%s954 + $0xc4] sm:$0xf]
      %v1005 = vld [vmem:[%s954 + $0xc8] sm:$0x1]
      %v1006 = vld [vmem:[%s954 + $0xcc] sm:$0xf]
      %v1007 = vld [vmem:[%s954 + $0xd0] sm:$0xf]
      %v1008 = vld [vmem:[%s954 + $0xd4] sm:$0x1]
      %vm1009 = vsmask.f32 3328
      %vm1010 = vsmask.f32 7440
      %vm1011 = vmor %vm1009, %vm1010
      %v1013 = vshrl.u32 %v955, 16
      %v1015 = vrot.slane %v1013, 4
      %v1016 = vshll.u32 %v955, 16
      %v1018 = vrot.slane %v1016, 5
      %v1019 = vor.u32 %v1015, %v1018
      %v1020 = vrot.slane %v1019, 4
      %v1022 = vshll.u32 %v956, 16
      %v1024 = vrot.slane %v1022, 5
      %v1025 = vsel %vm1011, %v1020, %v1024
      %v1026 = vshrl.u32 %v956, 16
      %v1028 = vrot.slane %v1026, 4
      %v1029 = vor.u32 %v1028, %v1024
      %v1030 = vrot.slane %v1029, 4
      %v1032 = vshll.u32 %v957, 16
      %v1034 = vrot.slane %v1032, 5
      %v1035 = vsel %vm1011, %v1030, %v1034
      %v1037 = vshrl.u32 %v958, 16
      %v1039 = vrot.slane %v1037, 4
      %v1040 = vshll.u32 %v958, 16
      %v1042 = vrot.slane %v1040, 5
      %v1043 = vor.u32 %v1039, %v1042
      %v1044 = vrot.slane %v1043, 4
      %v1046 = vshll.u32 %v959, 16
      %v1048 = vrot.slane %v1046, 5
      %v1049 = vsel %vm1011, %v1044, %v1048
      %v1050 = vshrl.u32 %v959, 16
      %v1052 = vrot.slane %v1050, 4
      %v1053 = vor.u32 %v1052, %v1048
      %v1054 = vrot.slane %v1053, 4
      %v1056 = vshll.u32 %v960, 16
      %v1058 = vrot.slane %v1056, 5
      %v1059 = vsel %vm1011, %v1054, %v1058
      %v1061 = vshrl.u32 %v961, 16
      %v1063 = vrot.slane %v1061, 4
      %v1064 = vshll.u32 %v961, 16
      %v1066 = vrot.slane %v1064, 5
      %v1067 = vor.u32 %v1063, %v1066
      %v1068 = vrot.slane %v1067, 4
      %v1070 = vshll.u32 %v962, 16
      %v1072 = vrot.slane %v1070, 5
      %v1073 = vsel %vm1011, %v1068, %v1072
      %v1074 = vshrl.u32 %v962, 16
      %v1076 = vrot.slane %v1074, 4
      %v1077 = vor.u32 %v1076, %v1072
      %v1078 = vrot.slane %v1077, 4
      %v1080 = vshll.u32 %v963, 16
      %v1082 = vrot.slane %v1080, 5
      %v1083 = vsel %vm1011, %v1078, %v1082
      %v1085 = vshrl.u32 %v964, 16
      %v1087 = vrot.slane %v1085, 4
      %v1088 = vshll.u32 %v964, 16
      %v1090 = vrot.slane %v1088, 5
      %v1091 = vor.u32 %v1087, %v1090
      %v1092 = vrot.slane %v1091, 4
      %v1094 = vshll.u32 %v965, 16
      %v1096 = vrot.slane %v1094, 5
      %v1097 = vsel %vm1011, %v1092, %v1096
      %v1098 = vshrl.u32 %v965, 16
      %v1100 = vrot.slane %v1098, 4
      %v1101 = vor.u32 %v1100, %v1096
      %v1102 = vrot.slane %v1101, 4
      %v1104 = vshll.u32 %v966, 16
      %v1106 = vrot.slane %v1104, 5
      %v1107 = vsel %vm1011, %v1102, %v1106
      %v1109 = vshrl.u32 %v967, 16
      %v1111 = vrot.slane %v1109, 4
      %v1112 = vshll.u32 %v967, 16
      %v1114 = vrot.slane %v1112, 5
      %v1115 = vor.u32 %v1111, %v1114
      %v1116 = vrot.slane %v1115, 4
      %v1118 = vshll.u32 %v968, 16
      %v1120 = vrot.slane %v1118, 5
      %v1121 = vsel %vm1011, %v1116, %v1120
      %v1122 = vshrl.u32 %v968, 16
      %v1124 = vrot.slane %v1122, 4
      %v1125 = vor.u32 %v1124, %v1120
      %v1126 = vrot.slane %v1125, 4
      %v1128 = vshll.u32 %v969, 16
      %v1130 = vrot.slane %v1128, 5
      %v1131 = vsel %vm1011, %v1126, %v1130
      %v1133 = vshrl.u32 %v970, 16
      %v1135 = vrot.slane %v1133, 4
      %v1136 = vshll.u32 %v970, 16
      %v1138 = vrot.slane %v1136, 5
      %v1139 = vor.u32 %v1135, %v1138
      %v1140 = vrot.slane %v1139, 4
      %v1142 = vshll.u32 %v971, 16
      %v1144 = vrot.slane %v1142, 5
      %v1145 = vsel %vm1011, %v1140, %v1144
      %v1146 = vshrl.u32 %v971, 16
      %v1148 = vrot.slane %v1146, 4
      %v1149 = vor.u32 %v1148, %v1144
      %v1150 = vrot.slane %v1149, 4
      %v1152 = vshll.u32 %v972, 16
      %v1154 = vrot.slane %v1152, 5
      %v1155 = vsel %vm1011, %v1150, %v1154
      %v1157 = vshrl.u32 %v973, 16
      %v1159 = vrot.slane %v1157, 4
      %v1160 = vshll.u32 %v973, 16
      %v1162 = vrot.slane %v1160, 5
      %v1163 = vor.u32 %v1159, %v1162
      %v1164 = vrot.slane %v1163, 4
      %v1166 = vshll.u32 %v974, 16
      %v1168 = vrot.slane %v1166, 5
      %v1169 = vsel %vm1011, %v1164, %v1168
      %v1170 = vshrl.u32 %v974, 16
      %v1172 = vrot.slane %v1170, 4
      %v1173 = vor.u32 %v1172, %v1168
      %v1174 = vrot.slane %v1173, 4
      %v1176 = vshll.u32 %v975, 16
      %v1178 = vrot.slane %v1176, 5
      %v1179 = vsel %vm1011, %v1174, %v1178
      %v1181 = vshrl.u32 %v976, 16
      %v1183 = vrot.slane %v1181, 4
      %v1184 = vshll.u32 %v976, 16
      %v1186 = vrot.slane %v1184, 5
      %v1187 = vor.u32 %v1183, %v1186
      %v1188 = vrot.slane %v1187, 4
      %v1190 = vshll.u32 %v977, 16
      %v1192 = vrot.slane %v1190, 5
      %v1193 = vsel %vm1011, %v1188, %v1192
      %v1194 = vshrl.u32 %v977, 16
      %v1196 = vrot.slane %v1194, 4
      %v1197 = vor.u32 %v1196, %v1192
      %v1198 = vrot.slane %v1197, 4
      %v1200 = vshll.u32 %v978, 16
      %v1202 = vrot.slane %v1200, 5
      %v1203 = vsel %vm1011, %v1198, %v1202
      %v1205 = vshrl.u32 %v979, 16
      %v1207 = vrot.slane %v1205, 4
      %v1208 = vshll.u32 %v979, 16
      %v1210 = vrot.slane %v1208, 5
      %v1211 = vor.u32 %v1207, %v1210
      %v1212 = vrot.slane %v1211, 4
      %v1214 = vshll.u32 %v980, 16
      %v1216 = vrot.slane %v1214, 5
      %v1217 = vsel %vm1011, %v1212, %v1216
      %v1218 = vshrl.u32 %v980, 16
      %v1220 = vrot.slane %v1218, 4
      %v1221 = vor.u32 %v1220, %v1216
      %v1222 = vrot.slane %v1221, 4
      %v1224 = vshll.u32 %v981, 16
      %v1226 = vrot.slane %v1224, 5
      %v1227 = vsel %vm1011, %v1222, %v1226
      %v1229 = vshrl.u32 %v982, 16
      %v1231 = vrot.slane %v1229, 4
      %v1232 = vshll.u32 %v982, 16
      %v1234 = vrot.slane %v1232, 5
      %v1235 = vor.u32 %v1231, %v1234
      %v1236 = vrot.slane %v1235, 4
      %v1238 = vshll.u32 %v983, 16
      %v1240 = vrot.slane %v1238, 5
      %v1241 = vsel %vm1011, %v1236, %v1240
      %v1242 = vshrl.u32 %v983, 16
      %v1244 = vrot.slane %v1242, 4
      %v1245 = vor.u32 %v1244, %v1240
      %v1246 = vrot.slane %v1245, 4
      %v1248 = vshll.u32 %v984, 16
      %v1250 = vrot.slane %v1248, 5
      %v1251 = vsel %vm1011, %v1246, %v1250
      %v1253 = vshrl.u32 %v985, 16
      %v1255 = vrot.slane %v1253, 4
      %v1256 = vshll.u32 %v985, 16
      %v1258 = vrot.slane %v1256, 5
      %v1259 = vor.u32 %v1255, %v1258
      %v1260 = vrot.slane %v1259, 4
      %v1262 = vshll.u32 %v986, 16
      %v1264 = vrot.slane %v1262, 5
      %v1265 = vsel %vm1011, %v1260, %v1264
      %v1266 = vshrl.u32 %v986, 16
      %v1268 = vrot.slane %v1266, 4
      %v1269 = vor.u32 %v1268, %v1264
      %v1270 = vrot.slane %v1269, 4
      %v1272 = vshll.u32 %v987, 16
      %v1274 = vrot.slane %v1272, 5
      %v1275 = vsel %vm1011, %v1270, %v1274
      %v1277 = vshrl.u32 %v988, 16
      %v1279 = vrot.slane %v1277, 4
      %v1280 = vshll.u32 %v988, 16
      %v1282 = vrot.slane %v1280, 5
      %v1283 = vor.u32 %v1279, %v1282
      %v1284 = vrot.slane %v1283, 4
      %v1286 = vshll.u32 %v989, 16
      %v1288 = vrot.slane %v1286, 5
      %v1289 = vsel %vm1011, %v1284, %v1288
      %v1290 = vshrl.u32 %v989, 16
      %v1292 = vrot.slane %v1290, 4
      %v1293 = vor.u32 %v1292, %v1288
      %v1294 = vrot.slane %v1293, 4
      %v1296 = vshll.u32 %v990, 16
      %v1298 = vrot.slane %v1296, 5
      %v1299 = vsel %vm1011, %v1294, %v1298
      %v1301 = vshrl.u32 %v991, 16
      %v1303 = vrot.slane %v1301, 4
      %v1304 = vshll.u32 %v991, 16
      %v1306 = vrot.slane %v1304, 5
      %v1307 = vor.u32 %v1303, %v1306
      %v1308 = vrot.slane %v1307, 4
      %v1310 = vshll.u32 %v992, 16
      %v1312 = vrot.slane %v1310, 5
      %v1313 = vsel %vm1011, %v1308, %v1312
      %v1314 = vshrl.u32 %v992, 16
      %v1316 = vrot.slane %v1314, 4
      %v1317 = vor.u32 %v1316, %v1312
      %v1318 = vrot.slane %v1317, 4
      %v1320 = vshll.u32 %v993, 16
      %v1322 = vrot.slane %v1320, 5
      %v1323 = vsel %vm1011, %v1318, %v1322
      %v1325 = vshrl.u32 %v994, 16
      %v1327 = vrot.slane %v1325, 4
      %v1328 = vshll.u32 %v994, 16
      %v1330 = vrot.slane %v1328, 5
      %v1331 = vor.u32 %v1327, %v1330
      %v1332 = vrot.slane %v1331, 4
      %v1334 = vshll.u32 %v995, 16
      %v1336 = vrot.slane %v1334, 5
      %v1337 = vsel %vm1011, %v1332, %v1336
      %v1338 = vshrl.u32 %v995, 16
      %v1340 = vrot.slane %v1338, 4
      %v1341 = vor.u32 %v1340, %v1336
      %v1342 = vrot.slane %v1341, 4
      %v1344 = vshll.u32 %v996, 16
      %v1346 = vrot.slane %v1344, 5
      %v1347 = vsel %vm1011, %v1342, %v1346
      %v1349 = vshrl.u32 %v997, 16
      %v1351 = vrot.slane %v1349, 4
      %v1352 = vshll.u32 %v997, 16
      %v1354 = vrot.slane %v1352, 5
      %v1355 = vor.u32 %v1351, %v1354
      %v1356 = vrot.slane %v1355, 4
      %v1358 = vshll.u32 %v998, 16
      %v1360 = vrot.slane %v1358, 5
      %v1361 = vsel %vm1011, %v1356, %v1360
      %v1362 = vshrl.u32 %v998, 16
      %v1364 = vrot.slane %v1362, 4
      %v1365 = vor.u32 %v1364, %v1360
      %v1366 = vrot.slane %v1365, 4
      %v1368 = vshll.u32 %v999, 16
      %v1370 = vrot.slane %v1368, 5
      %v1371 = vsel %vm1011, %v1366, %v1370
      %v1373 = vshrl.u32 %v1000, 16
      %v1375 = vrot.slane %v1373, 4
      %v1376 = vshll.u32 %v1000, 16
      %v1378 = vrot.slane %v1376, 5
      %v1379 = vor.u32 %v1375, %v1378
      %v1380 = vrot.slane %v1379, 4
      %v1382 = vshll.u32 %v1001, 16
      %v1384 = vrot.slane %v1382, 5
      %v1385 = vsel %vm1011, %v1380, %v1384
      %v1386 = vshrl.u32 %v1001, 16
      %v1388 = vrot.slane %v1386, 4
      %v1389 = vor.u32 %v1388, %v1384
      %v1390 = vrot.slane %v1389, 4
      %v1392 = vshll.u32 %v1002, 16
      %v1394 = vrot.slane %v1392, 5
      %v1395 = vsel %vm1011, %v1390, %v1394
      %vm1444 = vcmask 1042432
      %vm1445 = vcmask 1046532
      %vm1446 = vmor %vm1444, %vm1445
      %v1447 = vrot.slane %v955, 5
      %v1448 = vrot.slane %v1447, 4
      %v1449 = vrot.slane %v956, 5
      %v1450 = vsel %vm1446, %v1448, %v1449
      %v1451 = vrot.slane %v1449, 4
      %v1452 = vrot.slane %v957, 5
      %v1453 = vsel %vm1446, %v1451, %v1452
      %v1454 = vrot.slane %v958, 5
      %v1455 = vrot.slane %v1454, 4
      %v1456 = vrot.slane %v959, 5
      %v1457 = vsel %vm1446, %v1455, %v1456
      %v1458 = vrot.slane %v1456, 4
      %v1459 = vrot.slane %v960, 5
      %v1460 = vsel %vm1446, %v1458, %v1459
      %v1461 = vrot.slane %v961, 5
      %v1462 = vrot.slane %v1461, 4
      %v1463 = vrot.slane %v962, 5
      %v1464 = vsel %vm1446, %v1462, %v1463
      %v1465 = vrot.slane %v1463, 4
      %v1466 = vrot.slane %v963, 5
      %v1467 = vsel %vm1446, %v1465, %v1466
      %v1468 = vrot.slane %v964, 5
      %v1469 = vrot.slane %v1468, 4
      %v1470 = vrot.slane %v965, 5
      %v1471 = vsel %vm1446, %v1469, %v1470
      %v1472 = vrot.slane %v1470, 4
      %v1473 = vrot.slane %v966, 5
      %v1474 = vsel %vm1446, %v1472, %v1473
      %v1475 = vrot.slane %v967, 5
      %v1476 = vrot.slane %v1475, 4
      %v1477 = vrot.slane %v968, 5
      %v1478 = vsel %vm1446, %v1476, %v1477
      %v1479 = vrot.slane %v1477, 4
      %v1480 = vrot.slane %v969, 5
      %v1481 = vsel %vm1446, %v1479, %v1480
      %v1482 = vrot.slane %v970, 5
      %v1483 = vrot.slane %v1482, 4
      %v1484 = vrot.slane %v971, 5
      %v1485 = vsel %vm1446, %v1483, %v1484
      %v1486 = vrot.slane %v1484, 4
      %v1487 = vrot.slane %v972, 5
      %v1488 = vsel %vm1446, %v1486, %v1487
      %v1489 = vrot.slane %v973, 5
      %v1490 = vrot.slane %v1489, 4
      %v1491 = vrot.slane %v974, 5
      %v1492 = vsel %vm1446, %v1490, %v1491
      %v1493 = vrot.slane %v1491, 4
      %v1494 = vrot.slane %v975, 5
      %v1495 = vsel %vm1446, %v1493, %v1494
      %v1496 = vrot.slane %v976, 5
      %v1497 = vrot.slane %v1496, 4
      %v1498 = vrot.slane %v977, 5
      %v1499 = vsel %vm1446, %v1497, %v1498
      %v1500 = vrot.slane %v1498, 4
      %v1501 = vrot.slane %v978, 5
      %v1502 = vsel %vm1446, %v1500, %v1501
      %v1503 = vrot.slane %v979, 5
      %v1504 = vrot.slane %v1503, 4
      %v1505 = vrot.slane %v980, 5
      %v1506 = vsel %vm1446, %v1504, %v1505
      %v1507 = vrot.slane %v1505, 4
      %v1508 = vrot.slane %v981, 5
      %v1509 = vsel %vm1446, %v1507, %v1508
      %v1510 = vrot.slane %v982, 5
      %v1511 = vrot.slane %v1510, 4
      %v1512 = vrot.slane %v983, 5
      %v1513 = vsel %vm1446, %v1511, %v1512
      %v1514 = vrot.slane %v1512, 4
      %v1515 = vrot.slane %v984, 5
      %v1516 = vsel %vm1446, %v1514, %v1515
      %v1517 = vrot.slane %v985, 5
      %v1518 = vrot.slane %v1517, 4
      %v1519 = vrot.slane %v986, 5
      %v1520 = vsel %vm1446, %v1518, %v1519
      %v1521 = vrot.slane %v1519, 4
      %v1522 = vrot.slane %v987, 5
      %v1523 = vsel %vm1446, %v1521, %v1522
      %v1524 = vrot.slane %v988, 5
      %v1525 = vrot.slane %v1524, 4
      %v1526 = vrot.slane %v989, 5
      %v1527 = vsel %vm1446, %v1525, %v1526
      %v1528 = vrot.slane %v1526, 4
      %v1529 = vrot.slane %v990, 5
      %v1530 = vsel %vm1446, %v1528, %v1529
      %v1531 = vrot.slane %v991, 5
      %v1532 = vrot.slane %v1531, 4
      %v1533 = vrot.slane %v992, 5
      %v1534 = vsel %vm1446, %v1532, %v1533
      %v1535 = vrot.slane %v1533, 4
      %v1536 = vrot.slane %v993, 5
      %v1537 = vsel %vm1446, %v1535, %v1536
      %v1538 = vrot.slane %v994, 5
      %v1539 = vrot.slane %v1538, 4
      %v1540 = vrot.slane %v995, 5
      %v1541 = vsel %vm1446, %v1539, %v1540
      %v1542 = vrot.slane %v1540, 4
      %v1543 = vrot.slane %v996, 5
      %v1544 = vsel %vm1446, %v1542, %v1543
      %v1545 = vrot.slane %v997, 5
      %v1546 = vrot.slane %v1545, 4
      %v1547 = vrot.slane %v998, 5
      %v1548 = vsel %vm1446, %v1546, %v1547
      %v1549 = vrot.slane %v1547, 4
      %v1550 = vrot.slane %v999, 5
      %v1551 = vsel %vm1446, %v1549, %v1550
      %v1552 = vrot.slane %v1000, 5
      %v1553 = vrot.slane %v1552, 4
      %v1554 = vrot.slane %v1001, 5
      %v1555 = vsel %vm1446, %v1553, %v1554
      %v1556 = vrot.slane %v1554, 4
      %v1557 = vrot.slane %v1002, 5
      %v1558 = vsel %vm1446, %v1556, %v1557
      %v1560 = vshrl.u32 %v1003, 16
      %v1562 = vrot.slane %v1560, 4
      %v1563 = vshll.u32 %v1003, 16
      %v1565 = vrot.slane %v1563, 5
      %v1566 = vor.u32 %v1562, %v1565
      %v1567 = vrot.slane %v1566, 4
      %v1569 = vshll.u32 %v1004, 16
      %v1571 = vrot.slane %v1569, 5
      %v1572 = vsel %vm1011, %v1567, %v1571
      %v1573 = vshrl.u32 %v1004, 16
      %v1575 = vrot.slane %v1573, 4
      %v1576 = vor.u32 %v1575, %v1571
      %v1577 = vrot.slane %v1576, 4
      %v1579 = vshll.u32 %v1005, 16
      %v1581 = vrot.slane %v1579, 5
      %v1582 = vsel %vm1011, %v1577, %v1581
      %v1586 = vrot.slane %v1003, 5
      %v1587 = vrot.slane %v1586, 4
      %v1588 = vrot.slane %v1004, 5
      %v1589 = vsel %vm1446, %v1587, %v1588
      %v1590 = vrot.slane %v1588, 4
      %v1591 = vrot.slane %v1005, 5
      %v1592 = vsel %vm1446, %v1590, %v1591
      %v1594 = vshrl.u32 %v1006, 16
      %v1596 = vrot.slane %v1594, 4
      %v1597 = vshll.u32 %v1006, 16
      %v1599 = vrot.slane %v1597, 5
      %v1600 = vor.u32 %v1596, %v1599
      %v1601 = vrot.slane %v1600, 4
      %v1603 = vshll.u32 %v1007, 16
      %v1605 = vrot.slane %v1603, 5
      %v1606 = vsel %vm1011, %v1601, %v1605
      %v1607 = vshrl.u32 %v1007, 16
      %v1609 = vrot.slane %v1607, 4
      %v1610 = vor.u32 %v1609, %v1605
      %v1611 = vrot.slane %v1610, 4
      %v1613 = vshll.u32 %v1008, 16
      %v1615 = vrot.slane %v1613, 5
      %v1616 = vsel %vm1011, %v1611, %v1615
      %v1620 = vrot.slane %v1006, 5
      %v1621 = vrot.slane %v1620, 4
      %v1622 = vrot.slane %v1007, 5
      %v1623 = vsel %vm1446, %v1621, %v1622
      %v1624 = vrot.slane %v1622, 4
      %v1625 = vrot.slane %v1008, 5
      %v1626 = vsel %vm1446, %v1624, %v1625
      %v1627 = vunpack.c.l.b16 %v955
      %v1628 = vunpack.c.l.b16 %v956
      %v1629 = vunpack.c.l.b16 %v958
      %v1630 = vunpack.c.l.b16 %v959
      %v1631 = vunpack.c.l.b16 %v961
      %v1632 = vunpack.c.l.b16 %v962
      %v1633 = vunpack.c.l.b16 %v964
      %v1634 = vunpack.c.l.b16 %v965
      %v1635 = vunpack.c.l.b16 %v967
      %v1636 = vunpack.c.l.b16 %v968
      %v1637 = vunpack.c.l.b16 %v970
      %v1638 = vunpack.c.l.b16 %v971
      %v1639 = vunpack.c.l.b16 %v973
      %v1640 = vunpack.c.l.b16 %v974
      %v1641 = vunpack.c.l.b16 %v976
      %v1642 = vunpack.c.l.b16 %v977
      %v1643 = vunpack.c.l.b16 %v979
      %v1644 = vunpack.c.l.b16 %v980
      %v1645 = vunpack.c.l.b16 %v982
      %v1646 = vunpack.c.l.b16 %v983
      %v1647 = vunpack.c.l.b16 %v985
      %v1648 = vunpack.c.l.b16 %v986
      %v1649 = vunpack.c.l.b16 %v988
      %v1650 = vunpack.c.l.b16 %v989
      %v1651 = vunpack.c.l.b16 %v991
      %v1652 = vunpack.c.l.b16 %v992
      %v1653 = vunpack.c.l.b16 %v994
      %v1654 = vunpack.c.l.b16 %v995
      %v1655 = vunpack.c.l.b16 %v997
      %v1656 = vunpack.c.l.b16 %v998
      %v1657 = vunpack.c.l.b16 %v1000
      %v1658 = vunpack.c.l.b16 %v1001
      %v1659 = vpack.c.b16 %v1628, %v1627
      %v1660 = vpack.c.b16 %v1630, %v1629
      %v1661 = vpack.c.b16 %v1632, %v1631
      %v1662 = vpack.c.b16 %v1634, %v1633
      %v1663 = vpack.c.b16 %v1636, %v1635
      %v1664 = vpack.c.b16 %v1638, %v1637
      %v1665 = vpack.c.b16 %v1640, %v1639
      %v1666 = vpack.c.b16 %v1642, %v1641
      %v1667 = vpack.c.b16 %v1644, %v1643
      %v1668 = vpack.c.b16 %v1646, %v1645
      %v1669 = vpack.c.b16 %v1648, %v1647
      %v1670 = vpack.c.b16 %v1650, %v1649
      %v1671 = vpack.c.b16 %v1652, %v1651
      %v1672 = vpack.c.b16 %v1654, %v1653
      %v1673 = vpack.c.b16 %v1656, %v1655
      %v1674 = vpack.c.b16 %v1658, %v1657
      %v1675 = vunpack.c.l.b16 %v1025
      %v1676 = vunpack.c.l.b16 %v1035
      %v1677 = vunpack.c.l.b16 %v1049
      %v1678 = vunpack.c.l.b16 %v1059
      %v1679 = vunpack.c.l.b16 %v1073
      %v1680 = vunpack.c.l.b16 %v1083
      %v1681 = vunpack.c.l.b16 %v1097
      %v1682 = vunpack.c.l.b16 %v1107
      %v1683 = vunpack.c.l.b16 %v1121
      %v1684 = vunpack.c.l.b16 %v1131
      %v1685 = vunpack.c.l.b16 %v1145
      %v1686 = vunpack.c.l.b16 %v1155
      %v1687 = vunpack.c.l.b16 %v1169
      %v1688 = vunpack.c.l.b16 %v1179
      %v1689 = vunpack.c.l.b16 %v1193
      %v1690 = vunpack.c.l.b16 %v1203
      %v1691 = vunpack.c.l.b16 %v1217
      %v1692 = vunpack.c.l.b16 %v1227
      %v1693 = vunpack.c.l.b16 %v1241
      %v1694 = vunpack.c.l.b16 %v1251
      %v1695 = vunpack.c.l.b16 %v1265
      %v1696 = vunpack.c.l.b16 %v1275
      %v1697 = vunpack.c.l.b16 %v1289
      %v1698 = vunpack.c.l.b16 %v1299
      %v1699 = vunpack.c.l.b16 %v1313
      %v1700 = vunpack.c.l.b16 %v1323
      %v1701 = vunpack.c.l.b16 %v1337
      %v1702 = vunpack.c.l.b16 %v1347
      %v1703 = vunpack.c.l.b16 %v1361
      %v1704 = vunpack.c.l.b16 %v1371
      %v1705 = vunpack.c.l.b16 %v1385
      %v1706 = vunpack.c.l.b16 %v1395
      %v1707 = vpack.c.b16 %v1676, %v1675
      %v1708 = vpack.c.b16 %v1678, %v1677
      %v1709 = vpack.c.b16 %v1680, %v1679
      %v1710 = vpack.c.b16 %v1682, %v1681
      %v1711 = vpack.c.b16 %v1684, %v1683
      %v1712 = vpack.c.b16 %v1686, %v1685
      %v1713 = vpack.c.b16 %v1688, %v1687
      %v1714 = vpack.c.b16 %v1690, %v1689
      %v1715 = vpack.c.b16 %v1692, %v1691
      %v1716 = vpack.c.b16 %v1694, %v1693
      %v1717 = vpack.c.b16 %v1696, %v1695
      %v1718 = vpack.c.b16 %v1698, %v1697
      %v1719 = vpack.c.b16 %v1700, %v1699
      %v1720 = vpack.c.b16 %v1702, %v1701
      %v1721 = vpack.c.b16 %v1704, %v1703
      %v1722 = vpack.c.b16 %v1706, %v1705
      %1723 = vrot.lane.b32.xlu0 %v1707, 4
      %v1724 = vpop.permute.xlu0 %1723
      %1725 = vrot.lane.b32.xlu0 %v1708, 4
      %v1726 = vpop.permute.xlu0 %1725
      %1727 = vrot.lane.b32.xlu0 %v1709, 4
      %v1728 = vpop.permute.xlu0 %1727
      %1729 = vrot.lane.b32.xlu0 %v1710, 4
      %v1730 = vpop.permute.xlu0 %1729
      %1731 = vrot.lane.b32.xlu0 %v1711, 4
      %v1732 = vpop.permute.xlu0 %1731
      %1733 = vrot.lane.b32.xlu0 %v1712, 4
      %v1734 = vpop.permute.xlu0 %1733
      %1735 = vrot.lane.b32.xlu0 %v1713, 4
      %v1736 = vpop.permute.xlu0 %1735
      %1737 = vrot.lane.b32.xlu0 %v1714, 4
      %v1738 = vpop.permute.xlu0 %1737
      %1739 = vrot.lane.b32.xlu0 %v1715, 4
      %v1740 = vpop.permute.xlu0 %1739
      %1741 = vrot.lane.b32.xlu0 %v1716, 4
      %v1742 = vpop.permute.xlu0 %1741
      %1743 = vrot.lane.b32.xlu0 %v1717, 4
      %v1744 = vpop.permute.xlu0 %1743
      %1745 = vrot.lane.b32.xlu0 %v1718, 4
      %v1746 = vpop.permute.xlu0 %1745
      %1747 = vrot.lane.b32.xlu0 %v1719, 4
      %v1748 = vpop.permute.xlu0 %1747
      %1749 = vrot.lane.b32.xlu0 %v1720, 4
      %v1750 = vpop.permute.xlu0 %1749
      %1751 = vrot.lane.b32.xlu0 %v1721, 4
      %v1752 = vpop.permute.xlu0 %1751
      %1753 = vrot.lane.b32.xlu0 %v1722, 4
      %v1754 = vpop.permute.xlu0 %1753
      %v1755 = vunpack.c.l.b16 %v1450
      %v1756 = vunpack.c.l.b16 %v1453
      %v1757 = vunpack.c.l.b16 %v1457
      %v1758 = vunpack.c.l.b16 %v1460
      %v1759 = vunpack.c.l.b16 %v1464
      %v1760 = vunpack.c.l.b16 %v1467
      %v1761 = vunpack.c.l.b16 %v1471
      %v1762 = vunpack.c.l.b16 %v1474
      %v1763 = vunpack.c.l.b16 %v1478
      %v1764 = vunpack.c.l.b16 %v1481
      %v1765 = vunpack.c.l.b16 %v1485
      %v1766 = vunpack.c.l.b16 %v1488
      %v1767 = vunpack.c.l.b16 %v1492
      %v1768 = vunpack.c.l.b16 %v1495
      %v1769 = vunpack.c.l.b16 %v1499
      %v1770 = vunpack.c.l.b16 %v1502
      %v1771 = vunpack.c.l.b16 %v1506
      %v1772 = vunpack.c.l.b16 %v1509
      %v1773 = vunpack.c.l.b16 %v1513
      %v1774 = vunpack.c.l.b16 %v1516
      %v1775 = vunpack.c.l.b16 %v1520
      %v1776 = vunpack.c.l.b16 %v1523
      %v1777 = vunpack.c.l.b16 %v1527
      %v1778 = vunpack.c.l.b16 %v1530
      %v1779 = vunpack.c.l.b16 %v1534
      %v1780 = vunpack.c.l.b16 %v1537
      %v1781 = vunpack.c.l.b16 %v1541
      %v1782 = vunpack.c.l.b16 %v1544
      %v1783 = vunpack.c.l.b16 %v1548
      %v1784 = vunpack.c.l.b16 %v1551
      %v1785 = vunpack.c.l.b16 %v1555
      %v1786 = vunpack.c.l.b16 %v1558
      %v1787 = vpack.c.b16 %v1756, %v1755
      %v1788 = vpack.c.b16 %v1758, %v1757
      %v1789 = vpack.c.b16 %v1760, %v1759
      %v1790 = vpack.c.b16 %v1762, %v1761
      %v1791 = vpack.c.b16 %v1764, %v1763
      %v1792 = vpack.c.b16 %v1766, %v1765
      %v1793 = vpack.c.b16 %v1768, %v1767
      %v1794 = vpack.c.b16 %v1770, %v1769
      %v1795 = vpack.c.b16 %v1772, %v1771
      %v1796 = vpack.c.b16 %v1774, %v1773
      %v1797 = vpack.c.b16 %v1776, %v1775
      %v1798 = vpack.c.b16 %v1778, %v1777
      %v1799 = vpack.c.b16 %v1780, %v1779
      %v1800 = vpack.c.b16 %v1782, %v1781
      %v1801 = vpack.c.b16 %v1784, %v1783
      %v1802 = vpack.c.b16 %v1786, %v1785
      %1803 = vrot.lane.b32.xlu0 %v1787, 8
      %v1804 = vpop.permute.xlu0 %1803
      %1805 = vrot.lane.b32.xlu0 %v1788, 8
      %v1806 = vpop.permute.xlu0 %1805
      %1807 = vrot.lane.b32.xlu0 %v1789, 8
      %v1808 = vpop.permute.xlu0 %1807
      %1809 = vrot.lane.b32.xlu0 %v1790, 8
      %v1810 = vpop.permute.xlu0 %1809
      %1811 = vrot.lane.b32.xlu0 %v1791, 8
      %v1812 = vpop.permute.xlu0 %1811
      %1813 = vrot.lane.b32.xlu0 %v1792, 8
      %v1814 = vpop.permute.xlu0 %1813
      %1815 = vrot.lane.b32.xlu0 %v1793, 8
      %v1816 = vpop.permute.xlu0 %1815
      %1817 = vrot.lane.b32.xlu0 %v1794, 8
      %v1818 = vpop.permute.xlu0 %1817
      %1819 = vrot.lane.b32.xlu0 %v1795, 8
      %v1820 = vpop.permute.xlu0 %1819
      %1821 = vrot.lane.b32.xlu0 %v1796, 8
      %v1822 = vpop.permute.xlu0 %1821
      %1823 = vrot.lane.b32.xlu0 %v1797, 8
      %v1824 = vpop.permute.xlu0 %1823
      %1825 = vrot.lane.b32.xlu0 %v1798, 8
      %v1826 = vpop.permute.xlu0 %1825
      %1827 = vrot.lane.b32.xlu0 %v1799, 8
      %v1828 = vpop.permute.xlu0 %1827
      %1829 = vrot.lane.b32.xlu0 %v1800, 8
      %v1830 = vpop.permute.xlu0 %1829
      %1831 = vrot.lane.b32.xlu0 %v1801, 8
      %v1832 = vpop.permute.xlu0 %1831
      %1833 = vrot.lane.b32.xlu0 %v1802, 8
      %v1834 = vpop.permute.xlu0 %1833
      %v1835 = vunpack.c.l.b16 %v1003
      %v1836 = vunpack.c.l.b16 %v1004
      %v1837 = vpack.c.b16 %v1836, %v1835
      %1838 = vrot.lane.b32.xlu0 %v1660, 12
      %v1839 = vpop.permute.xlu0 %1838
      %1840 = vrot.lane.b32.xlu0 %v1661, 12
      %v1841 = vpop.permute.xlu0 %1840
      %1842 = vrot.lane.b32.xlu0 %v1662, 12
      %v1843 = vpop.permute.xlu0 %1842
      %1844 = vrot.lane.b32.xlu0 %v1663, 12
      %v1845 = vpop.permute.xlu0 %1844
      %1846 = vrot.lane.b32.xlu0 %v1664, 12
      %v1847 = vpop.permute.xlu0 %1846
      %1848 = vrot.lane.b32.xlu0 %v1665, 12
      %v1849 = vpop.permute.xlu0 %1848
      %1850 = vrot.lane.b32.xlu0 %v1666, 12
      %v1851 = vpop.permute.xlu0 %1850
      %1852 = vrot.lane.b32.xlu0 %v1667, 12
      %v1853 = vpop.permute.xlu0 %1852
      %1854 = vrot.lane.b32.xlu0 %v1668, 12
      %v1855 = vpop.permute.xlu0 %1854
      %1856 = vrot.lane.b32.xlu0 %v1669, 12
      %v1857 = vpop.permute.xlu0 %1856
      %1858 = vrot.lane.b32.xlu0 %v1670, 12
      %v1859 = vpop.permute.xlu0 %1858
      %1860 = vrot.lane.b32.xlu0 %v1671, 12
      %v1861 = vpop.permute.xlu0 %1860
      %1862 = vrot.lane.b32.xlu0 %v1672, 12
      %v1863 = vpop.permute.xlu0 %1862
      %1864 = vrot.lane.b32.xlu0 %v1673, 12
      %v1865 = vpop.permute.xlu0 %1864
      %1866 = vrot.lane.b32.xlu0 %v1674, 12
      %v1867 = vpop.permute.xlu0 %1866
      %1868 = vrot.lane.b32.xlu0 %v1837, 12
      %v1869 = vpop.permute.xlu0 %1868
      %v1870 = vunpack.c.l.b16 %v1572
      %v1871 = vunpack.c.l.b16 %v1582
      %v1872 = vpack.c.b16 %v1871, %v1870
      %1873 = vrot.lane.b32.xlu0 %v1708, 16
      %v1874 = vpop.permute.xlu0 %1873
      %1875 = vrot.lane.b32.xlu0 %v1709, 16
      %v1876 = vpop.permute.xlu0 %1875
      %1877 = vrot.lane.b32.xlu0 %v1710, 16
      %v1878 = vpop.permute.xlu0 %1877
      %1879 = vrot.lane.b32.xlu0 %v1711, 16
      %v1880 = vpop.permute.xlu0 %1879
      %1881 = vrot.lane.b32.xlu0 %v1712, 16
      %v1882 = vpop.permute.xlu0 %1881
      %1883 = vrot.lane.b32.xlu0 %v1713, 16
      %v1884 = vpop.permute.xlu0 %1883
      %1885 = vrot.lane.b32.xlu0 %v1714, 16
      %v1886 = vpop.permute.xlu0 %1885
      %1887 = vrot.lane.b32.xlu0 %v1715, 16
      %v1888 = vpop.permute.xlu0 %1887
      %1889 = vrot.lane.b32.xlu0 %v1716, 16
      %v1890 = vpop.permute.xlu0 %1889
      %1891 = vrot.lane.b32.xlu0 %v1717, 16
      %v1892 = vpop.permute.xlu0 %1891
      %1893 = vrot.lane.b32.xlu0 %v1718, 16
      %v1894 = vpop.permute.xlu0 %1893
      %1895 = vrot.lane.b32.xlu0 %v1719, 16
      %v1896 = vpop.permute.xlu0 %1895
      %1897 = vrot.lane.b32.xlu0 %v1720, 16
      %v1898 = vpop.permute.xlu0 %1897
      %1899 = vrot.lane.b32.xlu0 %v1721, 16
      %v1900 = vpop.permute.xlu0 %1899
      %1901 = vrot.lane.b32.xlu0 %v1722, 16
      %v1902 = vpop.permute.xlu0 %1901
      %1903 = vrot.lane.b32.xlu0 %v1872, 16
      %v1904 = vpop.permute.xlu0 %1903
      %v1905 = vunpack.c.l.b16 %v1589
      %v1906 = vunpack.c.l.b16 %v1592
      %v1907 = vpack.c.b16 %v1906, %v1905
      %1908 = vrot.lane.b32.xlu0 %v1788, 20
      %v1909 = vpop.permute.xlu0 %1908
      %1910 = vrot.lane.b32.xlu0 %v1789, 20
      %v1911 = vpop.permute.xlu0 %1910
      %1912 = vrot.lane.b32.xlu0 %v1790, 20
      %v1913 = vpop.permute.xlu0 %1912
      %1914 = vrot.lane.b32.xlu0 %v1791, 20
      %v1915 = vpop.permute.xlu0 %1914
      %1916 = vrot.lane.b32.xlu0 %v1792, 20
      %v1917 = vpop.permute.xlu0 %1916
      %1918 = vrot.lane.b32.xlu0 %v1793, 20
      %v1919 = vpop.permute.xlu0 %1918
      %1920 = vrot.lane.b32.xlu0 %v1794, 20
      %v1921 = vpop.permute.xlu0 %1920
      %1922 = vrot.lane.b32.xlu0 %v1795, 20
      %v1923 = vpop.permute.xlu0 %1922
      %1924 = vrot.lane.b32.xlu0 %v1796, 20
      %v1925 = vpop.permute.xlu0 %1924
      %1926 = vrot.lane.b32.xlu0 %v1797, 20
      %v1927 = vpop.permute.xlu0 %1926
      %1928 = vrot.lane.b32.xlu0 %v1798, 20
      %v1929 = vpop.permute.xlu0 %1928
      %1930 = vrot.lane.b32.xlu0 %v1799, 20
      %v1931 = vpop.permute.xlu0 %1930
      %1932 = vrot.lane.b32.xlu0 %v1800, 20
      %v1933 = vpop.permute.xlu0 %1932
      %1934 = vrot.lane.b32.xlu0 %v1801, 20
      %v1935 = vpop.permute.xlu0 %1934
      %1936 = vrot.lane.b32.xlu0 %v1802, 20
      %v1937 = vpop.permute.xlu0 %1936
      %1938 = vrot.lane.b32.xlu0 %v1907, 20
      %v1939 = vpop.permute.xlu0 %1938
      %v1940 = vunpack.c.l.b16 %v1006
      %v1941 = vunpack.c.l.b16 %v1007
      %v1942 = vpack.c.b16 %v1941, %v1940
      %1943 = vrot.lane.b32.xlu0 %v1661, 24
      %v1944 = vpop.permute.xlu0 %1943
      %1945 = vrot.lane.b32.xlu0 %v1662, 24
      %v1946 = vpop.permute.xlu0 %1945
      %1947 = vrot.lane.b32.xlu0 %v1663, 24
      %v1948 = vpop.permute.xlu0 %1947
      %1949 = vrot.lane.b32.xlu0 %v1664, 24
      %v1950 = vpop.permute.xlu0 %1949
      %1951 = vrot.lane.b32.xlu0 %v1665, 24
      %v1952 = vpop.permute.xlu0 %1951
      %1953 = vrot.lane.b32.xlu0 %v1666, 24
      %v1954 = vpop.permute.xlu0 %1953
      %1955 = vrot.lane.b32.xlu0 %v1667, 24
      %v1956 = vpop.permute.xlu0 %1955
      %1957 = vrot.lane.b32.xlu0 %v1668, 24
      %v1958 = vpop.permute.xlu0 %1957
      %1959 = vrot.lane.b32.xlu0 %v1669, 24
      %v1960 = vpop.permute.xlu0 %1959
      %1961 = vrot.lane.b32.xlu0 %v1670, 24
      %v1962 = vpop.permute.xlu0 %1961
      %1963 = vrot.lane.b32.xlu0 %v1671, 24
      %v1964 = vpop.permute.xlu0 %1963
      %1965 = vrot.lane.b32.xlu0 %v1672, 24
      %v1966 = vpop.permute.xlu0 %1965
      %1967 = vrot.lane.b32.xlu0 %v1673, 24
      %v1968 = vpop.permute.xlu0 %1967
      %1969 = vrot.lane.b32.xlu0 %v1674, 24
      %v1970 = vpop.permute.xlu0 %1969
      %1971 = vrot.lane.b32.xlu0 %v1837, 24
      %v1972 = vpop.permute.xlu0 %1971
      %1973 = vrot.lane.b32.xlu0 %v1942, 24
      %v1974 = vpop.permute.xlu0 %1973
      %v1975 = vunpack.c.l.b16 %v1606
      %v1976 = vunpack.c.l.b16 %v1616
      %v1977 = vpack.c.b16 %v1976, %v1975
      %1978 = vrot.lane.b32.xlu0 %v1709, 28
      %v1979 = vpop.permute.xlu0 %1978
      %1980 = vrot.lane.b32.xlu0 %v1710, 28
      %v1981 = vpop.permute.xlu0 %1980
      %1982 = vrot.lane.b32.xlu0 %v1711, 28
      %v1983 = vpop.permute.xlu0 %1982
      %1984 = vrot.lane.b32.xlu0 %v1712, 28
      %v1985 = vpop.permute.xlu0 %1984
      %1986 = vrot.lane.b32.xlu0 %v1713, 28
      %v1987 = vpop.permute.xlu0 %1986
      %1988 = vrot.lane.b32.xlu0 %v1714, 28
      %v1989 = vpop.permute.xlu0 %1988
      %1990 = vrot.lane.b32.xlu0 %v1715, 28
      %v1991 = vpop.permute.xlu0 %1990
      %1992 = vrot.lane.b32.xlu0 %v1716, 28
      %v1993 = vpop.permute.xlu0 %1992
      %1994 = vrot.lane.b32.xlu0 %v1717, 28
      %v1995 = vpop.permute.xlu0 %1994
      %1996 = vrot.lane.b32.xlu0 %v1718, 28
      %v1997 = vpop.permute.xlu0 %1996
      %1998 = vrot.lane.b32.xlu0 %v1719, 28
      %v1999 = vpop.permute.xlu0 %1998
      %2000 = vrot.lane.b32.xlu0 %v1720, 28
      %v2001 = vpop.permute.xlu0 %2000
      %2002 = vrot.lane.b32.xlu0 %v1721, 28
      %v2003 = vpop.permute.xlu0 %2002
      %2004 = vrot.lane.b32.xlu0 %v1722, 28
      %v2005 = vpop.permute.xlu0 %2004
      %2006 = vrot.lane.b32.xlu0 %v1872, 28
      %v2007 = vpop.permute.xlu0 %2006
      %2008 = vrot.lane.b32.xlu0 %v1977, 28
      %v2009 = vpop.permute.xlu0 %2008
      %v2010 = vunpack.c.l.b16 %v1623
      %v2011 = vunpack.c.l.b16 %v1626
      %v2012 = vpack.c.b16 %v2011, %v2010
      %2013 = vrot.lane.b32.xlu0 %v1789, 32
      %v2014 = vpop.permute.xlu0 %2013
      %2015 = vrot.lane.b32.xlu0 %v1790, 32
      %v2016 = vpop.permute.xlu0 %2015
      %2017 = vrot.lane.b32.xlu0 %v1791, 32
      %v2018 = vpop.permute.xlu0 %2017
      %2019 = vrot.lane.b32.xlu0 %v1792, 32
      %v2020 = vpop.permute.xlu0 %2019
      %2021 = vrot.lane.b32.xlu0 %v1793, 32
      %v2022 = vpop.permute.xlu0 %2021
      %2023 = vrot.lane.b32.xlu0 %v1794, 32
      %v2024 = vpop.permute.xlu0 %2023
      %2025 = vrot.lane.b32.xlu0 %v1795, 32
      %v2026 = vpop.permute.xlu0 %2025
      %2027 = vrot.lane.b32.xlu0 %v1796, 32
      %v2028 = vpop.permute.xlu0 %2027
      %2029 = vrot.lane.b32.xlu0 %v1797, 32
      %v2030 = vpop.permute.xlu0 %2029
      %2031 = vrot.lane.b32.xlu0 %v1798, 32
      %v2032 = vpop.permute.xlu0 %2031
      %2033 = vrot.lane.b32.xlu0 %v1799, 32
      %v2034 = vpop.permute.xlu0 %2033
      %2035 = vrot.lane.b32.xlu0 %v1800, 32
      %v2036 = vpop.permute.xlu0 %2035
      %2037 = vrot.lane.b32.xlu0 %v1801, 32
      %v2038 = vpop.permute.xlu0 %2037
      %2039 = vrot.lane.b32.xlu0 %v1802, 32
      %v2040 = vpop.permute.xlu0 %2039
      %2041 = vrot.lane.b32.xlu0 %v1907, 32
      %v2042 = vpop.permute.xlu0 %2041
      %2043 = vrot.lane.b32.xlu0 %v2012, 32
      %v2044 = vpop.permute.xlu0 %2043
      %vm2045 = vcmask 31744
      %v2048 = vsel %vm2045, %v1659, %v1724
      %v2051 = vsel %vm2045, %v1660, %v1726
      %v2054 = vsel %vm2045, %v1661, %v1728
      %v2057 = vsel %vm2045, %v1662, %v1730
      %v2060 = vsel %vm2045, %v1663, %v1732
      %v2063 = vsel %vm2045, %v1664, %v1734
      %v2066 = vsel %vm2045, %v1665, %v1736
      %v2069 = vsel %vm2045, %v1666, %v1738
      %v2072 = vsel %vm2045, %v1667, %v1740
      %v2075 = vsel %vm2045, %v1668, %v1742
      %v2078 = vsel %vm2045, %v1669, %v1744
      %v2081 = vsel %vm2045, %v1670, %v1746
      %v2084 = vsel %vm2045, %v1671, %v1748
      %v2087 = vsel %vm2045, %v1672, %v1750
      %v2090 = vsel %vm2045, %v1673, %v1752
      %v2093 = vsel %vm2045, %v1674, %v1754
      %vm2094 = vcmask 64512
      %v2096 = vsel %vm2094, %v2048, %v1804
      %v2098 = vsel %vm2094, %v2051, %v1806
      %v2100 = vsel %vm2094, %v2054, %v1808
      %v2102 = vsel %vm2094, %v2057, %v1810
      %v2104 = vsel %vm2094, %v2060, %v1812
      %v2106 = vsel %vm2094, %v2063, %v1814
      %v2108 = vsel %vm2094, %v2066, %v1816
      %v2110 = vsel %vm2094, %v2069, %v1818
      %v2112 = vsel %vm2094, %v2072, %v1820
      %v2114 = vsel %vm2094, %v2075, %v1822
      %v2116 = vsel %vm2094, %v2078, %v1824
      %v2118 = vsel %vm2094, %v2081, %v1826
      %v2120 = vsel %vm2094, %v2084, %v1828
      %v2122 = vsel %vm2094, %v2087, %v1830
      %v2124 = vsel %vm2094, %v2090, %v1832
      %v2126 = vsel %vm2094, %v2093, %v1834
      %vm2127 = vcmask 97280
      %v2129 = vsel %vm2127, %v2096, %v1839
      %v2131 = vsel %vm2127, %v2098, %v1841
      %v2133 = vsel %vm2127, %v2100, %v1843
      %v2135 = vsel %vm2127, %v2102, %v1845
      %v2137 = vsel %vm2127, %v2104, %v1847
      %v2139 = vsel %vm2127, %v2106, %v1849
      %v2141 = vsel %vm2127, %v2108, %v1851
      %v2143 = vsel %vm2127, %v2110, %v1853
      %v2145 = vsel %vm2127, %v2112, %v1855
      %v2147 = vsel %vm2127, %v2114, %v1857
      %v2149 = vsel %vm2127, %v2116, %v1859
      %v2151 = vsel %vm2127, %v2118, %v1861
      %v2153 = vsel %vm2127, %v2120, %v1863
      %v2155 = vsel %vm2127, %v2122, %v1865
      %v2157 = vsel %vm2127, %v2124, %v1867
      %v2159 = vsel %vm2127, %v2126, %v1869
      %vm2160 = vcmask 130048
      %v2162 = vsel %vm2160, %v2129, %v1874
      %v2164 = vsel %vm2160, %v2131, %v1876
      %v2166 = vsel %vm2160, %v2133, %v1878
      %v2168 = vsel %vm2160, %v2135, %v1880
      %v2170 = vsel %vm2160, %v2137, %v1882
      %v2172 = vsel %vm2160, %v2139, %v1884
      %v2174 = vsel %vm2160, %v2141, %v1886
      %v2176 = vsel %vm2160, %v2143, %v1888
      %v2178 = vsel %vm2160, %v2145, %v1890
      %v2180 = vsel %vm2160, %v2147, %v1892
      %v2182 = vsel %vm2160, %v2149, %v1894
      %v2184 = vsel %vm2160, %v2151, %v1896
      %v2186 = vsel %vm2160, %v2153, %v1898
      %v2188 = vsel %vm2160, %v2155, %v1900
      %v2190 = vsel %vm2160, %v2157, %v1902
      %v2192 = vsel %vm2160, %v2159, %v1904
      %vm2193 = vcmask 162816
      %v2195 = vsel %vm2193, %v2162, %v1909
      %v2197 = vsel %vm2193, %v2164, %v1911
      %v2199 = vsel %vm2193, %v2166, %v1913
      %v2201 = vsel %vm2193, %v2168, %v1915
      %v2203 = vsel %vm2193, %v2170, %v1917
      %v2205 = vsel %vm2193, %v2172, %v1919
      %v2207 = vsel %vm2193, %v2174, %v1921
      %v2209 = vsel %vm2193, %v2176, %v1923
      %v2211 = vsel %vm2193, %v2178, %v1925
      %v2213 = vsel %vm2193, %v2180, %v1927
      %v2215 = vsel %vm2193, %v2182, %v1929
      %v2217 = vsel %vm2193, %v2184, %v1931
      %v2219 = vsel %vm2193, %v2186, %v1933
      %v2221 = vsel %vm2193, %v2188, %v1935
      %v2223 = vsel %vm2193, %v2190, %v1937
      %v2225 = vsel %vm2193, %v2192, %v1939
      %vm2226 = vcmask 195584
      %v2228 = vsel %vm2226, %v2195, %v1944
      %v2230 = vsel %vm2226, %v2197, %v1946
      %v2232 = vsel %vm2226, %v2199, %v1948
      %v2234 = vsel %vm2226, %v2201, %v1950
      %v2236 = vsel %vm2226, %v2203, %v1952
      %v2238 = vsel %vm2226, %v2205, %v1954
      %v2240 = vsel %vm2226, %v2207, %v1956
      %v2242 = vsel %vm2226, %v2209, %v1958
      %v2244 = vsel %vm2226, %v2211, %v1960
      %v2246 = vsel %vm2226, %v2213, %v1962
      %v2248 = vsel %vm2226, %v2215, %v1964
      %v2250 = vsel %vm2226, %v2217, %v1966
      %v2252 = vsel %vm2226, %v2219, %v1968
      %v2254 = vsel %vm2226, %v2221, %v1970
      %v2256 = vsel %vm2226, %v2223, %v1972
      %v2258 = vsel %vm2226, %v2225, %v1974
      %vm2259 = vcmask 228352
      %v2261 = vsel %vm2259, %v2228, %v1979
      %v2263 = vsel %vm2259, %v2230, %v1981
      %v2265 = vsel %vm2259, %v2232, %v1983
      %v2267 = vsel %vm2259, %v2234, %v1985
      %v2269 = vsel %vm2259, %v2236, %v1987
      %v2271 = vsel %vm2259, %v2238, %v1989
      %v2273 = vsel %vm2259, %v2240, %v1991
      %v2275 = vsel %vm2259, %v2242, %v1993
      %v2277 = vsel %vm2259, %v2244, %v1995
      %v2279 = vsel %vm2259, %v2246, %v1997
      %v2281 = vsel %vm2259, %v2248, %v1999
      %v2283 = vsel %vm2259, %v2250, %v2001
      %v2285 = vsel %vm2259, %v2252, %v2003
      %v2287 = vsel %vm2259, %v2254, %v2005
      %v2289 = vsel %vm2259, %v2256, %v2007
      %v2291 = vsel %vm2259, %v2258, %v2009
      %vm2292 = vcmask 261120
      %v2294 = vsel %vm2292, %v2261, %v2014
      %v2296 = vsel %vm2292, %v2263, %v2016
      %v2298 = vsel %vm2292, %v2265, %v2018
      %v2300 = vsel %vm2292, %v2267, %v2020
      %v2302 = vsel %vm2292, %v2269, %v2022
      %v2304 = vsel %vm2292, %v2271, %v2024
      %v2306 = vsel %vm2292, %v2273, %v2026
      %v2308 = vsel %vm2292, %v2275, %v2028
      %v2310 = vsel %vm2292, %v2277, %v2030
      %v2312 = vsel %vm2292, %v2279, %v2032
      %v2314 = vsel %vm2292, %v2281, %v2034
      %v2316 = vsel %vm2292, %v2283, %v2036
      %v2318 = vsel %vm2292, %v2285, %v2038
      %v2320 = vsel %vm2292, %v2287, %v2040
      %v2322 = vsel %vm2292, %v2289, %v2042
      %v2324 = vsel %vm2292, %v2291, %v2044
      %v2325 = vld [vmem:[%s3] sm:$0xf]
      %v2326 = vld [vmem:[%s3 + $0x4] sm:$0xf]
      %v2327 = vld [vmem:[%s3 + $0x8] sm:$0xf]
      %v2328 = vld [vmem:[%s3 + $0xc] sm:$0xf]
      %v2329 = vld [vmem:[%s3 + $0x10] sm:$0x3]
      %v2330 = vld [vmem:[%s4] sm:$0x1]
      %v2332 = vperm.slane %v2330, 0
      %v2339 = vunpack.c.l.b16 %v2325
      %v2340 = vunpack.c.l.b16 %v2326
      %v2341 = vunpack.c.l.b16 %v2327
      %v2342 = vunpack.c.l.b16 %v2328
      %v2343 = vunpack.c.l.b16 %v2329
      %v2344 = vpack.c.b16 %v2340, %v2339
      %v2345 = vpack.c.b16 %v2342, %v2341
      %v2346 = vpack.c.b16 %v2343, %v2343
      %vm2349 = vcmask 293888
      %v2350 = vsel %vm2349, %v2294, 0
      %v2352 = vsel %vm2349, %v2296, 0
      %v2354 = vsel %vm2349, %v2298, 0
      %v2356 = vsel %vm2349, %v2300, 0
      %v2358 = vsel %vm2349, %v2302, 0
      %v2360 = vsel %vm2349, %v2304, 0
      %v2362 = vsel %vm2349, %v2306, 0
      %v2364 = vsel %vm2349, %v2308, 0
      %v2366 = vsel %vm2349, %v2310, 0
      %v2368 = vsel %vm2349, %v2312, 0
      %v2370 = vsel %vm2349, %v2314, 0
      %v2372 = vsel %vm2349, %v2316, 0
      %v2374 = vsel %vm2349, %v2318, 0
      %v2376 = vsel %vm2349, %v2320, 0
      %v2378 = vsel %vm2349, %v2322, 0
      %v2380 = vsel %vm2349, %v2324, 0
      %vm2382 = vcmask 1041408
      %v2384 = vsel %vm2382, %v2346, 0
      %2386 = vmatpush.bf16.msra.mxu0 0
      %2387 = vmatpush.bf16.msra.mxu0 0
      %2388 = vmatpush.bf16.msra.mxu0 0
      %2389 = vmatpush.bf16.msra.mxu0 0
      %2390 = vmatpush.bf16.msra.mxu0 0
      %2391 = vmatpush.bf16.msra.mxu0 %v2384
      %2392 = vmatpush.bf16.msra.mxu0 %v2345
      %2393 = vmatpush.bf16.msra.mxu0 %v2344
      %2394 = vmatmul.bf16.gmra.mxu0 %v2350
      %v2395 = vpop.f32.mrf.mxu0
      %v2396 = vadd.f32 %v2332, %v2395
      %v2397 = vpop.f32.mrf.mxu0
      %v2398 = vadd.f32 %v2332, %v2397
      %2399 = vmatmul.bf16.gmra.mxu0 %v2352
      %v2400 = vpop.f32.mrf.mxu0
      %v2401 = vadd.f32 %v2332, %v2400
      %v2402 = vpop.f32.mrf.mxu0
      %v2403 = vadd.f32 %v2332, %v2402
      %2404 = vmatmul.bf16.gmra.mxu0 %v2354
      %v2405 = vpop.f32.mrf.mxu0
      %v2406 = vadd.f32 %v2332, %v2405
      %v2407 = vpop.f32.mrf.mxu0
      %v2408 = vadd.f32 %v2332, %v2407
      %2409 = vmatmul.bf16.gmra.mxu0 %v2356
      %v2410 = vpop.f32.mrf.mxu0
      %v2411 = vadd.f32 %v2332, %v2410
      %v2412 = vpop.f32.mrf.mxu0
      %v2413 = vadd.f32 %v2332, %v2412
      %2414 = vmatmul.bf16.gmra.mxu0 %v2358
      %v2415 = vpop.f32.mrf.mxu0
      %v2416 = vadd.f32 %v2332, %v2415
      %v2417 = vpop.f32.mrf.mxu0
      %v2418 = vadd.f32 %v2332, %v2417
      %2419 = vmatmul.bf16.gmra.mxu0 %v2360
      %v2420 = vpop.f32.mrf.mxu0
      %v2421 = vadd.f32 %v2332, %v2420
      %v2422 = vpop.f32.mrf.mxu0
      %v2423 = vadd.f32 %v2332, %v2422
      %2424 = vmatmul.bf16.gmra.mxu0 %v2362
      %v2425 = vpop.f32.mrf.mxu0
      %v2426 = vadd.f32 %v2332, %v2425
      %v2427 = vpop.f32.mrf.mxu0
      %v2428 = vadd.f32 %v2332, %v2427
      %2429 = vmatmul.bf16.gmra.mxu0 %v2364
      %v2430 = vpop.f32.mrf.mxu0
      %v2431 = vadd.f32 %v2332, %v2430
      %v2432 = vpop.f32.mrf.mxu0
      %v2433 = vadd.f32 %v2332, %v2432
      %2434 = vmatmul.bf16.gmra.mxu0 %v2366
      %v2435 = vpop.f32.mrf.mxu0
      %v2436 = vadd.f32 %v2332, %v2435
      %v2437 = vpop.f32.mrf.mxu0
      %v2438 = vadd.f32 %v2332, %v2437
      %2439 = vmatmul.bf16.gmra.mxu0 %v2368
      %v2440 = vpop.f32.mrf.mxu0
      %v2441 = vadd.f32 %v2332, %v2440
      %v2442 = vpop.f32.mrf.mxu0
      %v2443 = vadd.f32 %v2332, %v2442
      %2444 = vmatmul.bf16.gmra.mxu0 %v2370
      %v2445 = vpop.f32.mrf.mxu0
      %v2446 = vadd.f32 %v2332, %v2445
      %v2447 = vpop.f32.mrf.mxu0
      %v2448 = vadd.f32 %v2332, %v2447
      %2449 = vmatmul.bf16.gmra.mxu0 %v2372
      %v2450 = vpop.f32.mrf.mxu0
      %v2451 = vadd.f32 %v2332, %v2450
      %v2452 = vpop.f32.mrf.mxu0
      %v2453 = vadd.f32 %v2332, %v2452
      %2454 = vmatmul.bf16.gmra.mxu0 %v2374
      %v2455 = vpop.f32.mrf.mxu0
      %v2456 = vadd.f32 %v2332, %v2455
      %v2457 = vpop.f32.mrf.mxu0
      %v2458 = vadd.f32 %v2332, %v2457
      %2459 = vmatmul.bf16.gmra.mxu0 %v2376
      %v2460 = vpop.f32.mrf.mxu0
      %v2461 = vadd.f32 %v2332, %v2460
      %v2462 = vpop.f32.mrf.mxu0
      %v2463 = vadd.f32 %v2332, %v2462
      %2464 = vmatmul.bf16.gmra.mxu0 %v2378
      %v2465 = vpop.f32.mrf.mxu0
      %v2466 = vadd.f32 %v2332, %v2465
      %v2467 = vpop.f32.mrf.mxu0
      %v2468 = vadd.f32 %v2332, %v2467
      %2469 = vmatmul.bf16.gmra.mxu0 %v2380
      %v2470 = vpop.f32.mrf.mxu0
      %v2471 = vadd.f32 %v2332, %v2470
      %v2472 = vpop.f32.mrf.mxu0
      %v2473 = vadd.f32 %v2332, %v2472
      %2474 = vdwg.mxu0
      %v2475 = vpack.c.bf16 %v2396, %v2396
      %v2476 = vpack.c.bf16 %v2398, %v2398
      %v2477 = vpack.c.bf16 %v2401, %v2401
      %v2478 = vpack.c.bf16 %v2403, %v2403
      %v2479 = vpack.c.bf16 %v2406, %v2406
      %v2480 = vpack.c.bf16 %v2408, %v2408
      %v2481 = vpack.c.bf16 %v2411, %v2411
      %v2482 = vpack.c.bf16 %v2413, %v2413
      %v2483 = vpack.c.bf16 %v2416, %v2416
      %v2484 = vpack.c.bf16 %v2418, %v2418
      %v2485 = vpack.c.bf16 %v2421, %v2421
      %v2486 = vpack.c.bf16 %v2423, %v2423
      %v2487 = vpack.c.bf16 %v2426, %v2426
      %v2488 = vpack.c.bf16 %v2428, %v2428
      %v2489 = vpack.c.bf16 %v2431, %v2431
      %v2490 = vpack.c.bf16 %v2433, %v2433
      %v2491 = vpack.c.bf16 %v2436, %v2436
      %v2492 = vpack.c.bf16 %v2438, %v2438
      %v2493 = vpack.c.bf16 %v2441, %v2441
      %v2494 = vpack.c.bf16 %v2443, %v2443
      %v2495 = vpack.c.bf16 %v2446, %v2446
      %v2496 = vpack.c.bf16 %v2448, %v2448
      %v2497 = vpack.c.bf16 %v2451, %v2451
      %v2498 = vpack.c.bf16 %v2453, %v2453
      %v2499 = vpack.c.bf16 %v2456, %v2456
      %v2500 = vpack.c.bf16 %v2458, %v2458
      %v2501 = vpack.c.bf16 %v2461, %v2461
      %v2502 = vpack.c.bf16 %v2463, %v2463
      %v2503 = vpack.c.bf16 %v2466, %v2466
      %v2504 = vpack.c.bf16 %v2468, %v2468
      %v2505 = vpack.c.bf16 %v2471, %v2471
      %v2506 = vpack.c.bf16 %v2473, %v2473
      %vm2507 = vcmask 257024
      %2508 = vst.msk [vmem:[%s274] sm:$0xf] %vm2507, %v2475
      %2509 = vst.msk [vmem:[%s274 + $0x4] sm:$0xf] %vm2507, %v2476
      %2510 = vst.msk [vmem:[%s274 + $0x8] sm:$0xf] %vm2507, %v2477
      %2511 = vst.msk [vmem:[%s274 + $0xc] sm:$0xf] %vm2507, %v2478
      %2512 = vst.msk [vmem:[%s274 + $0x10] sm:$0xf] %vm2507, %v2479
      %2513 = vst.msk [vmem:[%s274 + $0x14] sm:$0xf] %vm2507, %v2480
      %2514 = vst.msk [vmem:[%s274 + $0x18] sm:$0xf] %vm2507, %v2481
      %2515 = vst.msk [vmem:[%s274 + $0x1c] sm:$0xf] %vm2507, %v2482
      %2516 = vst.msk [vmem:[%s274 + $0x20] sm:$0xf] %vm2507, %v2483
      %2517 = vst.msk [vmem:[%s274 + $0x24] sm:$0xf] %vm2507, %v2484
      %2518 = vst.msk [vmem:[%s274 + $0x28] sm:$0xf] %vm2507, %v2485
      %2519 = vst.msk [vmem:[%s274 + $0x2c] sm:$0xf] %vm2507, %v2486
      %2520 = vst.msk [vmem:[%s274 + $0x30] sm:$0xf] %vm2507, %v2487
      %2521 = vst.msk [vmem:[%s274 + $0x34] sm:$0xf] %vm2507, %v2488
      %2522 = vst.msk [vmem:[%s274 + $0x38] sm:$0xf] %vm2507, %v2489
      %2523 = vst.msk [vmem:[%s274 + $0x3c] sm:$0xf] %vm2507, %v2490
      %2524 = vst.msk [vmem:[%s274 + $0x40] sm:$0xf] %vm2507, %v2491
      %2525 = vst.msk [vmem:[%s274 + $0x44] sm:$0xf] %vm2507, %v2492
      %2526 = vst.msk [vmem:[%s274 + $0x48] sm:$0xf] %vm2507, %v2493
      %2527 = vst.msk [vmem:[%s274 + $0x4c] sm:$0xf] %vm2507, %v2494
      %2528 = vst.msk [vmem:[%s274 + $0x50] sm:$0xf] %vm2507, %v2495
      %2529 = vst.msk [vmem:[%s274 + $0x54] sm:$0xf] %vm2507, %v2496
      %2530 = vst.msk [vmem:[%s274 + $0x58] sm:$0xf] %vm2507, %v2497
      %2531 = vst.msk [vmem:[%s274 + $0x5c] sm:$0xf] %vm2507, %v2498
      %2532 = vst.msk [vmem:[%s274 + $0x60] sm:$0xf] %vm2507, %v2499
      %2533 = vst.msk [vmem:[%s274 + $0x64] sm:$0xf] %vm2507, %v2500
      %2534 = vst.msk [vmem:[%s274 + $0x68] sm:$0xf] %vm2507, %v2501
      %2535 = vst.msk [vmem:[%s274 + $0x6c] sm:$0xf] %vm2507, %v2502
      %2536 = vst.msk [vmem:[%s274 + $0x70] sm:$0xf] %vm2507, %v2503
      %2537 = vst.msk [vmem:[%s274 + $0x74] sm:$0xf] %vm2507, %v2504
      %2538 = vst.msk [vmem:[%s274 + $0x78] sm:$0xf] %vm2507, %v2505
      %2539 = vst.msk [vmem:[%s274 + $0x7c] sm:$0xf] %vm2507, %v2506
      %v2540 = vunpack.c.l.bf16 %v2475
      %v2541 = vunpack.c.l.bf16 %v2476
      %v2542 = vunpack.c.l.bf16 %v2477
      %v2543 = vunpack.c.l.bf16 %v2478
      %v2544 = vunpack.c.l.bf16 %v2479
      %v2545 = vunpack.c.l.bf16 %v2480
      %v2546 = vunpack.c.l.bf16 %v2481
      %v2547 = vunpack.c.l.bf16 %v2482
      %v2548 = vunpack.c.l.bf16 %v2483
      %v2549 = vunpack.c.l.bf16 %v2484
      %v2550 = vunpack.c.l.bf16 %v2485
      %v2551 = vunpack.c.l.bf16 %v2486
      %v2552 = vunpack.c.l.bf16 %v2487
      %v2553 = vunpack.c.l.bf16 %v2488
      %v2554 = vunpack.c.l.bf16 %v2489
      %v2555 = vunpack.c.l.bf16 %v2490
      %v2556 = vunpack.c.l.bf16 %v2491
      %v2557 = vunpack.c.l.bf16 %v2492
      %v2558 = vunpack.c.l.bf16 %v2493
      %v2559 = vunpack.c.l.bf16 %v2494
      %v2560 = vunpack.c.l.bf16 %v2495
      %v2561 = vunpack.c.l.bf16 %v2496
      %v2562 = vunpack.c.l.bf16 %v2497
      %v2563 = vunpack.c.l.bf16 %v2498
      %v2564 = vunpack.c.l.bf16 %v2499
      %v2565 = vunpack.c.l.bf16 %v2500
      %v2566 = vunpack.c.l.bf16 %v2501
      %v2567 = vunpack.c.l.bf16 %v2502
      %v2568 = vunpack.c.l.bf16 %v2503
      %v2569 = vunpack.c.l.bf16 %v2504
      %v2570 = vunpack.c.l.bf16 %v2505
      %v2571 = vunpack.c.l.bf16 %v2506
      %v2572 = vsel %vm2292, %v2540, 0.0
      %v2573 = vsel %vm2292, %v2541, 0.0
      %v2574 = vadd.f32 %v2572, %v2573
      %v2575 = vsel %vm2292, %v2542, 0.0
      %v2576 = vadd.f32 %v2574, %v2575
      %v2577 = vsel %vm2292, %v2543, 0.0
      %v2578 = vadd.f32 %v2576, %v2577
      %v2579 = vsel %vm2292, %v2544, 0.0
      %v2580 = vadd.f32 %v2578, %v2579
      %v2581 = vsel %vm2292, %v2545, 0.0
      %v2582 = vadd.f32 %v2580, %v2581
      %v2583 = vsel %vm2292, %v2546, 0.0
      %v2584 = vadd.f32 %v2582, %v2583
      %v2585 = vsel %vm2292, %v2547, 0.0
      %v2586 = vadd.f32 %v2584, %v2585
      %v2587 = vsel %vm2292, %v2548, 0.0
      %v2588 = vadd.f32 %v2586, %v2587
      %v2589 = vsel %vm2292, %v2549, 0.0
      %v2590 = vadd.f32 %v2588, %v2589
      %v2591 = vsel %vm2292, %v2550, 0.0
      %v2592 = vadd.f32 %v2590, %v2591
      %v2593 = vsel %vm2292, %v2551, 0.0
      %v2594 = vadd.f32 %v2592, %v2593
      %v2595 = vsel %vm2292, %v2552, 0.0
      %v2596 = vadd.f32 %v2594, %v2595
      %v2597 = vsel %vm2292, %v2553, 0.0
      %v2598 = vadd.f32 %v2596, %v2597
      %v2599 = vsel %vm2292, %v2554, 0.0
      %v2600 = vadd.f32 %v2598, %v2599
      %v2601 = vsel %vm2292, %v2555, 0.0
      %v2602 = vadd.f32 %v2600, %v2601
      %v2603 = vsel %vm2292, %v2556, 0.0
      %v2604 = vadd.f32 %v2602, %v2603
      %v2605 = vsel %vm2292, %v2557, 0.0
      %v2606 = vadd.f32 %v2604, %v2605
      %v2607 = vsel %vm2292, %v2558, 0.0
      %v2608 = vadd.f32 %v2606, %v2607
      %v2609 = vsel %vm2292, %v2559, 0.0
      %v2610 = vadd.f32 %v2608, %v2609
      %v2611 = vsel %vm2292, %v2560, 0.0
      %v2612 = vadd.f32 %v2610, %v2611
      %v2613 = vsel %vm2292, %v2561, 0.0
      %v2614 = vadd.f32 %v2612, %v2613
      %v2615 = vsel %vm2292, %v2562, 0.0
      %v2616 = vadd.f32 %v2614, %v2615
      %v2617 = vsel %vm2292, %v2563, 0.0
      %v2618 = vadd.f32 %v2616, %v2617
      %v2619 = vsel %vm2292, %v2564, 0.0
      %v2620 = vadd.f32 %v2618, %v2619
      %v2621 = vsel %vm2292, %v2565, 0.0
      %v2622 = vadd.f32 %v2620, %v2621
      %v2623 = vsel %vm2292, %v2566, 0.0
      %v2624 = vadd.f32 %v2622, %v2623
      %v2625 = vsel %vm2292, %v2567, 0.0
      %v2626 = vadd.f32 %v2624, %v2625
      %v2627 = vsel %vm2292, %v2568, 0.0
      %v2628 = vadd.f32 %v2626, %v2627
      %v2629 = vsel %vm2292, %v2569, 0.0
      %v2630 = vadd.f32 %v2628, %v2629
      %v2631 = vsel %vm2292, %v2570, 0.0
      %v2632 = vadd.f32 %v2630, %v2631
      %v2633 = vsel %vm2292, %v2571, 0.0
      %v2634 = vadd.f32 %v2632, %v2633
      %v2635 = vrot.slane %v2634, 4
      %v2636 = vadd.f32 %v2634, %v2635
      %v2637 = vrot.slane %v2636, 2
      %v2638 = vadd.f32 %v2636, %v2637
      %v2639 = vrot.slane %v2638, 1
      %v2640 = vadd.f32 %v2638, %v2639
      %v2641 = vmul.f32 %v2540, %v2540
      %v2642 = vmul.f32 %v2541, %v2541
      %v2643 = vmul.f32 %v2542, %v2542
      %v2644 = vmul.f32 %v2543, %v2543
      %v2645 = vmul.f32 %v2544, %v2544
      %v2646 = vmul.f32 %v2545, %v2545
      %v2647 = vmul.f32 %v2546, %v2546
      %v2648 = vmul.f32 %v2547, %v2547
      %v2649 = vmul.f32 %v2548, %v2548
      %v2650 = vmul.f32 %v2549, %v2549
      %v2651 = vmul.f32 %v2550, %v2550
      %v2652 = vmul.f32 %v2551, %v2551
      %v2653 = vmul.f32 %v2552, %v2552
      %v2654 = vmul.f32 %v2553, %v2553
      %v2655 = vmul.f32 %v2554, %v2554
      %v2656 = vmul.f32 %v2555, %v2555
      %v2657 = vmul.f32 %v2556, %v2556
      %v2658 = vmul.f32 %v2557, %v2557
      %v2659 = vmul.f32 %v2558, %v2558
      %v2660 = vmul.f32 %v2559, %v2559
      %v2661 = vmul.f32 %v2560, %v2560
      %v2662 = vmul.f32 %v2561, %v2561
      %v2663 = vmul.f32 %v2562, %v2562
      %v2664 = vmul.f32 %v2563, %v2563
      %v2665 = vmul.f32 %v2564, %v2564
      %v2666 = vmul.f32 %v2565, %v2565
      %v2667 = vmul.f32 %v2566, %v2566
      %v2668 = vmul.f32 %v2567, %v2567
      %v2669 = vmul.f32 %v2568, %v2568
      %v2670 = vmul.f32 %v2569, %v2569
      %v2671 = vmul.f32 %v2570, %v2570
      %v2672 = vmul.f32 %v2571, %v2571
      %v2673 = vsel %vm2292, %v2641, 0.0
      %v2674 = vsel %vm2292, %v2642, 0.0
      %v2675 = vadd.f32 %v2673, %v2674
      %v2676 = vsel %vm2292, %v2643, 0.0
      %v2677 = vadd.f32 %v2675, %v2676
      %v2678 = vsel %vm2292, %v2644, 0.0
      %v2679 = vadd.f32 %v2677, %v2678
      %v2680 = vsel %vm2292, %v2645, 0.0
      %v2681 = vadd.f32 %v2679, %v2680
      %v2682 = vsel %vm2292, %v2646, 0.0
      %v2683 = vadd.f32 %v2681, %v2682
      %v2684 = vsel %vm2292, %v2647, 0.0
      %v2685 = vadd.f32 %v2683, %v2684
      %v2686 = vsel %vm2292, %v2648, 0.0
      %v2687 = vadd.f32 %v2685, %v2686
      %v2688 = vsel %vm2292, %v2649, 0.0
      %v2689 = vadd.f32 %v2687, %v2688
      %v2690 = vsel %vm2292, %v2650, 0.0
      %v2691 = vadd.f32 %v2689, %v2690
      %v2692 = vsel %vm2292, %v2651, 0.0
      %v2693 = vadd.f32 %v2691, %v2692
      %v2694 = vsel %vm2292, %v2652, 0.0
      %v2695 = vadd.f32 %v2693, %v2694
      %v2696 = vsel %vm2292, %v2653, 0.0
      %v2697 = vadd.f32 %v2695, %v2696
      %v2698 = vsel %vm2292, %v2654, 0.0
      %v2699 = vadd.f32 %v2697, %v2698
      %v2700 = vsel %vm2292, %v2655, 0.0
      %v2701 = vadd.f32 %v2699, %v2700
      %v2702 = vsel %vm2292, %v2656, 0.0
      %v2703 = vadd.f32 %v2701, %v2702
      %v2704 = vsel %vm2292, %v2657, 0.0
      %v2705 = vadd.f32 %v2703, %v2704
      %v2706 = vsel %vm2292, %v2658, 0.0
      %v2707 = vadd.f32 %v2705, %v2706
      %v2708 = vsel %vm2292, %v2659, 0.0
      %v2709 = vadd.f32 %v2707, %v2708
      %v2710 = vsel %vm2292, %v2660, 0.0
      %v2711 = vadd.f32 %v2709, %v2710
      %v2712 = vsel %vm2292, %v2661, 0.0
      %v2713 = vadd.f32 %v2711, %v2712
      %v2714 = vsel %vm2292, %v2662, 0.0
      %v2715 = vadd.f32 %v2713, %v2714
      %v2716 = vsel %vm2292, %v2663, 0.0
      %v2717 = vadd.f32 %v2715, %v2716
      %v2718 = vsel %vm2292, %v2664, 0.0
      %v2719 = vadd.f32 %v2717, %v2718
      %v2720 = vsel %vm2292, %v2665, 0.0
      %v2721 = vadd.f32 %v2719, %v2720
      %v2722 = vsel %vm2292, %v2666, 0.0
      %v2723 = vadd.f32 %v2721, %v2722
      %v2724 = vsel %vm2292, %v2667, 0.0
      %v2725 = vadd.f32 %v2723, %v2724
      %v2726 = vsel %vm2292, %v2668, 0.0
      %v2727 = vadd.f32 %v2725, %v2726
      %v2728 = vsel %vm2292, %v2669, 0.0
      %v2729 = vadd.f32 %v2727, %v2728
      %v2730 = vsel %vm2292, %v2670, 0.0
      %v2731 = vadd.f32 %v2729, %v2730
      %v2732 = vsel %vm2292, %v2671, 0.0
      %v2733 = vadd.f32 %v2731, %v2732
      %v2734 = vsel %vm2292, %v2672, 0.0
      %v2735 = vadd.f32 %v2733, %v2734
      %v2736 = vrot.slane %v2735, 4
      %v2737 = vadd.f32 %v2735, %v2736
      %v2738 = vrot.slane %v2737, 2
      %v2739 = vadd.f32 %v2737, %v2738
      %v2740 = vrot.slane %v2739, 1
      %v2741 = vadd.f32 %v2739, %v2740
      %vm2742 = vcmask 1040384
      %v2743 = vsel %vm2742, %v2640, %v2741
      // Predicated region
      $region45: #{resnet_block_up.4} parent=39 // pred_check
        %p2744 = pneg %p282
      $region46: #{resnet_block_up.4} parent=39 // pred_check_branch
        %2746 = sbr.rel (%p2744) target = $region48
      $region47: #{resnet_block_up.4} parent=39 // pred_region
        %vm2747 = vcmask 254976
        %2748 = vst.msk [vmem:[%s280] sm:$0x3] %vm2747, 0.0
      $region48: #{resnet_block_up.4} parent=39 // pred_fallthru
        _
      %v2749 = vld [vmem:[%s280] sm:$0x3]
      %v2750 = vadd.f32 %v2749, %v2743
      %vm2751 = vcmask 254976
      %2752 = vst.msk [vmem:[%s280] sm:$0x3] %vm2751, %v2750
      %s2753 = sadd.s32 %s22, %s23
      %s2754 = smul.u32 32, %s2753
      %p2755 = scmp.lt.s32.totalorder %s2754, 63
      %s2756 = scalar_select %p2755, %s2754, 63
      %s2757 = smul.addr %s2756, 4
      %s2758 = scalar_lea.vmem %s5, %s2757
      %p2759 = scmp.lt.s32.totalorder %s22, 1
      %s2760 = scalar_select %p2759, %s22, 1
      %s2761 = smul.addr %s2760, 2
      %s2762 = scalar_lea.vmem %s6, %s2761
      // Predicated region
      $region49: #{resnet_block_up.4} parent=39 // pred_check
        %p2763 = pneg %p160
      $region50: #{resnet_block_up.4} parent=39 // pred_check_branch
        %2765 = sbr.rel (%p2763) target = $region52
      $region51: #{resnet_block_up.4} parent=39 // pred_region
        %s2766 = sadd.s32 %s22, %s23
        %s2767 = smul.u32 32, %s2766
      $region52: #{resnet_block_up.4} parent=39 // pred_fallthru
        _
      // Predicated region
      $region53: #{resnet_block_up.4} parent=39 // pred_check
        %p2768 = pneg %p186
      $region54: #{resnet_block_up.4} parent=39 // pred_check_branch
        %2770 = sbr.rel (%p2768) target = $region56
      $region55: #{resnet_block_up.4} parent=39 // pred_region
        _
      $region56: #{resnet_block_up.4} parent=39 // pred_fallthru
        _
    $region40: #{resnet_block_up.4} parent=5 // pred_fallthru
      _
    %p2771 = scmp.le.s32.totalorder 2, %s13
    // Predicated region
    $region57: #{resnet_block_up.4} parent=5 // pred_check
      %p2772 = pneg %p2771
    $region58: #{resnet_block_up.4} parent=5 // pred_check_branch
      %2774 = sbr.rel (%p2772) target = $region60
    $region59: #{resnet_block_up.4} parent=5 // pred_region
      %s2775 = ssub.s32 %s13, 2
      // Predicated region
      $region61: #{resnet_block_up.4} parent=59 // pred_check
        %p2776 = pneg %p166
      $region62: #{resnet_block_up.4} parent=59 // pred_check_branch
        %2778 = sbr.rel (%p2776) target = $region64
      $region63: #{resnet_block_up.4} parent=59 // pred_region
        %s2779 = sadd.s32 %s24, %s25
        %s2780 = smul.u32 32, %s2779
        %p2781 = scmp.lt.s32.totalorder %s2780, 63
        %s2782 = scalar_select %p2781, %s2780, 63
        %s2783 = smul.addr %s2782, 4
        %s2784 = scalar_lea.vmem %s5, %s2783
      $region64: #{resnet_block_up.4} parent=59 // pred_fallthru
        _
      // Predicated region
      $region65: #{resnet_block_up.4} parent=59 // pred_check
        %p2785 = pneg %p192
      $region66: #{resnet_block_up.4} parent=59 // pred_check_branch
        %2787 = sbr.rel (%p2785) target = $region68
      $region67: #{resnet_block_up.4} parent=59 // pred_region
        %p2788 = scmp.lt.s32.totalorder %s24, 1
        %s2789 = scalar_select %p2788, %s24, 1
        %s2790 = smul.addr %s2789, 2
        %s2791 = scalar_lea.vmem %s6, %s2790
      $region68: #{resnet_block_up.4} parent=59 // pred_fallthru
        _
    $region60: #{resnet_block_up.4} parent=5 // pred_fallthru
      _
  $region6: #{resnet_block_up.4} parent=0 // loop_footer
    %s17 = sadd.s32 1, %s13
  $region7: #{resnet_block_up.4} parent=0 // loop_footer_branch
    %12 = sbr.rel target = $region3
  $region8: #{resnet_block_up.4} parent=0 // loop_exit
    _

// kernel: resnet_block_up.5
$region0: #{resnet_block_up.5}
  #allocation0 [shape = 'u32[]', space=smem, size = 0x4, offset = 0x4, fixed_abs, tag = 'smem constant byte address 0x4 - core index']
  #allocation1 [shape = 'u32[72,128]{1,0:T(1,128)}', space=vmem, size = 0x9000, scoped, tag = 'internal scratch']
  #allocation2 [shape = 'bf16[18,18,32]{2,1,0:T(8,128)(2,1)}', space=vmem, size = 0x1b000, scoped, tag = 'scratch operand']
  %s0 = inlined_call_operand.vmem [shape: bf16[512,32], index: 0, kind: input, shape index: {}]
  %s1 = inlined_call_operand.vmem [shape: f32[512,4], index: 1, kind: input, shape index: {}]
  %s2 = inlined_call_operand.vmem [shape: f32[1,32], index: 2, kind: input, shape index: {}]
  %s3 = inlined_call_operand.vmem [shape: f32[1,32], index: 3, kind: input, shape index: {}]
  %s4 = inlined_call_operand.vmem [shape: bf16[288,128], index: 4, kind: input, shape index: {}]
  %s5 = inlined_call_operand.vmem [shape: f32[1,32], index: 5, kind: input, shape index: {}]
  %s6 = inlined_call_operand.vmem [shape: bf16[4,32], index: 6, kind: input, shape index: {}]
  %s7 = inlined_call_operand.vmem [shape: f32[1,32], index: 7, kind: input, shape index: {}]
  %s8 = inlined_call_operand.vmem [shape: f32[2,16,2,16,64], index: 8, kind: output, shape index: {}]
  %s9 = sld [smem:[#allocation0]]
  $region69: #{resnet_block_up.5} parent=0
    _
  %s11 = ssub.s32 1, %s9
  %s12 = scalar_select 0, %s11, %s9
  loop: start=0, step=1, limit=4
  $region2: #{resnet_block_up.5} parent=0 // loop_pre_header
    _
  $region3: #{resnet_block_up.5} parent=0 // loop_header
    %s14 = sphi 0, %s18
    %p15 = scmp.ge.s32.totalorder %s14, 4
    %s21 = sphi 0, %s33
    %s22 = sphi 0, %s29
    %s23 = sphi 0, %s21
    %s24 = sphi 0, %s22
    %s25 = sphi 0, %s23
    %s26 = sphi 0, %s24
    %s36 = sphi 0, %s38
    %s39 = sphi 0, %s36
    %s40 = sphi 0, %s39
    %s56 = sphi 0, %s40
    %s64 = sphi 0, %s66
    %s67 = sphi 0, %s64
    %s68 = sphi 0, %s67
    %s84 = sphi 0, %s68
    %s88 = sphi 0, %s88
    %s90 = sphi 0, %s88
    %s91 = sphi 0, %s90
    %s105 = sphi 0, %s91
    %s109 = sphi 0, %s109
    %s111 = sphi 0, %s109
    %s112 = sphi 0, %s111
    %s126 = sphi 0, %s112
    %s130 = sphi 0, %s130
    %s132 = sphi 0, %s130
    %s133 = sphi 0, %s132
    %s147 = sphi 0, %s133
    %s151 = sphi 0, %s151
    %s153 = sphi 0, %s151
    %s154 = sphi 0, %s153
    %s168 = sphi 0, %s154
    %s172 = sphi 0, %s172
    %s174 = sphi 0, %s172
    %s175 = sphi 0, %s174
    %s189 = sphi 0, %s175
    %s193 = sphi 0, %s193
    %s195 = sphi 0, %s193
    %s196 = sphi 0, %s195
    %s210 = sphi 0, %s196
    %s218 = sphi 0, %s220
    %s221 = sphi 0, %s218
    %s222 = sphi 0, %s221
    %s238 = sphi 0, %s222
  $region4: #{resnet_block_up.5} parent=0 // loop_header_branch
    %17 = sbr.rel (%p15) target = $region8
  $region5: #{resnet_block_up.5} parent=0 // loop_body
    %s19 = ssub.s32 %s14, 1
    %s20 = ssub.s32 %s14, 2
    %s27 = sadd.s32 1, %s22
    %p28 = scmp.ge.s32.totalorder %s27, 1
    %s29 = scalar_select %p28, 0, %s27
    %s30 = sadd.s32 1, %s21
    %s31 = scalar_select %p28, %s30, %s21
    %p32 = scmp.ge.s32.totalorder %s31, 2
    %s33 = scalar_select %p32, 0, %s31
    %s34 = ssub.s32 %s21, %s33
    %p35 = scmp.eq.s32.totalorder %s34, 0
    %s37 = sadd.s32 %s36, 1
    %s38 = scalar_select %p35, %s36, %s37
    %p41 = pneg %p35
    %p42 = scmp.eq.s32.totalorder %s14, 1
    %p43 = por %p41, %p42
    %p44 = scmp.ne.s32.totalorder %s36, %s39
    %p45 = scmp.eq.s32.totalorder %s14, 0
    %p46 = por %p44, %p45
    %p47 = scmp.ne.s32.totalorder %s36, %s39
    %p48 = scmp.eq.s32.totalorder %s19, 1
    %p49 = por %p47, %p48
    %p50 = scmp.ne.s32.totalorder %s39, %s40
    %p51 = scmp.eq.s32.totalorder %s19, 0
    %p52 = por %p50, %p51
    %p53 = scmp.ne.s32.totalorder %s39, %s40
    %p54 = scmp.eq.s32.totalorder %s20, 1
    %p55 = por %p53, %p54
    %p57 = scmp.ne.s32.totalorder %s40, %s56
    %p58 = scmp.eq.s32.totalorder %s20, 0
    %p59 = por %p57, %p58
    %s60 = sadd.s32 %s21, %s22
    %s61 = sadd.s32 %s33, %s29
    %s62 = ssub.s32 %s60, %s61
    %p63 = scmp.eq.s32.totalorder %s62, 0
    %s65 = sadd.s32 %s64, 1
    %s66 = scalar_select %p63, %s64, %s65
    %p69 = pneg %p63
    %p70 = scmp.eq.s32.totalorder %s14, 1
    %p71 = por %p69, %p70
    %p72 = scmp.ne.s32.totalorder %s64, %s67
    %p73 = scmp.eq.s32.totalorder %s14, 0
    %p74 = por %p72, %p73
    %p75 = scmp.ne.s32.totalorder %s64, %s67
    %p76 = scmp.eq.s32.totalorder %s19, 1
    %p77 = por %p75, %p76
    %p78 = scmp.ne.s32.totalorder %s67, %s68
    %p79 = scmp.eq.s32.totalorder %s19, 0
    %p80 = por %p78, %p79
    %p81 = scmp.ne.s32.totalorder %s67, %s68
    %p82 = scmp.eq.s32.totalorder %s20, 1
    %p83 = por %p81, %p82
    %p85 = scmp.ne.s32.totalorder %s68, %s84
    %p86 = scmp.eq.s32.totalorder %s20, 0
    %p87 = por %p85, %p86
    %s89 = sadd.s32 %s88, 1
    %p92 = scmp.eq.s32.totalorder %s14, 1
    %p93 = scmp.ne.s32.totalorder %s88, %s90
    %p94 = scmp.eq.s32.totalorder %s14, 0
    %p95 = por %p93, %p94
    %p96 = scmp.ne.s32.totalorder %s88, %s90
    %p97 = scmp.eq.s32.totalorder %s19, 1
    %p98 = por %p96, %p97
    %p99 = scmp.ne.s32.totalorder %s90, %s91
    %p100 = scmp.eq.s32.totalorder %s19, 0
    %p101 = por %p99, %p100
    %p102 = scmp.ne.s32.totalorder %s90, %s91
    %p103 = scmp.eq.s32.totalorder %s20, 1
    %p104 = por %p102, %p103
    %p106 = scmp.ne.s32.totalorder %s91, %s105
    %p107 = scmp.eq.s32.totalorder %s20, 0
    %p108 = por %p106, %p107
    %s110 = sadd.s32 %s109, 1
    %p113 = scmp.eq.s32.totalorder %s14, 1
    %p114 = scmp.ne.s32.totalorder %s109, %s111
    %p115 = scmp.eq.s32.totalorder %s14, 0
    %p116 = por %p114, %p115
    %p117 = scmp.ne.s32.totalorder %s109, %s111
    %p118 = scmp.eq.s32.totalorder %s19, 1
    %p119 = por %p117, %p118
    %p120 = scmp.ne.s32.totalorder %s111, %s112
    %p121 = scmp.eq.s32.totalorder %s19, 0
    %p122 = por %p120, %p121
    %p123 = scmp.ne.s32.totalorder %s111, %s112
    %p124 = scmp.eq.s32.totalorder %s20, 1
    %p125 = por %p123, %p124
    %p127 = scmp.ne.s32.totalorder %s112, %s126
    %p128 = scmp.eq.s32.totalorder %s20, 0
    %p129 = por %p127, %p128
    %s131 = sadd.s32 %s130, 1
    %p134 = scmp.eq.s32.totalorder %s14, 1
    %p135 = scmp.ne.s32.totalorder %s130, %s132
    %p136 = scmp.eq.s32.totalorder %s14, 0
    %p137 = por %p135, %p136
    %p138 = scmp.ne.s32.totalorder %s130, %s132
    %p139 = scmp.eq.s32.totalorder %s19, 1
    %p140 = por %p138, %p139
    %p141 = scmp.ne.s32.totalorder %s132, %s133
    %p142 = scmp.eq.s32.totalorder %s19, 0
    %p143 = por %p141, %p142
    %p144 = scmp.ne.s32.totalorder %s132, %s133
    %p145 = scmp.eq.s32.totalorder %s20, 1
    %p146 = por %p144, %p145
    %p148 = scmp.ne.s32.totalorder %s133, %s147
    %p149 = scmp.eq.s32.totalorder %s20, 0
    %p150 = por %p148, %p149
    %s152 = sadd.s32 %s151, 1
    %p155 = scmp.eq.s32.totalorder %s14, 1
    %p156 = scmp.ne.s32.totalorder %s151, %s153
    %p157 = scmp.eq.s32.totalorder %s14, 0
    %p158 = por %p156, %p157
    %p159 = scmp.ne.s32.totalorder %s151, %s153
    %p160 = scmp.eq.s32.totalorder %s19, 1
    %p161 = por %p159, %p160
    %p162 = scmp.ne.s32.totalorder %s153, %s154
    %p163 = scmp.eq.s32.totalorder %s19, 0
    %p164 = por %p162, %p163
    %p165 = scmp.ne.s32.totalorder %s153, %s154
    %p166 = scmp.eq.s32.totalorder %s20, 1
    %p167 = por %p165, %p166
    %p169 = scmp.ne.s32.totalorder %s154, %s168
    %p170 = scmp.eq.s32.totalorder %s20, 0
    %p171 = por %p169, %p170
    %s173 = sadd.s32 %s172, 1
    %p176 = scmp.eq.s32.totalorder %s14, 1
    %p177 = scmp.ne.s32.totalorder %s172, %s174
    %p178 = scmp.eq.s32.totalorder %s14, 0
    %p179 = por %p177, %p178
    %p180 = scmp.ne.s32.totalorder %s172, %s174
    %p181 = scmp.eq.s32.totalorder %s19, 1
    %p182 = por %p180, %p181
    %p183 = scmp.ne.s32.totalorder %s174, %s175
    %p184 = scmp.eq.s32.totalorder %s19, 0
    %p185 = por %p183, %p184
    %p186 = scmp.ne.s32.totalorder %s174, %s175
    %p187 = scmp.eq.s32.totalorder %s20, 1
    %p188 = por %p186, %p187
    %p190 = scmp.ne.s32.totalorder %s175, %s189
    %p191 = scmp.eq.s32.totalorder %s20, 0
    %p192 = por %p190, %p191
    %s194 = sadd.s32 %s193, 1
    %p197 = scmp.eq.s32.totalorder %s14, 1
    %p198 = scmp.ne.s32.totalorder %s193, %s195
    %p199 = scmp.eq.s32.totalorder %s14, 0
    %p200 = por %p198, %p199
    %p201 = scmp.ne.s32.totalorder %s193, %s195
    %p202 = scmp.eq.s32.totalorder %s19, 1
    %p203 = por %p201, %p202
    %p204 = scmp.ne.s32.totalorder %s195, %s196
    %p205 = scmp.eq.s32.totalorder %s19, 0
    %p206 = por %p204, %p205
    %p207 = scmp.ne.s32.totalorder %s195, %s196
    %p208 = scmp.eq.s32.totalorder %s20, 1
    %p209 = por %p207, %p208
    %p211 = scmp.ne.s32.totalorder %s196, %s210
    %p212 = scmp.eq.s32.totalorder %s20, 0
    %p213 = por %p211, %p212
    %s214 = ssub.s32 %s21, %s33
    %s215 = ssub.s32 %s22, %s29
    %s216 = sor.u32 %s214, %s215
    %p217 = scmp.eq.s32.totalorder %s216, 0
    %s219 = sadd.s32 %s218, 1
    %s220 = scalar_select %p217, %s218, %s219
    %p223 = pneg %p217
    %p224 = scmp.eq.s32.totalorder %s14, 1
    %p225 = por %p223, %p224
    %p226 = scmp.ne.s32.totalorder %s218, %s221
    %p227 = scmp.eq.s32.totalorder %s14, 0
    %p228 = por %p226, %p227
    %p229 = scmp.ne.s32.totalorder %s218, %s221
    %p230 = scmp.eq.s32.totalorder %s19, 1
    %p231 = por %p229, %p230
    %p232 = scmp.ne.s32.totalorder %s221, %s222
    %p233 = scmp.eq.s32.totalorder %s19, 0
    %p234 = por %p232, %p233
    %p235 = scmp.ne.s32.totalorder %s221, %s222
    %p236 = scmp.eq.s32.totalorder %s20, 1
    %p237 = por %p235, %p236
    %p239 = scmp.ne.s32.totalorder %s222, %s238
    %p240 = scmp.eq.s32.totalorder %s20, 0
    %p241 = por %p239, %p240
    %p242 = scmp.le.s32.totalorder 1, %s14
    %p243 = scmp.lt.s32.totalorder %s14, 3
    %p244 = pnand %p242, %p243
    %p245 = pneg %p244
    // Predicated region
    $region9: #{resnet_block_up.5} parent=5 // pred_check
      _
    $region10: #{resnet_block_up.5} parent=5 // pred_check_branch
      %247 = sbr.rel (%p244) target = $region12
    $region11: #{resnet_block_up.5} parent=5 // pred_region
      %s248 = ssub.s32 %s14, 1
      // Predicated region
      $region13: #{resnet_block_up.5} parent=11 // pred_check
        %p249 = pneg %p101
      $region14: #{resnet_block_up.5} parent=11 // pred_check_branch
        %251 = sbr.rel (%p249) target = $region16
      $region15: #{resnet_block_up.5} parent=11 // pred_region
        _
      $region16: #{resnet_block_up.5} parent=11 // pred_fallthru
        _
      // Predicated region
      $region17: #{resnet_block_up.5} parent=11 // pred_check
        %p252 = pneg %p122
      $region18: #{resnet_block_up.5} parent=11 // pred_check_branch
        %254 = sbr.rel (%p252) target = $region20
      $region19: #{resnet_block_up.5} parent=11 // pred_region
        _
      $region20: #{resnet_block_up.5} parent=11 // pred_fallthru
        _
      // Predicated region
      $region21: #{resnet_block_up.5} parent=11 // pred_check
        %p255 = pneg %p143
      $region22: #{resnet_block_up.5} parent=11 // pred_check_branch
        %257 = sbr.rel (%p255) target = $region24
      $region23: #{resnet_block_up.5} parent=11 // pred_region
        _
      $region24: #{resnet_block_up.5} parent=11 // pred_fallthru
        _
      // Predicated region
      $region25: #{resnet_block_up.5} parent=11 // pred_check
        %p258 = pneg %p164
      $region26: #{resnet_block_up.5} parent=11 // pred_check_branch
        %260 = sbr.rel (%p258) target = $region28
      $region27: #{resnet_block_up.5} parent=11 // pred_region
        _
      $region28: #{resnet_block_up.5} parent=11 // pred_fallthru
        _
      // Predicated region
      $region29: #{resnet_block_up.5} parent=11 // pred_check
        %p261 = pneg %p185
      $region30: #{resnet_block_up.5} parent=11 // pred_check_branch
        %263 = sbr.rel (%p261) target = $region32
      $region31: #{resnet_block_up.5} parent=11 // pred_region
        _
      $region32: #{resnet_block_up.5} parent=11 // pred_fallthru
        _
      // Predicated region
      $region33: #{resnet_block_up.5} parent=11 // pred_check
        %p264 = pneg %p206
      $region34: #{resnet_block_up.5} parent=11 // pred_check_branch
        %266 = sbr.rel (%p264) target = $region36
      $region35: #{resnet_block_up.5} parent=11 // pred_region
        _
      $region36: #{resnet_block_up.5} parent=11 // pred_fallthru
        _
    $region12: #{resnet_block_up.5} parent=5 // pred_fallthru
      _
    %p267 = scmp.lt.s32.totalorder %s14, 2
    // Predicated region
    $region37: #{resnet_block_up.5} parent=5 // pred_check
      %p268 = pneg %p267
    $region38: #{resnet_block_up.5} parent=5 // pred_check_branch
      %270 = sbr.rel (%p268) target = $region40
    $region39: #{resnet_block_up.5} parent=5 // pred_region
      // Predicated region
      $region41: #{resnet_block_up.5} parent=39 // pred_check
        %p271 = pneg %p46
      $region42: #{resnet_block_up.5} parent=39 // pred_check_branch
        %273 = sbr.rel (%p271) target = $region44
      $region43: #{resnet_block_up.5} parent=39 // pred_region
        %s274 = smul.u32 32, %s21
        %p275 = scmp.lt.s32.totalorder %s274, 63
        %s276 = scalar_select %p275, %s274, 63
        %s277 = smul.addr %s276, 4
        %s278 = scalar_lea.vmem %s0, %s277
        %s279 = smul.u32 32, %s21
      $region44: #{resnet_block_up.5} parent=39 // pred_fallthru
        _
      // Predicated region
      $region45: #{resnet_block_up.5} parent=39 // pred_check
        %p280 = pneg %p74
      $region46: #{resnet_block_up.5} parent=39 // pred_check_branch
        %282 = sbr.rel (%p280) target = $region48
      $region47: #{resnet_block_up.5} parent=39 // pred_region
        %s283 = sadd.s32 %s21, %s22
        %s284 = smul.u32 32, %s283
        %p285 = scmp.lt.s32.totalorder %s284, 63
        %s286 = scalar_select %p285, %s284, 63
        %s287 = smul.addr %s286, 8
        %s288 = scalar_lea.vmem %s1, %s287
        %s289 = sadd.s32 %s21, %s22
        %s290 = smul.u32 32, %s289
      $region48: #{resnet_block_up.5} parent=39 // pred_fallthru
        _
    $region40: #{resnet_block_up.5} parent=5 // pred_fallthru
      _
    %p291 = scmp.le.s32.totalorder 1, %s14
    %p292 = scmp.lt.s32.totalorder %s14, 3
    %p293 = pnand %p291, %p292
    %p294 = pneg %p293
    // Predicated region
    $region49: #{resnet_block_up.5} parent=5 // pred_check
      _
    $region50: #{resnet_block_up.5} parent=5 // pred_check_branch
      %296 = sbr.rel (%p293) target = $region52
    $region51: #{resnet_block_up.5} parent=5 // pred_region
      %s297 = ssub.s32 %s14, 1
      %s298 = smul.u32 32, %s23
      %p299 = scmp.lt.s32.totalorder %s298, 63
      %s300 = scalar_select %p299, %s298, 63
      %s301 = smul.addr %s300, 4
      %s302 = scalar_lea.vmem %s0, %s301
      %p303 = pneg %p52
      %p304 = pneg %p49
      %s305 = sadd.s32 %s23, %s24
      %s306 = smul.u32 32, %s305
      %p307 = scmp.lt.s32.totalorder %s306, 63
      %s308 = scalar_select %p307, %s306, 63
      %s309 = smul.addr %s308, 8
      %s310 = scalar_lea.vmem %s1, %s309
      %p311 = pneg %p80
      %p312 = pneg %p77
      %p313 = pneg %p101
      %p314 = pneg %p98
      %p315 = pneg %p122
      %p316 = pneg %p119
      %p317 = pneg %p143
      %p318 = pneg %p140
      %p319 = pneg %p164
      %p320 = pneg %p161
      %p321 = pneg %p185
      %p322 = pneg %p182
      %p323 = pneg %p206
      %p324 = pneg %p203
      %p325 = pneg %p234
      %p326 = pneg %p231
      %s327 = smul.u32 16, %s24
      %p328 = scmp.lt.s32.totalorder %s23, 1
      %s329 = scalar_select %p328, %s23, 1
      %p330 = scmp.lt.s32.totalorder %s327, 15
      %s331 = scalar_select %p330, %s327, 15
      %s332 = smul.addr %s331, 4
      %s333 = smul.addr %s329, 64
      %s334 = sadd.s32 %s332, %s333
      %s335 = smul.addr %s334, 8
      %s336 = scalar_lea.vmem %s8, %s335
      %s337 = smul.u32 32, %s23
      %p338 = scmp.lt.s32.totalorder %s337, 63
      %s339 = scalar_select %p338, %s337, 63
      %s340 = smul.addr %s339, 4
      %s341 = scalar_lea.vmem %s0, %s340
      %s342 = smul.u32 32, %s23
      %s343 = sadd.s32 %s23, %s24
      %s344 = smul.u32 32, %s343
      %p345 = scmp.lt.s32.totalorder %s344, 63
      %s346 = scalar_select %p345, %s344, 63
      %s347 = smul.addr %s346, 8
      %s348 = scalar_lea.vmem %s1, %s347
      %s349 = sadd.s32 %s23, %s24
      %s350 = smul.u32 32, %s349
      %s351 = smul.u32 16, %s24
      %p352 = scmp.lt.s32.totalorder %s23, 1
      %s353 = scalar_select %p352, %s23, 1
      %p354 = scmp.lt.s32.totalorder %s351, 15
      %s355 = scalar_select %p354, %s351, 15
      %s356 = smul.addr %s355, 4
      %s357 = smul.addr %s353, 64
      %s358 = sadd.s32 %s356, %s357
      %s359 = smul.addr %s358, 8
      %s360 = scalar_lea.vmem %s8, %s359
      %s361 = smul.u32 16, %s24
      %p363 = scmp.eq.s32.totalorder %s24, 0
      // Predicated region
      $region53: #{resnet_block_up.5} parent=51 // pred_check
        %p364 = pneg %p363
      $region54: #{resnet_block_up.5} parent=51 // pred_check_branch
        %366 = sbr.rel (%p364) target = $region56
      $region55: #{resnet_block_up.5} parent=51 // pred_region
        %vm367 = vcmask 257024
        %368 = vst.msk [vmem:[#allocation2] sm:$0xf] %vm367, 0
        %369 = vst.msk [vmem:[#allocation2 + $0x4] sm:$0xf] %vm367, 0
        %vm370 = vcmask 253952
        %371 = vst.msk [vmem:[#allocation2 + $0x8] sm:$0x1] %vm370, 0
        %372 = vst.msk [vmem:[#allocation2 + $0xc] sm:$0xf] %vm367, 0
        %373 = vst.msk [vmem:[#allocation2 + $0x10] sm:$0xf] %vm367, 0
        %374 = vst.msk [vmem:[#allocation2 + $0x14] sm:$0x1] %vm370, 0
        %375 = vst.msk [vmem:[#allocation2 + $0x18] sm:$0xf] %vm367, 0
        %376 = vst.msk [vmem:[#allocation2 + $0x1c] sm:$0xf] %vm367, 0
        %377 = vst.msk [vmem:[#allocation2 + $0x20] sm:$0x1] %vm370, 0
        %378 = vst.msk [vmem:[#allocation2 + $0x24] sm:$0xf] %vm367, 0
        %379 = vst.msk [vmem:[#allocation2 + $0x28] sm:$0xf] %vm367, 0
        %380 = vst.msk [vmem:[#allocation2 + $0x2c] sm:$0x1] %vm370, 0
        %381 = vst.msk [vmem:[#allocation2 + $0x30] sm:$0xf] %vm367, 0
        %382 = vst.msk [vmem:[#allocation2 + $0x34] sm:$0xf] %vm367, 0
        %383 = vst.msk [vmem:[#allocation2 + $0x38] sm:$0x1] %vm370, 0
        %384 = vst.msk [vmem:[#allocation2 + $0x3c] sm:$0xf] %vm367, 0
        %385 = vst.msk [vmem:[#allocation2 + $0x40] sm:$0xf] %vm367, 0
        %386 = vst.msk [vmem:[#allocation2 + $0x44] sm:$0x1] %vm370, 0
        %387 = vst.msk [vmem:[#allocation2 + $0x48] sm:$0xf] %vm367, 0
        %388 = vst.msk [vmem:[#allocation2 + $0x4c] sm:$0xf] %vm367, 0
        %389 = vst.msk [vmem:[#allocation2 + $0x50] sm:$0x1] %vm370, 0
        %390 = vst.msk [vmem:[#allocation2 + $0x54] sm:$0xf] %vm367, 0
        %391 = vst.msk [vmem:[#allocation2 + $0x58] sm:$0xf] %vm367, 0
        %392 = vst.msk [vmem:[#allocation2 + $0x5c] sm:$0x1] %vm370, 0
        %393 = vst.msk [vmem:[#allocation2 + $0x60] sm:$0xf] %vm367, 0
        %394 = vst.msk [vmem:[#allocation2 + $0x64] sm:$0xf] %vm367, 0
        %395 = vst.msk [vmem:[#allocation2 + $0x68] sm:$0x1] %vm370, 0
        %396 = vst.msk [vmem:[#allocation2 + $0x6c] sm:$0xf] %vm367, 0
        %397 = vst.msk [vmem:[#allocation2 + $0x70] sm:$0xf] %vm367, 0
        %398 = vst.msk [vmem:[#allocation2 + $0x74] sm:$0x1] %vm370, 0
        %399 = vst.msk [vmem:[#allocation2 + $0x78] sm:$0xf] %vm367, 0
        %400 = vst.msk [vmem:[#allocation2 + $0x7c] sm:$0xf] %vm367, 0
        %401 = vst.msk [vmem:[#allocation2 + $0x80] sm:$0x1] %vm370, 0
        %402 = vst.msk [vmem:[#allocation2 + $0x84] sm:$0xf] %vm367, 0
        %403 = vst.msk [vmem:[#allocation2 + $0x88] sm:$0xf] %vm367, 0
        %404 = vst.msk [vmem:[#allocation2 + $0x8c] sm:$0x1] %vm370, 0
        %405 = vst.msk [vmem:[#allocation2 + $0x90] sm:$0xf] %vm367, 0
        %406 = vst.msk [vmem:[#allocation2 + $0x94] sm:$0xf] %vm367, 0
        %407 = vst.msk [vmem:[#allocation2 + $0x98] sm:$0x1] %vm370, 0
        %408 = vst.msk [vmem:[#allocation2 + $0x9c] sm:$0xf] %vm367, 0
        %409 = vst.msk [vmem:[#allocation2 + $0xa0] sm:$0xf] %vm367, 0
        %410 = vst.msk [vmem:[#allocation2 + $0xa4] sm:$0x1] %vm370, 0
        %411 = vst.msk [vmem:[#allocation2 + $0xa8] sm:$0xf] %vm367, 0
        %412 = vst.msk [vmem:[#allocation2 + $0xac] sm:$0xf] %vm367, 0
        %413 = vst.msk [vmem:[#allocation2 + $0xb0] sm:$0x1] %vm370, 0
        %414 = vst.msk [vmem:[#allocation2 + $0xb4] sm:$0xf] %vm367, 0
        %415 = vst.msk [vmem:[#allocation2 + $0xb8] sm:$0xf] %vm367, 0
        %416 = vst.msk [vmem:[#allocation2 + $0xbc] sm:$0x1] %vm370, 0
        %417 = vst.msk [vmem:[#allocation2 + $0xc0] sm:$0xf] %vm367, 0
        %418 = vst.msk [vmem:[#allocation2 + $0xc4] sm:$0xf] %vm367, 0
        %419 = vst.msk [vmem:[#allocation2 + $0xc8] sm:$0x1] %vm370, 0
        %420 = vst.msk [vmem:[#allocation2 + $0xcc] sm:$0xf] %vm367, 0
        %421 = vst.msk [vmem:[#allocation2 + $0xd0] sm:$0xf] %vm367, 0
        %422 = vst.msk [vmem:[#allocation2 + $0xd4] sm:$0x1] %vm370, 0
        %v423 = vld [vmem:[%s341] sm:$0xf]
        %v424 = vld [vmem:[%s341 + $0x4] sm:$0xf]
        %v425 = vld [vmem:[%s341 + $0x8] sm:$0xf]
        %v426 = vld [vmem:[%s341 + $0xc] sm:$0xf]
        %v427 = vld [vmem:[%s341 + $0x10] sm:$0xf]
        %v428 = vld [vmem:[%s341 + $0x14] sm:$0xf]
        %v429 = vld [vmem:[%s341 + $0x18] sm:$0xf]
        %v430 = vld [vmem:[%s341 + $0x1c] sm:$0xf]
        %v431 = vld [vmem:[%s341 + $0x20] sm:$0xf]
        %v432 = vld [vmem:[%s341 + $0x24] sm:$0xf]
        %v433 = vld [vmem:[%s341 + $0x28] sm:$0xf]
        %v434 = vld [vmem:[%s341 + $0x2c] sm:$0xf]
        %v435 = vld [vmem:[%s341 + $0x30] sm:$0xf]
        %v436 = vld [vmem:[%s341 + $0x34] sm:$0xf]
        %v437 = vld [vmem:[%s341 + $0x38] sm:$0xf]
        %v438 = vld [vmem:[%s341 + $0x3c] sm:$0xf]
        %v439 = vld [vmem:[%s341 + $0x40] sm:$0xf]
        %v440 = vld [vmem:[%s341 + $0x44] sm:$0xf]
        %v441 = vld [vmem:[%s341 + $0x48] sm:$0xf]
        %v442 = vld [vmem:[%s341 + $0x4c] sm:$0xf]
        %v443 = vld [vmem:[%s341 + $0x50] sm:$0xf]
        %v444 = vld [vmem:[%s341 + $0x54] sm:$0xf]
        %v445 = vld [vmem:[%s341 + $0x58] sm:$0xf]
        %v446 = vld [vmem:[%s341 + $0x5c] sm:$0xf]
        %v447 = vld [vmem:[%s341 + $0x60] sm:$0xf]
        %v448 = vld [vmem:[%s341 + $0x64] sm:$0xf]
        %v449 = vld [vmem:[%s341 + $0x68] sm:$0xf]
        %v450 = vld [vmem:[%s341 + $0x6c] sm:$0xf]
        %v451 = vld [vmem:[%s341 + $0x70] sm:$0xf]
        %v452 = vld [vmem:[%s341 + $0x74] sm:$0xf]
        %v453 = vld [vmem:[%s341 + $0x78] sm:$0xf]
        %v454 = vld [vmem:[%s341 + $0x7c] sm:$0xf]
        %v455 = vunpack.c.l.bf16 %v423
        %v456 = vunpack.c.l.bf16 %v424
        %v457 = vunpack.c.l.bf16 %v425
        %v458 = vunpack.c.l.bf16 %v426
        %v459 = vunpack.c.l.bf16 %v427
        %v460 = vunpack.c.l.bf16 %v428
        %v461 = vunpack.c.l.bf16 %v429
        %v462 = vunpack.c.l.bf16 %v430
        %v463 = vunpack.c.l.bf16 %v431
        %v464 = vunpack.c.l.bf16 %v432
        %v465 = vunpack.c.l.bf16 %v433
        %v466 = vunpack.c.l.bf16 %v434
        %v467 = vunpack.c.l.bf16 %v435
        %v468 = vunpack.c.l.bf16 %v436
        %v469 = vunpack.c.l.bf16 %v437
        %v470 = vunpack.c.l.bf16 %v438
        %v471 = vunpack.c.l.bf16 %v439
        %v472 = vunpack.c.l.bf16 %v440
        %v473 = vunpack.c.l.bf16 %v441
        %v474 = vunpack.c.l.bf16 %v442
        %v475 = vunpack.c.l.bf16 %v443
        %v476 = vunpack.c.l.bf16 %v444
        %v477 = vunpack.c.l.bf16 %v445
        %v478 = vunpack.c.l.bf16 %v446
        %v479 = vunpack.c.l.bf16 %v447
        %v480 = vunpack.c.l.bf16 %v448
        %v481 = vunpack.c.l.bf16 %v449
        %v482 = vunpack.c.l.bf16 %v450
        %v483 = vunpack.c.l.bf16 %v451
        %v484 = vunpack.c.l.bf16 %v452
        %v485 = vunpack.c.l.bf16 %v453
        %v486 = vunpack.c.l.bf16 %v454
        %v487 = vld [vmem:[%s2] sm:$0x1]
        %v489 = vperm.slane %v487, 0
        %v491 = vmul.f32 %v455, %v489
        %v492 = vmul.f32 %v456, %v489
        %v493 = vmul.f32 %v457, %v489
        %v494 = vmul.f32 %v458, %v489
        %v495 = vmul.f32 %v459, %v489
        %v496 = vmul.f32 %v460, %v489
        %v497 = vmul.f32 %v461, %v489
        %v498 = vmul.f32 %v462, %v489
        %v499 = vmul.f32 %v463, %v489
        %v500 = vmul.f32 %v464, %v489
        %v501 = vmul.f32 %v465, %v489
        %v502 = vmul.f32 %v466, %v489
        %v503 = vmul.f32 %v467, %v489
        %v504 = vmul.f32 %v468, %v489
        %v505 = vmul.f32 %v469, %v489
        %v506 = vmul.f32 %v470, %v489
        %v507 = vmul.f32 %v471, %v489
        %v508 = vmul.f32 %v472, %v489
        %v509 = vmul.f32 %v473, %v489
        %v510 = vmul.f32 %v474, %v489
        %v511 = vmul.f32 %v475, %v489
        %v512 = vmul.f32 %v476, %v489
        %v513 = vmul.f32 %v477, %v489
        %v514 = vmul.f32 %v478, %v489
        %v515 = vmul.f32 %v479, %v489
        %v516 = vmul.f32 %v480, %v489
        %v517 = vmul.f32 %v481, %v489
        %v518 = vmul.f32 %v482, %v489
        %v519 = vmul.f32 %v483, %v489
        %v520 = vmul.f32 %v484, %v489
        %v521 = vmul.f32 %v485, %v489
        %v522 = vmul.f32 %v486, %v489
        %v523 = vld [vmem:[%s3] sm:$0x1]
        %v525 = vperm.slane %v523, 0
        %v527 = vadd.f32 %v491, %v525
        %v528 = vadd.f32 %v492, %v525
        %v529 = vadd.f32 %v493, %v525
        %v530 = vadd.f32 %v494, %v525
        %v531 = vadd.f32 %v495, %v525
        %v532 = vadd.f32 %v496, %v525
        %v533 = vadd.f32 %v497, %v525
        %v534 = vadd.f32 %v498, %v525
        %v535 = vadd.f32 %v499, %v525
        %v536 = vadd.f32 %v500, %v525
        %v537 = vadd.f32 %v501, %v525
        %v538 = vadd.f32 %v502, %v525
        %v539 = vadd.f32 %v503, %v525
        %v540 = vadd.f32 %v504, %v525
        %v541 = vadd.f32 %v505, %v525
        %v542 = vadd.f32 %v506, %v525
        %v543 = vadd.f32 %v507, %v525
        %v544 = vadd.f32 %v508, %v525
        %v545 = vadd.f32 %v509, %v525
        %v546 = vadd.f32 %v510, %v525
        %v547 = vadd.f32 %v511, %v525
        %v548 = vadd.f32 %v512, %v525
        %v549 = vadd.f32 %v513, %v525
        %v550 = vadd.f32 %v514, %v525
        %v551 = vadd.f32 %v515, %v525
        %v552 = vadd.f32 %v516, %v525
        %v553 = vadd.f32 %v517, %v525
        %v554 = vadd.f32 %v518, %v525
        %v555 = vadd.f32 %v519, %v525
        %v556 = vadd.f32 %v520, %v525
        %v557 = vadd.f32 %v521, %v525
        %v558 = vadd.f32 %v522, %v525
        %v559 = vmax.f32 %v527, 0.0
        %v560 = vmax.f32 %v528, 0.0
        %v561 = vmax.f32 %v529, 0.0
        %v562 = vmax.f32 %v530, 0.0
        %v563 = vmax.f32 %v531, 0.0
        %v564 = vmax.f32 %v532, 0.0
        %v565 = vmax.f32 %v533, 0.0
        %v566 = vmax.f32 %v534, 0.0
        %v567 = vmax.f32 %v535, 0.0
        %v568 = vmax.f32 %v536, 0.0
        %v569 = vmax.f32 %v537, 0.0
        %v570 = vmax.f32 %v538, 0.0
        %v571 = vmax.f32 %v539, 0.0
        %v572 = vmax.f32 %v540, 0.0
        %v573 = vmax.f32 %v541, 0.0
        %v574 = vmax.f32 %v542, 0.0
        %v575 = vmax.f32 %v543, 0.0
        %v576 = vmax.f32 %v544, 0.0
        %v577 = vmax.f32 %v545, 0.0
        %v578 = vmax.f32 %v546, 0.0
        %v579 = vmax.f32 %v547, 0.0
        %v580 = vmax.f32 %v548, 0.0
        %v581 = vmax.f32 %v549, 0.0
        %v582 = vmax.f32 %v550, 0.0
        %v583 = vmax.f32 %v551, 0.0
        %v584 = vmax.f32 %v552, 0.0
        %v585 = vmax.f32 %v553, 0.0
        %v586 = vmax.f32 %v554, 0.0
        %v587 = vmax.f32 %v555, 0.0
        %v588 = vmax.f32 %v556, 0.0
        %v589 = vmax.f32 %v557, 0.0
        %v590 = vmax.f32 %v558, 0.0
        %v591 = vpack.c.bf16 %v559, %v559
        %v592 = vpack.c.bf16 %v560, %v560
        %v593 = vpack.c.bf16 %v561, %v561
        %v594 = vpack.c.bf16 %v562, %v562
        %v595 = vpack.c.bf16 %v563, %v563
        %v596 = vpack.c.bf16 %v564, %v564
        %v597 = vpack.c.bf16 %v565, %v565
        %v598 = vpack.c.bf16 %v566, %v566
        %v599 = vpack.c.bf16 %v567, %v567
        %v600 = vpack.c.bf16 %v568, %v568
        %v601 = vpack.c.bf16 %v569, %v569
        %v602 = vpack.c.bf16 %v570, %v570
        %v603 = vpack.c.bf16 %v571, %v571
        %v604 = vpack.c.bf16 %v572, %v572
        %v605 = vpack.c.bf16 %v573, %v573
        %v606 = vpack.c.bf16 %v574, %v574
        %v607 = vpack.c.bf16 %v575, %v575
        %v608 = vpack.c.bf16 %v576, %v576
        %v609 = vpack.c.bf16 %v577, %v577
        %v610 = vpack.c.bf16 %v578, %v578
        %v611 = vpack.c.bf16 %v579, %v579
        %v612 = vpack.c.bf16 %v580, %v580
        %v613 = vpack.c.bf16 %v581, %v581
        %v614 = vpack.c.bf16 %v582, %v582
        %v615 = vpack.c.bf16 %v583, %v583
        %v616 = vpack.c.bf16 %v584, %v584
        %v617 = vpack.c.bf16 %v585, %v585
        %v618 = vpack.c.bf16 %v586, %v586
        %v619 = vpack.c.bf16 %v587, %v587
        %v620 = vpack.c.bf16 %v588, %v588
        %v621 = vpack.c.bf16 %v589, %v589
        %v622 = vpack.c.bf16 %v590, %v590
        %vm623 = vsmask.f32 256
        %vm624 = vsmask.f32 4368
        %vm625 = vmor %vm623, %vm624
        %v627 = vshrl.u32 %v591, 16
        %v629 = vrot.slane %v627, 7
        %v630 = vshll.u32 %v591, 16
        %v632 = vor.u32 %v629, %v630
        %v633 = vrot.slane %v629, 4
        %v635 = vshrl.u32 %v592, 16
        %v637 = vrot.slane %v635, 7
        %v638 = vshll.u32 %v592, 16
        %v640 = vor.u32 %v637, %v638
        %v641 = vsel %vm625, %v633, %v640
        %v642 = vrot.slane %v637, 4
        %v644 = vshrl.u32 %v593, 16
        %v646 = vrot.slane %v644, 7
        %v647 = vshll.u32 %v593, 16
        %v649 = vor.u32 %v646, %v647
        %v650 = vrot.slane %v646, 4
        %v652 = vshrl.u32 %v594, 16
        %v654 = vrot.slane %v652, 7
        %v655 = vshll.u32 %v594, 16
        %v657 = vor.u32 %v654, %v655
        %v658 = vsel %vm625, %v650, %v657
        %v659 = vrot.slane %v654, 4
        %v661 = vshrl.u32 %v595, 16
        %v663 = vrot.slane %v661, 7
        %v664 = vshll.u32 %v595, 16
        %v666 = vor.u32 %v663, %v664
        %v667 = vrot.slane %v663, 4
        %v669 = vshrl.u32 %v596, 16
        %v671 = vrot.slane %v669, 7
        %v672 = vshll.u32 %v596, 16
        %v674 = vor.u32 %v671, %v672
        %v675 = vsel %vm625, %v667, %v674
        %v676 = vrot.slane %v671, 4
        %v678 = vshrl.u32 %v597, 16
        %v680 = vrot.slane %v678, 7
        %v681 = vshll.u32 %v597, 16
        %v683 = vor.u32 %v680, %v681
        %v684 = vrot.slane %v680, 4
        %v686 = vshrl.u32 %v598, 16
        %v688 = vrot.slane %v686, 7
        %v689 = vshll.u32 %v598, 16
        %v691 = vor.u32 %v688, %v689
        %v692 = vsel %vm625, %v684, %v691
        %v693 = vrot.slane %v688, 4
        %v695 = vshrl.u32 %v599, 16
        %v697 = vrot.slane %v695, 7
        %v698 = vshll.u32 %v599, 16
        %v700 = vor.u32 %v697, %v698
        %v701 = vrot.slane %v697, 4
        %v703 = vshrl.u32 %v600, 16
        %v705 = vrot.slane %v703, 7
        %v706 = vshll.u32 %v600, 16
        %v708 = vor.u32 %v705, %v706
        %v709 = vsel %vm625, %v701, %v708
        %v710 = vrot.slane %v705, 4
        %v712 = vshrl.u32 %v601, 16
        %v714 = vrot.slane %v712, 7
        %v715 = vshll.u32 %v601, 16
        %v717 = vor.u32 %v714, %v715
        %v718 = vrot.slane %v714, 4
        %v720 = vshrl.u32 %v602, 16
        %v722 = vrot.slane %v720, 7
        %v723 = vshll.u32 %v602, 16
        %v725 = vor.u32 %v722, %v723
        %v726 = vsel %vm625, %v718, %v725
        %v727 = vrot.slane %v722, 4
        %v729 = vshrl.u32 %v603, 16
        %v731 = vrot.slane %v729, 7
        %v732 = vshll.u32 %v603, 16
        %v734 = vor.u32 %v731, %v732
        %v735 = vrot.slane %v731, 4
        %v737 = vshrl.u32 %v604, 16
        %v739 = vrot.slane %v737, 7
        %v740 = vshll.u32 %v604, 16
        %v742 = vor.u32 %v739, %v740
        %v743 = vsel %vm625, %v735, %v742
        %v744 = vrot.slane %v739, 4
        %v746 = vshrl.u32 %v605, 16
        %v748 = vrot.slane %v746, 7
        %v749 = vshll.u32 %v605, 16
        %v751 = vor.u32 %v748, %v749
        %v752 = vrot.slane %v748, 4
        %v754 = vshrl.u32 %v606, 16
        %v756 = vrot.slane %v754, 7
        %v757 = vshll.u32 %v606, 16
        %v759 = vor.u32 %v756, %v757
        %v760 = vsel %vm625, %v752, %v759
        %v761 = vrot.slane %v756, 4
        %v763 = vshrl.u32 %v607, 16
        %v765 = vrot.slane %v763, 7
        %v766 = vshll.u32 %v607, 16
        %v768 = vor.u32 %v765, %v766
        %v769 = vrot.slane %v765, 4
        %v771 = vshrl.u32 %v608, 16
        %v773 = vrot.slane %v771, 7
        %v774 = vshll.u32 %v608, 16
        %v776 = vor.u32 %v773, %v774
        %v777 = vsel %vm625, %v769, %v776
        %v778 = vrot.slane %v773, 4
        %v780 = vshrl.u32 %v609, 16
        %v782 = vrot.slane %v780, 7
        %v783 = vshll.u32 %v609, 16
        %v785 = vor.u32 %v782, %v783
        %v786 = vrot.slane %v782, 4
        %v788 = vshrl.u32 %v610, 16
        %v790 = vrot.slane %v788, 7
        %v791 = vshll.u32 %v610, 16
        %v793 = vor.u32 %v790, %v791
        %v794 = vsel %vm625, %v786, %v793
        %v795 = vrot.slane %v790, 4
        %v797 = vshrl.u32 %v611, 16
        %v799 = vrot.slane %v797, 7
        %v800 = vshll.u32 %v611, 16
        %v802 = vor.u32 %v799, %v800
        %v803 = vrot.slane %v799, 4
        %v805 = vshrl.u32 %v612, 16
        %v807 = vrot.slane %v805, 7
        %v808 = vshll.u32 %v612, 16
        %v810 = vor.u32 %v807, %v808
        %v811 = vsel %vm625, %v803, %v810
        %v812 = vrot.slane %v807, 4
        %v814 = vshrl.u32 %v613, 16
        %v816 = vrot.slane %v814, 7
        %v817 = vshll.u32 %v613, 16
        %v819 = vor.u32 %v816, %v817
        %v820 = vrot.slane %v816, 4
        %v822 = vshrl.u32 %v614, 16
        %v824 = vrot.slane %v822, 7
        %v825 = vshll.u32 %v614, 16
        %v827 = vor.u32 %v824, %v825
        %v828 = vsel %vm625, %v820, %v827
        %v829 = vrot.slane %v824, 4
        %v831 = vshrl.u32 %v615, 16
        %v833 = vrot.slane %v831, 7
        %v834 = vshll.u32 %v615, 16
        %v836 = vor.u32 %v833, %v834
        %v837 = vrot.slane %v833, 4
        %v839 = vshrl.u32 %v616, 16
        %v841 = vrot.slane %v839, 7
        %v842 = vshll.u32 %v616, 16
        %v844 = vor.u32 %v841, %v842
        %v845 = vsel %vm625, %v837, %v844
        %v846 = vrot.slane %v841, 4
        %v848 = vshrl.u32 %v617, 16
        %v850 = vrot.slane %v848, 7
        %v851 = vshll.u32 %v617, 16
        %v853 = vor.u32 %v850, %v851
        %v854 = vrot.slane %v850, 4
        %v856 = vshrl.u32 %v618, 16
        %v858 = vrot.slane %v856, 7
        %v859 = vshll.u32 %v618, 16
        %v861 = vor.u32 %v858, %v859
        %v862 = vsel %vm625, %v854, %v861
        %v863 = vrot.slane %v858, 4
        %v865 = vshrl.u32 %v619, 16
        %v867 = vrot.slane %v865, 7
        %v868 = vshll.u32 %v619, 16
        %v870 = vor.u32 %v867, %v868
        %v871 = vrot.slane %v867, 4
        %v873 = vshrl.u32 %v620, 16
        %v875 = vrot.slane %v873, 7
        %v876 = vshll.u32 %v620, 16
        %v878 = vor.u32 %v875, %v876
        %v879 = vsel %vm625, %v871, %v878
        %v880 = vrot.slane %v875, 4
        %v882 = vshrl.u32 %v621, 16
        %v884 = vrot.slane %v882, 7
        %v885 = vshll.u32 %v621, 16
        %v887 = vor.u32 %v884, %v885
        %v888 = vrot.slane %v884, 4
        %v890 = vshrl.u32 %v622, 16
        %v892 = vrot.slane %v890, 7
        %v893 = vshll.u32 %v622, 16
        %v895 = vor.u32 %v892, %v893
        %v896 = vsel %vm625, %v888, %v895
        %v897 = vrot.slane %v892, 4
        %s946 = scalar_lea.vmem [#allocation2], 12
        %vm947 = vcmask 257024
        %vm948 = vsmask.f32 7938
        %vm949 = vmand %vm947, %vm948
        %v950 = vld [vmem:[%s946] sm:$0xf]
        %v951 = vsel %vm949, %v632, %v950
        %952 = vst [vmem:[%s946] sm:$0xf] %v951
        %953 = vst.msk [vmem:[%s946 + $0x4] sm:$0xf] %vm367, %v641
        %vm954 = vcmask 253952
        %vm955 = vmand %vm954, %vm623
        %v956 = vld [vmem:[%s946 + $0x8] sm:$0x1]
        %v957 = vsel %vm955, %v642, %v956
        %958 = vst [vmem:[%s946 + $0x8] sm:$0x1] %v957
        %v959 = vld [vmem:[%s946 + $0xc] sm:$0xf]
        %v960 = vsel %vm949, %v649, %v959
        %961 = vst [vmem:[%s946 + $0xc] sm:$0xf] %v960
        %962 = vst.msk [vmem:[%s946 + $0x10] sm:$0xf] %vm367, %v658
        %v963 = vld [vmem:[%s946 + $0x14] sm:$0x1]
        %v964 = vsel %vm955, %v659, %v963
        %965 = vst [vmem:[%s946 + $0x14] sm:$0x1] %v964
        %v966 = vld [vmem:[%s946 + $0x18] sm:$0xf]
        %v967 = vsel %vm949, %v666, %v966
        %968 = vst [vmem:[%s946 + $0x18] sm:$0xf] %v967
        %969 = vst.msk [vmem:[%s946 + $0x1c] sm:$0xf] %vm367, %v675
        %v970 = vld [vmem:[%s946 + $0x20] sm:$0x1]
        %v971 = vsel %vm955, %v676, %v970
        %972 = vst [vmem:[%s946 + $0x20] sm:$0x1] %v971
        %v973 = vld [vmem:[%s946 + $0x24] sm:$0xf]
        %v974 = vsel %vm949, %v683, %v973
        %975 = vst [vmem:[%s946 + $0x24] sm:$0xf] %v974
        %976 = vst.msk [vmem:[%s946 + $0x28] sm:$0xf] %vm367, %v692
        %v977 = vld [vmem:[%s946 + $0x2c] sm:$0x1]
        %v978 = vsel %vm955, %v693, %v977
        %979 = vst [vmem:[%s946 + $0x2c] sm:$0x1] %v978
        %v980 = vld [vmem:[%s946 + $0x30] sm:$0xf]
        %v981 = vsel %vm949, %v700, %v980
        %982 = vst [vmem:[%s946 + $0x30] sm:$0xf] %v981
        %983 = vst.msk [vmem:[%s946 + $0x34] sm:$0xf] %vm367, %v709
        %v984 = vld [vmem:[%s946 + $0x38] sm:$0x1]
        %v985 = vsel %vm955, %v710, %v984
        %986 = vst [vmem:[%s946 + $0x38] sm:$0x1] %v985
        %v987 = vld [vmem:[%s946 + $0x3c] sm:$0xf]
        %v988 = vsel %vm949, %v717, %v987
        %989 = vst [vmem:[%s946 + $0x3c] sm:$0xf] %v988
        %990 = vst.msk [vmem:[%s946 + $0x40] sm:$0xf] %vm367, %v726
        %v991 = vld [vmem:[%s946 + $0x44] sm:$0x1]
        %v992 = vsel %vm955, %v727, %v991
        %993 = vst [vmem:[%s946 + $0x44] sm:$0x1] %v992
        %v994 = vld [vmem:[%s946 + $0x48] sm:$0xf]
        %v995 = vsel %vm949, %v734, %v994
        %996 = vst [vmem:[%s946 + $0x48] sm:$0xf] %v995
        %997 = vst.msk [vmem:[%s946 + $0x4c] sm:$0xf] %vm367, %v743
        %v998 = vld [vmem:[%s946 + $0x50] sm:$0x1]
        %v999 = vsel %vm955, %v744, %v998
        %1000 = vst [vmem:[%s946 + $0x50] sm:$0x1] %v999
        %v1001 = vld [vmem:[%s946 + $0x54] sm:$0xf]
        %v1002 = vsel %vm949, %v751, %v1001
        %1003 = vst [vmem:[%s946 + $0x54] sm:$0xf] %v1002
        %1004 = vst.msk [vmem:[%s946 + $0x58] sm:$0xf] %vm367, %v760
        %v1005 = vld [vmem:[%s946 + $0x5c] sm:$0x1]
        %v1006 = vsel %vm955, %v761, %v1005
        %1007 = vst [vmem:[%s946 + $0x5c] sm:$0x1] %v1006
        %v1008 = vld [vmem:[%s946 + $0x60] sm:$0xf]
        %v1009 = vsel %vm949, %v768, %v1008
        %1010 = vst [vmem:[%s946 + $0x60] sm:$0xf] %v1009
        %1011 = vst.msk [vmem:[%s946 + $0x64] sm:$0xf] %vm367, %v777
        %v1012 = vld [vmem:[%s946 + $0x68] sm:$0x1]
        %v1013 = vsel %vm955, %v778, %v1012
        %1014 = vst [vmem:[%s946 + $0x68] sm:$0x1] %v1013
        %v1015 = vld [vmem:[%s946 + $0x6c] sm:$0xf]
        %v1016 = vsel %vm949, %v785, %v1015
        %1017 = vst [vmem:[%s946 + $0x6c] sm:$0xf] %v1016
        %1018 = vst.msk [vmem:[%s946 + $0x70] sm:$0xf] %vm367, %v794
        %v1019 = vld [vmem:[%s946 + $0x74] sm:$0x1]
        %v1020 = vsel %vm955, %v795, %v1019
        %1021 = vst [vmem:[%s946 + $0x74] sm:$0x1] %v1020
        %v1022 = vld [vmem:[%s946 + $0x78] sm:$0xf]
        %v1023 = vsel %vm949, %v802, %v1022
        %1024 = vst [vmem:[%s946 + $0x78] sm:$0xf] %v1023
        %1025 = vst.msk [vmem:[%s946 + $0x7c] sm:$0xf] %vm367, %v811
        %v1026 = vld [vmem:[%s946 + $0x80] sm:$0x1]
        %v1027 = vsel %vm955, %v812, %v1026
        %1028 = vst [vmem:[%s946 + $0x80] sm:$0x1] %v1027
        %v1029 = vld [vmem:[%s946 + $0x84] sm:$0xf]
        %v1030 = vsel %vm949, %v819, %v1029
        %1031 = vst [vmem:[%s946 + $0x84] sm:$0xf] %v1030
        %1032 = vst.msk [vmem:[%s946 + $0x88] sm:$0xf] %vm367, %v828
        %v1033 = vld [vmem:[%s946 + $0x8c] sm:$0x1]
        %v1034 = vsel %vm955, %v829, %v1033
        %1035 = vst [vmem:[%s946 + $0x8c] sm:$0x1] %v1034
        %v1036 = vld [vmem:[%s946 + $0x90] sm:$0xf]
        %v1037 = vsel %vm949, %v836, %v1036
        %1038 = vst [vmem:[%s946 + $0x90] sm:$0xf] %v1037
        %1039 = vst.msk [vmem:[%s946 + $0x94] sm:$0xf] %vm367, %v845
        %v1040 = vld [vmem:[%s946 + $0x98] sm:$0x1]
        %v1041 = vsel %vm955, %v846, %v1040
        %1042 = vst [vmem:[%s946 + $0x98] sm:$0x1] %v1041
        %v1043 = vld [vmem:[%s946 + $0x9c] sm:$0xf]
        %v1044 = vsel %vm949, %v853, %v1043
        %1045 = vst [vmem:[%s946 + $0x9c] sm:$0xf] %v1044
        %1046 = vst.msk [vmem:[%s946 + $0xa0] sm:$0xf] %vm367, %v862
        %v1047 = vld [vmem:[%s946 + $0xa4] sm:$0x1]
        %v1048 = vsel %vm955, %v863, %v1047
        %1049 = vst [vmem:[%s946 + $0xa4] sm:$0x1] %v1048
        %v1050 = vld [vmem:[%s946 + $0xa8] sm:$0xf]
        %v1051 = vsel %vm949, %v870, %v1050
        %1052 = vst [vmem:[%s946 + $0xa8] sm:$0xf] %v1051
        %1053 = vst.msk [vmem:[%s946 + $0xac] sm:$0xf] %vm367, %v879
        %v1054 = vld [vmem:[%s946 + $0xb0] sm:$0x1]
        %v1055 = vsel %vm955, %v880, %v1054
        %1056 = vst [vmem:[%s946 + $0xb0] sm:$0x1] %v1055
        %v1057 = vld [vmem:[%s946 + $0xb4] sm:$0xf]
        %v1058 = vsel %vm949, %v887, %v1057
        %1059 = vst [vmem:[%s946 + $0xb4] sm:$0xf] %v1058
        %1060 = vst.msk [vmem:[%s946 + $0xb8] sm:$0xf] %vm367, %v896
        %v1061 = vld [vmem:[%s946 + $0xbc] sm:$0x1]
        %v1062 = vsel %vm955, %v897, %v1061
        %1063 = vst [vmem:[%s946 + $0xbc] sm:$0x1] %v1062
      $region56: #{resnet_block_up.5} parent=51 // pred_fallthru
        _
      %s1064 = smul.u32 %s24, 16
      %s1065 = smul.u32 %s1064, 3
      %s1066 = smul.addr %s1065, 4
      %s1067 = scalar_lea.vmem [#allocation2], %s1066
      %v1068 = vld [vmem:[%s1067] sm:$0xf]
      %v1069 = vld [vmem:[%s1067 + $0x4] sm:$0xf]
      %v1070 = vld [vmem:[%s1067 + $0x8] sm:$0x1]
      %v1071 = vld [vmem:[%s1067 + $0xc] sm:$0xf]
      %v1072 = vld [vmem:[%s1067 + $0x10] sm:$0xf]
      %v1073 = vld [vmem:[%s1067 + $0x14] sm:$0x1]
      %v1074 = vld [vmem:[%s1067 + $0x18] sm:$0xf]
      %v1075 = vld [vmem:[%s1067 + $0x1c] sm:$0xf]
      %v1076 = vld [vmem:[%s1067 + $0x20] sm:$0x1]
      %v1077 = vld [vmem:[%s1067 + $0x24] sm:$0xf]
      %v1078 = vld [vmem:[%s1067 + $0x28] sm:$0xf]
      %v1079 = vld [vmem:[%s1067 + $0x2c] sm:$0x1]
      %v1080 = vld [vmem:[%s1067 + $0x30] sm:$0xf]
      %v1081 = vld [vmem:[%s1067 + $0x34] sm:$0xf]
      %v1082 = vld [vmem:[%s1067 + $0x38] sm:$0x1]
      %v1083 = vld [vmem:[%s1067 + $0x3c] sm:$0xf]
      %v1084 = vld [vmem:[%s1067 + $0x40] sm:$0xf]
      %v1085 = vld [vmem:[%s1067 + $0x44] sm:$0x1]
      %v1086 = vld [vmem:[%s1067 + $0x48] sm:$0xf]
      %v1087 = vld [vmem:[%s1067 + $0x4c] sm:$0xf]
      %v1088 = vld [vmem:[%s1067 + $0x50] sm:$0x1]
      %v1089 = vld [vmem:[%s1067 + $0x54] sm:$0xf]
      %v1090 = vld [vmem:[%s1067 + $0x58] sm:$0xf]
      %v1091 = vld [vmem:[%s1067 + $0x5c] sm:$0x1]
      %v1092 = vld [vmem:[%s1067 + $0x60] sm:$0xf]
      %v1093 = vld [vmem:[%s1067 + $0x64] sm:$0xf]
      %v1094 = vld [vmem:[%s1067 + $0x68] sm:$0x1]
      %v1095 = vld [vmem:[%s1067 + $0x6c] sm:$0xf]
      %v1096 = vld [vmem:[%s1067 + $0x70] sm:$0xf]
      %v1097 = vld [vmem:[%s1067 + $0x74] sm:$0x1]
      %v1098 = vld [vmem:[%s1067 + $0x78] sm:$0xf]
      %v1099 = vld [vmem:[%s1067 + $0x7c] sm:$0xf]
      %v1100 = vld [vmem:[%s1067 + $0x80] sm:$0x1]
      %v1101 = vld [vmem:[%s1067 + $0x84] sm:$0xf]
      %v1102 = vld [vmem:[%s1067 + $0x88] sm:$0xf]
      %v1103 = vld [vmem:[%s1067 + $0x8c] sm:$0x1]
      %v1104 = vld [vmem:[%s1067 + $0x90] sm:$0xf]
      %v1105 = vld [vmem:[%s1067 + $0x94] sm:$0xf]
      %v1106 = vld [vmem:[%s1067 + $0x98] sm:$0x1]
      %v1107 = vld [vmem:[%s1067 + $0x9c] sm:$0xf]
      %v1108 = vld [vmem:[%s1067 + $0xa0] sm:$0xf]
      %v1109 = vld [vmem:[%s1067 + $0xa4] sm:$0x1]
      %v1110 = vld [vmem:[%s1067 + $0xa8] sm:$0xf]
      %v1111 = vld [vmem:[%s1067 + $0xac] sm:$0xf]
      %v1112 = vld [vmem:[%s1067 + $0xb0] sm:$0x1]
      %v1113 = vld [vmem:[%s1067 + $0xb4] sm:$0xf]
      %v1114 = vld [vmem:[%s1067 + $0xb8] sm:$0xf]
      %v1115 = vld [vmem:[%s1067 + $0xbc] sm:$0x1]
      %v1116 = vld [vmem:[%s1067 + $0xc0] sm:$0xf]
      %v1117 = vld [vmem:[%s1067 + $0xc4] sm:$0xf]
      %v1118 = vld [vmem:[%s1067 + $0xc8] sm:$0x1]
      %v1119 = vld [vmem:[%s1067 + $0xcc] sm:$0xf]
      %v1120 = vld [vmem:[%s1067 + $0xd0] sm:$0xf]
      %v1121 = vld [vmem:[%s1067 + $0xd4] sm:$0x1]
      %v1122 = vld [vmem:[%s348] sm:$0xff]
      %v1123 = vld [vmem:[%s348 + $0x8] sm:$0xff]
      %v1124 = vld [vmem:[%s348 + $0x10] sm:$0xff]
      %v1125 = vld [vmem:[%s348 + $0x18] sm:$0xff]
      %v1126 = vld [vmem:[%s348 + $0x20] sm:$0xff]
      %v1127 = vld [vmem:[%s348 + $0x28] sm:$0xff]
      %v1128 = vld [vmem:[%s348 + $0x30] sm:$0xff]
      %v1129 = vld [vmem:[%s348 + $0x38] sm:$0xff]
      %v1130 = vld [vmem:[%s348 + $0x40] sm:$0xff]
      %v1131 = vld [vmem:[%s348 + $0x48] sm:$0xff]
      %v1132 = vld [vmem:[%s348 + $0x50] sm:$0xff]
      %v1133 = vld [vmem:[%s348 + $0x58] sm:$0xff]
      %v1134 = vld [vmem:[%s348 + $0x60] sm:$0xff]
      %v1135 = vld [vmem:[%s348 + $0x68] sm:$0xff]
      %v1136 = vld [vmem:[%s348 + $0x70] sm:$0xff]
      %v1137 = vld [vmem:[%s348 + $0x78] sm:$0xff]
      %v1138 = vld [vmem:[%s348 + $0x80] sm:$0xff]
      %v1139 = vld [vmem:[%s348 + $0x88] sm:$0xff]
      %v1140 = vld [vmem:[%s348 + $0x90] sm:$0xff]
      %v1141 = vld [vmem:[%s348 + $0x98] sm:$0xff]
      %v1142 = vld [vmem:[%s348 + $0xa0] sm:$0xff]
      %v1143 = vld [vmem:[%s348 + $0xa8] sm:$0xff]
      %v1144 = vld [vmem:[%s348 + $0xb0] sm:$0xff]
      %v1145 = vld [vmem:[%s348 + $0xb8] sm:$0xff]
      %v1146 = vld [vmem:[%s348 + $0xc0] sm:$0xff]
      %v1147 = vld [vmem:[%s348 + $0xc8] sm:$0xff]
      %v1148 = vld [vmem:[%s348 + $0xd0] sm:$0xff]
      %v1149 = vld [vmem:[%s348 + $0xd8] sm:$0xff]
      %v1150 = vld [vmem:[%s348 + $0xe0] sm:$0xff]
      %v1151 = vld [vmem:[%s348 + $0xe8] sm:$0xff]
      %v1152 = vld [vmem:[%s348 + $0xf0] sm:$0xff]
      %v1153 = vld [vmem:[%s348 + $0xf8] sm:$0xff]
      %v1154 = vpack.c.bf16 %v1123, %v1122
      %v1155 = vpack.c.bf16 %v1125, %v1124
      %v1156 = vpack.c.bf16 %v1127, %v1126
      %v1157 = vpack.c.bf16 %v1129, %v1128
      %v1158 = vpack.c.bf16 %v1131, %v1130
      %v1159 = vpack.c.bf16 %v1133, %v1132
      %v1160 = vpack.c.bf16 %v1135, %v1134
      %v1161 = vpack.c.bf16 %v1137, %v1136
      %v1162 = vpack.c.bf16 %v1139, %v1138
      %v1163 = vpack.c.bf16 %v1141, %v1140
      %v1164 = vpack.c.bf16 %v1143, %v1142
      %v1165 = vpack.c.bf16 %v1145, %v1144
      %v1166 = vpack.c.bf16 %v1147, %v1146
      %v1167 = vpack.c.bf16 %v1149, %v1148
      %v1168 = vpack.c.bf16 %v1151, %v1150
      %v1169 = vpack.c.bf16 %v1153, %v1152
      %v1170 = vld [vmem:[%s6] sm:$0x3]
      %v1171 = vld [vmem:[%s7] sm:$0x1]
      %v1173 = vperm.slane %v1171, 0
      %vm1175 = vcmask 31744
      %v1177 = vsel %vm1175, %v1154, 0
      %v1180 = vsel %vm1175, %v1155, 0
      %v1183 = vsel %vm1175, %v1156, 0
      %v1186 = vsel %vm1175, %v1157, 0
      %v1189 = vsel %vm1175, %v1158, 0
      %v1192 = vsel %vm1175, %v1159, 0
      %v1195 = vsel %vm1175, %v1160, 0
      %v1198 = vsel %vm1175, %v1161, 0
      %v1201 = vsel %vm1175, %v1162, 0
      %v1204 = vsel %vm1175, %v1163, 0
      %v1207 = vsel %vm1175, %v1164, 0
      %v1210 = vsel %vm1175, %v1165, 0
      %v1213 = vsel %vm1175, %v1166, 0
      %v1216 = vsel %vm1175, %v1167, 0
      %v1219 = vsel %vm1175, %v1168, 0
      %v1222 = vsel %vm1175, %v1169, 0
      %vm1224 = vcmask 1041408
      %v1226 = vsel %vm1224, %v1170, 0
      %1228 = vmatpush.bf16.msra.mxu0 0
      %1229 = vmatpush.bf16.msra.mxu0 0
      %1230 = vmatpush.bf16.msra.mxu0 0
      %1231 = vmatpush.bf16.msra.mxu0 0
      %1232 = vmatpush.bf16.msra.mxu0 0
      %1233 = vmatpush.bf16.msra.mxu0 0
      %1234 = vmatpush.bf16.msra.mxu0 0
      %1235 = vmatpush.bf16.msra.mxu0 %v1226
      %1236 = vmatmul.bf16.gmra.mxu0 %v1177
      %v1237 = vpop.f32.mrf.mxu0
      %v1238 = vadd.f32 %v1173, %v1237
      %v1239 = vpop.f32.mrf.mxu0
      %v1240 = vadd.f32 %v1173, %v1239
      %1241 = vmatmul.bf16.gmra.mxu0 %v1180
      %v1242 = vpop.f32.mrf.mxu0
      %v1243 = vadd.f32 %v1173, %v1242
      %v1244 = vpop.f32.mrf.mxu0
      %v1245 = vadd.f32 %v1173, %v1244
      %1246 = vmatmul.bf16.gmra.mxu0 %v1183
      %v1247 = vpop.f32.mrf.mxu0
      %v1248 = vadd.f32 %v1173, %v1247
      %v1249 = vpop.f32.mrf.mxu0
      %v1250 = vadd.f32 %v1173, %v1249
      %1251 = vmatmul.bf16.gmra.mxu0 %v1186
      %v1252 = vpop.f32.mrf.mxu0
      %v1253 = vadd.f32 %v1173, %v1252
      %v1254 = vpop.f32.mrf.mxu0
      %v1255 = vadd.f32 %v1173, %v1254
      %1256 = vmatmul.bf16.gmra.mxu0 %v1189
      %v1257 = vpop.f32.mrf.mxu0
      %v1258 = vadd.f32 %v1173, %v1257
      %v1259 = vpop.f32.mrf.mxu0
      %v1260 = vadd.f32 %v1173, %v1259
      %1261 = vmatmul.bf16.gmra.mxu0 %v1192
      %v1262 = vpop.f32.mrf.mxu0
      %v1263 = vadd.f32 %v1173, %v1262
      %v1264 = vpop.f32.mrf.mxu0
      %v1265 = vadd.f32 %v1173, %v1264
      %1266 = vmatmul.bf16.gmra.mxu0 %v1195
      %v1267 = vpop.f32.mrf.mxu0
      %v1268 = vadd.f32 %v1173, %v1267
      %v1269 = vpop.f32.mrf.mxu0
      %v1270 = vadd.f32 %v1173, %v1269
      %1271 = vmatmul.bf16.gmra.mxu0 %v1198
      %v1272 = vpop.f32.mrf.mxu0
      %v1273 = vadd.f32 %v1173, %v1272
      %v1274 = vpop.f32.mrf.mxu0
      %v1275 = vadd.f32 %v1173, %v1274
      %1276 = vmatmul.bf16.gmra.mxu0 %v1201
      %v1277 = vpop.f32.mrf.mxu0
      %v1278 = vadd.f32 %v1173, %v1277
      %v1279 = vpop.f32.mrf.mxu0
      %v1280 = vadd.f32 %v1173, %v1279
      %1281 = vmatmul.bf16.gmra.mxu0 %v1204
      %v1282 = vpop.f32.mrf.mxu0
      %v1283 = vadd.f32 %v1173, %v1282
      %v1284 = vpop.f32.mrf.mxu0
      %v1285 = vadd.f32 %v1173, %v1284
      %1286 = vmatmul.bf16.gmra.mxu0 %v1207
      %v1287 = vpop.f32.mrf.mxu0
      %v1288 = vadd.f32 %v1173, %v1287
      %v1289 = vpop.f32.mrf.mxu0
      %v1290 = vadd.f32 %v1173, %v1289
      %1291 = vmatmul.bf16.gmra.mxu0 %v1210
      %v1292 = vpop.f32.mrf.mxu0
      %v1293 = vadd.f32 %v1173, %v1292
      %v1294 = vpop.f32.mrf.mxu0
      %v1295 = vadd.f32 %v1173, %v1294
      %1296 = vmatmul.bf16.gmra.mxu0 %v1213
      %v1297 = vpop.f32.mrf.mxu0
      %v1298 = vadd.f32 %v1173, %v1297
      %v1299 = vpop.f32.mrf.mxu0
      %v1300 = vadd.f32 %v1173, %v1299
      %1301 = vmatmul.bf16.gmra.mxu0 %v1216
      %v1302 = vpop.f32.mrf.mxu0
      %v1303 = vadd.f32 %v1173, %v1302
      %v1304 = vpop.f32.mrf.mxu0
      %v1305 = vadd.f32 %v1173, %v1304
      %1306 = vmatmul.bf16.gmra.mxu0 %v1219
      %v1307 = vpop.f32.mrf.mxu0
      %v1308 = vadd.f32 %v1173, %v1307
      %v1309 = vpop.f32.mrf.mxu0
      %v1310 = vadd.f32 %v1173, %v1309
      %1311 = vmatmul.bf16.gmra.mxu0 %v1222
      %v1312 = vpop.f32.mrf.mxu0
      %v1313 = vadd.f32 %v1173, %v1312
      %v1314 = vpop.f32.mrf.mxu0
      %v1315 = vadd.f32 %v1173, %v1314
      %1316 = vdwg.mxu0
      %v1317 = vld [vmem:[%s5] sm:$0x1]
      %v1319 = vperm.slane %v1317, 0
      %v1321 = vadd.f32 %v1238, %v1319
      %v1322 = vadd.f32 %v1240, %v1319
      %v1323 = vadd.f32 %v1243, %v1319
      %v1324 = vadd.f32 %v1245, %v1319
      %v1325 = vadd.f32 %v1248, %v1319
      %v1326 = vadd.f32 %v1250, %v1319
      %v1327 = vadd.f32 %v1253, %v1319
      %v1328 = vadd.f32 %v1255, %v1319
      %v1329 = vadd.f32 %v1258, %v1319
      %v1330 = vadd.f32 %v1260, %v1319
      %v1331 = vadd.f32 %v1263, %v1319
      %v1332 = vadd.f32 %v1265, %v1319
      %v1333 = vadd.f32 %v1268, %v1319
      %v1334 = vadd.f32 %v1270, %v1319
      %v1335 = vadd.f32 %v1273, %v1319
      %v1336 = vadd.f32 %v1275, %v1319
      %v1337 = vadd.f32 %v1278, %v1319
      %v1338 = vadd.f32 %v1280, %v1319
      %v1339 = vadd.f32 %v1283, %v1319
      %v1340 = vadd.f32 %v1285, %v1319
      %v1341 = vadd.f32 %v1288, %v1319
      %v1342 = vadd.f32 %v1290, %v1319
      %v1343 = vadd.f32 %v1293, %v1319
      %v1344 = vadd.f32 %v1295, %v1319
      %v1345 = vadd.f32 %v1298, %v1319
      %v1346 = vadd.f32 %v1300, %v1319
      %v1347 = vadd.f32 %v1303, %v1319
      %v1348 = vadd.f32 %v1305, %v1319
      %v1349 = vadd.f32 %v1308, %v1319
      %v1350 = vadd.f32 %v1310, %v1319
      %v1351 = vadd.f32 %v1313, %v1319
      %v1352 = vadd.f32 %v1315, %v1319
      %vm1353 = vsmask.f32 3328
      %vm1354 = vsmask.f32 7440
      %vm1355 = vmor %vm1353, %vm1354
      %v1357 = vshrl.u32 %v1068, 16
      %v1359 = vrot.slane %v1357, 4
      %v1360 = vshll.u32 %v1068, 16
      %v1362 = vrot.slane %v1360, 5
      %v1363 = vor.u32 %v1359, %v1362
      %v1364 = vrot.slane %v1363, 4
      %v1366 = vshll.u32 %v1069, 16
      %v1368 = vrot.slane %v1366, 5
      %v1369 = vsel %vm1355, %v1364, %v1368
      %v1370 = vshrl.u32 %v1069, 16
      %v1372 = vrot.slane %v1370, 4
      %v1373 = vor.u32 %v1372, %v1368
      %v1374 = vrot.slane %v1373, 4
      %v1376 = vshll.u32 %v1070, 16
      %v1378 = vrot.slane %v1376, 5
      %v1379 = vsel %vm1355, %v1374, %v1378
      %v1381 = vshrl.u32 %v1071, 16
      %v1383 = vrot.slane %v1381, 4
      %v1384 = vshll.u32 %v1071, 16
      %v1386 = vrot.slane %v1384, 5
      %v1387 = vor.u32 %v1383, %v1386
      %v1388 = vrot.slane %v1387, 4
      %v1390 = vshll.u32 %v1072, 16
      %v1392 = vrot.slane %v1390, 5
      %v1393 = vsel %vm1355, %v1388, %v1392
      %v1394 = vshrl.u32 %v1072, 16
      %v1396 = vrot.slane %v1394, 4
      %v1397 = vor.u32 %v1396, %v1392
      %v1398 = vrot.slane %v1397, 4
      %v1400 = vshll.u32 %v1073, 16
      %v1402 = vrot.slane %v1400, 5
      %v1403 = vsel %vm1355, %v1398, %v1402
      %v1405 = vshrl.u32 %v1074, 16
      %v1407 = vrot.slane %v1405, 4
      %v1408 = vshll.u32 %v1074, 16
      %v1410 = vrot.slane %v1408, 5
      %v1411 = vor.u32 %v1407, %v1410
      %v1412 = vrot.slane %v1411, 4
      %v1414 = vshll.u32 %v1075, 16
      %v1416 = vrot.slane %v1414, 5
      %v1417 = vsel %vm1355, %v1412, %v1416
      %v1418 = vshrl.u32 %v1075, 16
      %v1420 = vrot.slane %v1418, 4
      %v1421 = vor.u32 %v1420, %v1416
      %v1422 = vrot.slane %v1421, 4
      %v1424 = vshll.u32 %v1076, 16
      %v1426 = vrot.slane %v1424, 5
      %v1427 = vsel %vm1355, %v1422, %v1426
      %v1429 = vshrl.u32 %v1077, 16
      %v1431 = vrot.slane %v1429, 4
      %v1432 = vshll.u32 %v1077, 16
      %v1434 = vrot.slane %v1432, 5
      %v1435 = vor.u32 %v1431, %v1434
      %v1436 = vrot.slane %v1435, 4
      %v1438 = vshll.u32 %v1078, 16
      %v1440 = vrot.slane %v1438, 5
      %v1441 = vsel %vm1355, %v1436, %v1440
      %v1442 = vshrl.u32 %v1078, 16
      %v1444 = vrot.slane %v1442, 4
      %v1445 = vor.u32 %v1444, %v1440
      %v1446 = vrot.slane %v1445, 4
      %v1448 = vshll.u32 %v1079, 16
      %v1450 = vrot.slane %v1448, 5
      %v1451 = vsel %vm1355, %v1446, %v1450
      %v1453 = vshrl.u32 %v1080, 16
      %v1455 = vrot.slane %v1453, 4
      %v1456 = vshll.u32 %v1080, 16
      %v1458 = vrot.slane %v1456, 5
      %v1459 = vor.u32 %v1455, %v1458
      %v1460 = vrot.slane %v1459, 4
      %v1462 = vshll.u32 %v1081, 16
      %v1464 = vrot.slane %v1462, 5
      %v1465 = vsel %vm1355, %v1460, %v1464
      %v1466 = vshrl.u32 %v1081, 16
      %v1468 = vrot.slane %v1466, 4
      %v1469 = vor.u32 %v1468, %v1464
      %v1470 = vrot.slane %v1469, 4
      %v1472 = vshll.u32 %v1082, 16
      %v1474 = vrot.slane %v1472, 5
      %v1475 = vsel %vm1355, %v1470, %v1474
      %v1477 = vshrl.u32 %v1083, 16
      %v1479 = vrot.slane %v1477, 4
      %v1480 = vshll.u32 %v1083, 16
      %v1482 = vrot.slane %v1480, 5
      %v1483 = vor.u32 %v1479, %v1482
      %v1484 = vrot.slane %v1483, 4
      %v1486 = vshll.u32 %v1084, 16
      %v1488 = vrot.slane %v1486, 5
      %v1489 = vsel %vm1355, %v1484, %v1488
      %v1490 = vshrl.u32 %v1084, 16
      %v1492 = vrot.slane %v1490, 4
      %v1493 = vor.u32 %v1492, %v1488
      %v1494 = vrot.slane %v1493, 4
      %v1496 = vshll.u32 %v1085, 16
      %v1498 = vrot.slane %v1496, 5
      %v1499 = vsel %vm1355, %v1494, %v1498
      %v1501 = vshrl.u32 %v1086, 16
      %v1503 = vrot.slane %v1501, 4
      %v1504 = vshll.u32 %v1086, 16
      %v1506 = vrot.slane %v1504, 5
      %v1507 = vor.u32 %v1503, %v1506
      %v1508 = vrot.slane %v1507, 4
      %v1510 = vshll.u32 %v1087, 16
      %v1512 = vrot.slane %v1510, 5
      %v1513 = vsel %vm1355, %v1508, %v1512
      %v1514 = vshrl.u32 %v1087, 16
      %v1516 = vrot.slane %v1514, 4
      %v1517 = vor.u32 %v1516, %v1512
      %v1518 = vrot.slane %v1517, 4
      %v1520 = vshll.u32 %v1088, 16
      %v1522 = vrot.slane %v1520, 5
      %v1523 = vsel %vm1355, %v1518, %v1522
      %v1525 = vshrl.u32 %v1089, 16
      %v1527 = vrot.slane %v1525, 4
      %v1528 = vshll.u32 %v1089, 16
      %v1530 = vrot.slane %v1528, 5
      %v1531 = vor.u32 %v1527, %v1530
      %v1532 = vrot.slane %v1531, 4
      %v1534 = vshll.u32 %v1090, 16
      %v1536 = vrot.slane %v1534, 5
      %v1537 = vsel %vm1355, %v1532, %v1536
      %v1538 = vshrl.u32 %v1090, 16
      %v1540 = vrot.slane %v1538, 4
      %v1541 = vor.u32 %v1540, %v1536
      %v1542 = vrot.slane %v1541, 4
      %v1544 = vshll.u32 %v1091, 16
      %v1546 = vrot.slane %v1544, 5
      %v1547 = vsel %vm1355, %v1542, %v1546
      %v1549 = vshrl.u32 %v1092, 16
      %v1551 = vrot.slane %v1549, 4
      %v1552 = vshll.u32 %v1092, 16
      %v1554 = vrot.slane %v1552, 5
      %v1555 = vor.u32 %v1551, %v1554
      %v1556 = vrot.slane %v1555, 4
      %v1558 = vshll.u32 %v1093, 16
      %v1560 = vrot.slane %v1558, 5
      %v1561 = vsel %vm1355, %v1556, %v1560
      %v1562 = vshrl.u32 %v1093, 16
      %v1564 = vrot.slane %v1562, 4
      %v1565 = vor.u32 %v1564, %v1560
      %v1566 = vrot.slane %v1565, 4
      %v1568 = vshll.u32 %v1094, 16
      %v1570 = vrot.slane %v1568, 5
      %v1571 = vsel %vm1355, %v1566, %v1570
      %v1573 = vshrl.u32 %v1095, 16
      %v1575 = vrot.slane %v1573, 4
      %v1576 = vshll.u32 %v1095, 16
      %v1578 = vrot.slane %v1576, 5
      %v1579 = vor.u32 %v1575, %v1578
      %v1580 = vrot.slane %v1579, 4
      %v1582 = vshll.u32 %v1096, 16
      %v1584 = vrot.slane %v1582, 5
      %v1585 = vsel %vm1355, %v1580, %v1584
      %v1586 = vshrl.u32 %v1096, 16
      %v1588 = vrot.slane %v1586, 4
      %v1589 = vor.u32 %v1588, %v1584
      %v1590 = vrot.slane %v1589, 4
      %v1592 = vshll.u32 %v1097, 16
      %v1594 = vrot.slane %v1592, 5
      %v1595 = vsel %vm1355, %v1590, %v1594
      %v1597 = vshrl.u32 %v1098, 16
      %v1599 = vrot.slane %v1597, 4
      %v1600 = vshll.u32 %v1098, 16
      %v1602 = vrot.slane %v1600, 5
      %v1603 = vor.u32 %v1599, %v1602
      %v1604 = vrot.slane %v1603, 4
      %v1606 = vshll.u32 %v1099, 16
      %v1608 = vrot.slane %v1606, 5
      %v1609 = vsel %vm1355, %v1604, %v1608
      %v1610 = vshrl.u32 %v1099, 16
      %v1612 = vrot.slane %v1610, 4
      %v1613 = vor.u32 %v1612, %v1608
      %v1614 = vrot.slane %v1613, 4
      %v1616 = vshll.u32 %v1100, 16
      %v1618 = vrot.slane %v1616, 5
      %v1619 = vsel %vm1355, %v1614, %v1618
      %v1621 = vshrl.u32 %v1101, 16
      %v1623 = vrot.slane %v1621, 4
      %v1624 = vshll.u32 %v1101, 16
      %v1626 = vrot.slane %v1624, 5
      %v1627 = vor.u32 %v1623, %v1626
      %v1628 = vrot.slane %v1627, 4
      %v1630 = vshll.u32 %v1102, 16
      %v1632 = vrot.slane %v1630, 5
      %v1633 = vsel %vm1355, %v1628, %v1632
      %v1634 = vshrl.u32 %v1102, 16
      %v1636 = vrot.slane %v1634, 4
      %v1637 = vor.u32 %v1636, %v1632
      %v1638 = vrot.slane %v1637, 4
      %v1640 = vshll.u32 %v1103, 16
      %v1642 = vrot.slane %v1640, 5
      %v1643 = vsel %vm1355, %v1638, %v1642
      %v1645 = vshrl.u32 %v1104, 16
      %v1647 = vrot.slane %v1645, 4
      %v1648 = vshll.u32 %v1104, 16
      %v1650 = vrot.slane %v1648, 5
      %v1651 = vor.u32 %v1647, %v1650
      %v1652 = vrot.slane %v1651, 4
      %v1654 = vshll.u32 %v1105, 16
      %v1656 = vrot.slane %v1654, 5
      %v1657 = vsel %vm1355, %v1652, %v1656
      %v1658 = vshrl.u32 %v1105, 16
      %v1660 = vrot.slane %v1658, 4
      %v1661 = vor.u32 %v1660, %v1656
      %v1662 = vrot.slane %v1661, 4
      %v1664 = vshll.u32 %v1106, 16
      %v1666 = vrot.slane %v1664, 5
      %v1667 = vsel %vm1355, %v1662, %v1666
      %v1669 = vshrl.u32 %v1107, 16
      %v1671 = vrot.slane %v1669, 4
      %v1672 = vshll.u32 %v1107, 16
      %v1674 = vrot.slane %v1672, 5
      %v1675 = vor.u32 %v1671, %v1674
      %v1676 = vrot.slane %v1675, 4
      %v1678 = vshll.u32 %v1108, 16
      %v1680 = vrot.slane %v1678, 5
      %v1681 = vsel %vm1355, %v1676, %v1680
      %v1682 = vshrl.u32 %v1108, 16
      %v1684 = vrot.slane %v1682, 4
      %v1685 = vor.u32 %v1684, %v1680
      %v1686 = vrot.slane %v1685, 4
      %v1688 = vshll.u32 %v1109, 16
      %v1690 = vrot.slane %v1688, 5
      %v1691 = vsel %vm1355, %v1686, %v1690
      %v1693 = vshrl.u32 %v1110, 16
      %v1695 = vrot.slane %v1693, 4
      %v1696 = vshll.u32 %v1110, 16
      %v1698 = vrot.slane %v1696, 5
      %v1699 = vor.u32 %v1695, %v1698
      %v1700 = vrot.slane %v1699, 4
      %v1702 = vshll.u32 %v1111, 16
      %v1704 = vrot.slane %v1702, 5
      %v1705 = vsel %vm1355, %v1700, %v1704
      %v1706 = vshrl.u32 %v1111, 16
      %v1708 = vrot.slane %v1706, 4
      %v1709 = vor.u32 %v1708, %v1704
      %v1710 = vrot.slane %v1709, 4
      %v1712 = vshll.u32 %v1112, 16
      %v1714 = vrot.slane %v1712, 5
      %v1715 = vsel %vm1355, %v1710, %v1714
      %v1717 = vshrl.u32 %v1113, 16
      %v1719 = vrot.slane %v1717, 4
      %v1720 = vshll.u32 %v1113, 16
      %v1722 = vrot.slane %v1720, 5
      %v1723 = vor.u32 %v1719, %v1722
      %v1724 = vrot.slane %v1723, 4
      %v1726 = vshll.u32 %v1114, 16
      %v1728 = vrot.slane %v1726, 5
      %v1729 = vsel %vm1355, %v1724, %v1728
      %v1730 = vshrl.u32 %v1114, 16
      %v1732 = vrot.slane %v1730, 4
      %v1733 = vor.u32 %v1732, %v1728
      %v1734 = vrot.slane %v1733, 4
      %v1736 = vshll.u32 %v1115, 16
      %v1738 = vrot.slane %v1736, 5
      %v1739 = vsel %vm1355, %v1734, %v1738
      %vm1788 = vcmask 1042432
      %vm1789 = vcmask 1046532
      %vm1790 = vmor %vm1788, %vm1789
      %v1791 = vrot.slane %v1068, 5
      %v1792 = vrot.slane %v1791, 4
      %v1793 = vrot.slane %v1069, 5
      %v1794 = vsel %vm1790, %v1792, %v1793
      %v1795 = vrot.slane %v1793, 4
      %v1796 = vrot.slane %v1070, 5
      %v1797 = vsel %vm1790, %v1795, %v1796
      %v1798 = vrot.slane %v1071, 5
      %v1799 = vrot.slane %v1798, 4
      %v1800 = vrot.slane %v1072, 5
      %v1801 = vsel %vm1790, %v1799, %v1800
      %v1802 = vrot.slane %v1800, 4
      %v1803 = vrot.slane %v1073, 5
      %v1804 = vsel %vm1790, %v1802, %v1803
      %v1805 = vrot.slane %v1074, 5
      %v1806 = vrot.slane %v1805, 4
      %v1807 = vrot.slane %v1075, 5
      %v1808 = vsel %vm1790, %v1806, %v1807
      %v1809 = vrot.slane %v1807, 4
      %v1810 = vrot.slane %v1076, 5
      %v1811 = vsel %vm1790, %v1809, %v1810
      %v1812 = vrot.slane %v1077, 5
      %v1813 = vrot.slane %v1812, 4
      %v1814 = vrot.slane %v1078, 5
      %v1815 = vsel %vm1790, %v1813, %v1814
      %v1816 = vrot.slane %v1814, 4
      %v1817 = vrot.slane %v1079, 5
      %v1818 = vsel %vm1790, %v1816, %v1817
      %v1819 = vrot.slane %v1080, 5
      %v1820 = vrot.slane %v1819, 4
      %v1821 = vrot.slane %v1081, 5
      %v1822 = vsel %vm1790, %v1820, %v1821
      %v1823 = vrot.slane %v1821, 4
      %v1824 = vrot.slane %v1082, 5
      %v1825 = vsel %vm1790, %v1823, %v1824
      %v1826 = vrot.slane %v1083, 5
      %v1827 = vrot.slane %v1826, 4
      %v1828 = vrot.slane %v1084, 5
      %v1829 = vsel %vm1790, %v1827, %v1828
      %v1830 = vrot.slane %v1828, 4
      %v1831 = vrot.slane %v1085, 5
      %v1832 = vsel %vm1790, %v1830, %v1831
      %v1833 = vrot.slane %v1086, 5
      %v1834 = vrot.slane %v1833, 4
      %v1835 = vrot.slane %v1087, 5
      %v1836 = vsel %vm1790, %v1834, %v1835
      %v1837 = vrot.slane %v1835, 4
      %v1838 = vrot.slane %v1088, 5
      %v1839 = vsel %vm1790, %v1837, %v1838
      %v1840 = vrot.slane %v1089, 5
      %v1841 = vrot.slane %v1840, 4
      %v1842 = vrot.slane %v1090, 5
      %v1843 = vsel %vm1790, %v1841, %v1842
      %v1844 = vrot.slane %v1842, 4
      %v1845 = vrot.slane %v1091, 5
      %v1846 = vsel %vm1790, %v1844, %v1845
      %v1847 = vrot.slane %v1092, 5
      %v1848 = vrot.slane %v1847, 4
      %v1849 = vrot.slane %v1093, 5
      %v1850 = vsel %vm1790, %v1848, %v1849
      %v1851 = vrot.slane %v1849, 4
      %v1852 = vrot.slane %v1094, 5
      %v1853 = vsel %vm1790, %v1851, %v1852
      %v1854 = vrot.slane %v1095, 5
      %v1855 = vrot.slane %v1854, 4
      %v1856 = vrot.slane %v1096, 5
      %v1857 = vsel %vm1790, %v1855, %v1856
      %v1858 = vrot.slane %v1856, 4
      %v1859 = vrot.slane %v1097, 5
      %v1860 = vsel %vm1790, %v1858, %v1859
      %v1861 = vrot.slane %v1098, 5
      %v1862 = vrot.slane %v1861, 4
      %v1863 = vrot.slane %v1099, 5
      %v1864 = vsel %vm1790, %v1862, %v1863
      %v1865 = vrot.slane %v1863, 4
      %v1866 = vrot.slane %v1100, 5
      %v1867 = vsel %vm1790, %v1865, %v1866
      %v1868 = vrot.slane %v1101, 5
      %v1869 = vrot.slane %v1868, 4
      %v1870 = vrot.slane %v1102, 5
      %v1871 = vsel %vm1790, %v1869, %v1870
      %v1872 = vrot.slane %v1870, 4
      %v1873 = vrot.slane %v1103, 5
      %v1874 = vsel %vm1790, %v1872, %v1873
      %v1875 = vrot.slane %v1104, 5
      %v1876 = vrot.slane %v1875, 4
      %v1877 = vrot.slane %v1105, 5
      %v1878 = vsel %vm1790, %v1876, %v1877
      %v1879 = vrot.slane %v1877, 4
      %v1880 = vrot.slane %v1106, 5
      %v1881 = vsel %vm1790, %v1879, %v1880
      %v1882 = vrot.slane %v1107, 5
      %v1883 = vrot.slane %v1882, 4
      %v1884 = vrot.slane %v1108, 5
      %v1885 = vsel %vm1790, %v1883, %v1884
      %v1886 = vrot.slane %v1884, 4
      %v1887 = vrot.slane %v1109, 5
      %v1888 = vsel %vm1790, %v1886, %v1887
      %v1889 = vrot.slane %v1110, 5
      %v1890 = vrot.slane %v1889, 4
      %v1891 = vrot.slane %v1111, 5
      %v1892 = vsel %vm1790, %v1890, %v1891
      %v1893 = vrot.slane %v1891, 4
      %v1894 = vrot.slane %v1112, 5
      %v1895 = vsel %vm1790, %v1893, %v1894
      %v1896 = vrot.slane %v1113, 5
      %v1897 = vrot.slane %v1896, 4
      %v1898 = vrot.slane %v1114, 5
      %v1899 = vsel %vm1790, %v1897, %v1898
      %v1900 = vrot.slane %v1898, 4
      %v1901 = vrot.slane %v1115, 5
      %v1902 = vsel %vm1790, %v1900, %v1901
      %v1904 = vshrl.u32 %v1116, 16
      %v1906 = vrot.slane %v1904, 4
      %v1907 = vshll.u32 %v1116, 16
      %v1909 = vrot.slane %v1907, 5
      %v1910 = vor.u32 %v1906, %v1909
      %v1911 = vrot.slane %v1910, 4
      %v1913 = vshll.u32 %v1117, 16
      %v1915 = vrot.slane %v1913, 5
      %v1916 = vsel %vm1355, %v1911, %v1915
      %v1917 = vshrl.u32 %v1117, 16
      %v1919 = vrot.slane %v1917, 4
      %v1920 = vor.u32 %v1919, %v1915
      %v1921 = vrot.slane %v1920, 4
      %v1923 = vshll.u32 %v1118, 16
      %v1925 = vrot.slane %v1923, 5
      %v1926 = vsel %vm1355, %v1921, %v1925
      %v1930 = vrot.slane %v1116, 5
      %v1931 = vrot.slane %v1930, 4
      %v1932 = vrot.slane %v1117, 5
      %v1933 = vsel %vm1790, %v1931, %v1932
      %v1934 = vrot.slane %v1932, 4
      %v1935 = vrot.slane %v1118, 5
      %v1936 = vsel %vm1790, %v1934, %v1935
      %v1938 = vshrl.u32 %v1119, 16
      %v1940 = vrot.slane %v1938, 4
      %v1941 = vshll.u32 %v1119, 16
      %v1943 = vrot.slane %v1941, 5
      %v1944 = vor.u32 %v1940, %v1943
      %v1945 = vrot.slane %v1944, 4
      %v1947 = vshll.u32 %v1120, 16
      %v1949 = vrot.slane %v1947, 5
      %v1950 = vsel %vm1355, %v1945, %v1949
      %v1951 = vshrl.u32 %v1120, 16
      %v1953 = vrot.slane %v1951, 4
      %v1954 = vor.u32 %v1953, %v1949
      %v1955 = vrot.slane %v1954, 4
      %v1957 = vshll.u32 %v1121, 16
      %v1959 = vrot.slane %v1957, 5
      %v1960 = vsel %vm1355, %v1955, %v1959
      %v1964 = vrot.slane %v1119, 5
      %v1965 = vrot.slane %v1964, 4
      %v1966 = vrot.slane %v1120, 5
      %v1967 = vsel %vm1790, %v1965, %v1966
      %v1968 = vrot.slane %v1966, 4
      %v1969 = vrot.slane %v1121, 5
      %v1970 = vsel %vm1790, %v1968, %v1969
      %v1971 = vunpack.c.l.b16 %v1068
      %v1972 = vunpack.c.l.b16 %v1069
      %v1973 = vunpack.c.l.b16 %v1071
      %v1974 = vunpack.c.l.b16 %v1072
      %v1975 = vunpack.c.l.b16 %v1074
      %v1976 = vunpack.c.l.b16 %v1075
      %v1977 = vunpack.c.l.b16 %v1077
      %v1978 = vunpack.c.l.b16 %v1078
      %v1979 = vunpack.c.l.b16 %v1080
      %v1980 = vunpack.c.l.b16 %v1081
      %v1981 = vunpack.c.l.b16 %v1083
      %v1982 = vunpack.c.l.b16 %v1084
      %v1983 = vunpack.c.l.b16 %v1086
      %v1984 = vunpack.c.l.b16 %v1087
      %v1985 = vunpack.c.l.b16 %v1089
      %v1986 = vunpack.c.l.b16 %v1090
      %v1987 = vunpack.c.l.b16 %v1092
      %v1988 = vunpack.c.l.b16 %v1093
      %v1989 = vunpack.c.l.b16 %v1095
      %v1990 = vunpack.c.l.b16 %v1096
      %v1991 = vunpack.c.l.b16 %v1098
      %v1992 = vunpack.c.l.b16 %v1099
      %v1993 = vunpack.c.l.b16 %v1101
      %v1994 = vunpack.c.l.b16 %v1102
      %v1995 = vunpack.c.l.b16 %v1104
      %v1996 = vunpack.c.l.b16 %v1105
      %v1997 = vunpack.c.l.b16 %v1107
      %v1998 = vunpack.c.l.b16 %v1108
      %v1999 = vunpack.c.l.b16 %v1110
      %v2000 = vunpack.c.l.b16 %v1111
      %v2001 = vunpack.c.l.b16 %v1113
      %v2002 = vunpack.c.l.b16 %v1114
      %v2003 = vpack.c.b16 %v1972, %v1971
      %v2004 = vpack.c.b16 %v1974, %v1973
      %v2005 = vpack.c.b16 %v1976, %v1975
      %v2006 = vpack.c.b16 %v1978, %v1977
      %v2007 = vpack.c.b16 %v1980, %v1979
      %v2008 = vpack.c.b16 %v1982, %v1981
      %v2009 = vpack.c.b16 %v1984, %v1983
      %v2010 = vpack.c.b16 %v1986, %v1985
      %v2011 = vpack.c.b16 %v1988, %v1987
      %v2012 = vpack.c.b16 %v1990, %v1989
      %v2013 = vpack.c.b16 %v1992, %v1991
      %v2014 = vpack.c.b16 %v1994, %v1993
      %v2015 = vpack.c.b16 %v1996, %v1995
      %v2016 = vpack.c.b16 %v1998, %v1997
      %v2017 = vpack.c.b16 %v2000, %v1999
      %v2018 = vpack.c.b16 %v2002, %v2001
      %v2019 = vunpack.c.l.b16 %v1369
      %v2020 = vunpack.c.l.b16 %v1379
      %v2021 = vunpack.c.l.b16 %v1393
      %v2022 = vunpack.c.l.b16 %v1403
      %v2023 = vunpack.c.l.b16 %v1417
      %v2024 = vunpack.c.l.b16 %v1427
      %v2025 = vunpack.c.l.b16 %v1441
      %v2026 = vunpack.c.l.b16 %v1451
      %v2027 = vunpack.c.l.b16 %v1465
      %v2028 = vunpack.c.l.b16 %v1475
      %v2029 = vunpack.c.l.b16 %v1489
      %v2030 = vunpack.c.l.b16 %v1499
      %v2031 = vunpack.c.l.b16 %v1513
      %v2032 = vunpack.c.l.b16 %v1523
      %v2033 = vunpack.c.l.b16 %v1537
      %v2034 = vunpack.c.l.b16 %v1547
      %v2035 = vunpack.c.l.b16 %v1561
      %v2036 = vunpack.c.l.b16 %v1571
      %v2037 = vunpack.c.l.b16 %v1585
      %v2038 = vunpack.c.l.b16 %v1595
      %v2039 = vunpack.c.l.b16 %v1609
      %v2040 = vunpack.c.l.b16 %v1619
      %v2041 = vunpack.c.l.b16 %v1633
      %v2042 = vunpack.c.l.b16 %v1643
      %v2043 = vunpack.c.l.b16 %v1657
      %v2044 = vunpack.c.l.b16 %v1667
      %v2045 = vunpack.c.l.b16 %v1681
      %v2046 = vunpack.c.l.b16 %v1691
      %v2047 = vunpack.c.l.b16 %v1705
      %v2048 = vunpack.c.l.b16 %v1715
      %v2049 = vunpack.c.l.b16 %v1729
      %v2050 = vunpack.c.l.b16 %v1739
      %v2051 = vpack.c.b16 %v2020, %v2019
      %v2052 = vpack.c.b16 %v2022, %v2021
      %v2053 = vpack.c.b16 %v2024, %v2023
      %v2054 = vpack.c.b16 %v2026, %v2025
      %v2055 = vpack.c.b16 %v2028, %v2027
      %v2056 = vpack.c.b16 %v2030, %v2029
      %v2057 = vpack.c.b16 %v2032, %v2031
      %v2058 = vpack.c.b16 %v2034, %v2033
      %v2059 = vpack.c.b16 %v2036, %v2035
      %v2060 = vpack.c.b16 %v2038, %v2037
      %v2061 = vpack.c.b16 %v2040, %v2039
      %v2062 = vpack.c.b16 %v2042, %v2041
      %v2063 = vpack.c.b16 %v2044, %v2043
      %v2064 = vpack.c.b16 %v2046, %v2045
      %v2065 = vpack.c.b16 %v2048, %v2047
      %v2066 = vpack.c.b16 %v2050, %v2049
      %2067 = vrot.lane.b32.xlu0 %v2051, 32
      %v2068 = vpop.permute.xlu0 %2067
      %2069 = vrot.lane.b32.xlu0 %v2052, 32
      %v2070 = vpop.permute.xlu0 %2069
      %2071 = vrot.lane.b32.xlu0 %v2053, 32
      %v2072 = vpop.permute.xlu0 %2071
      %2073 = vrot.lane.b32.xlu0 %v2054, 32
      %v2074 = vpop.permute.xlu0 %2073
      %2075 = vrot.lane.b32.xlu0 %v2055, 32
      %v2076 = vpop.permute.xlu0 %2075
      %2077 = vrot.lane.b32.xlu0 %v2056, 32
      %v2078 = vpop.permute.xlu0 %2077
      %2079 = vrot.lane.b32.xlu0 %v2057, 32
      %v2080 = vpop.permute.xlu0 %2079
      %2081 = vrot.lane.b32.xlu0 %v2058, 32
      %v2082 = vpop.permute.xlu0 %2081
      %2083 = vrot.lane.b32.xlu0 %v2059, 32
      %v2084 = vpop.permute.xlu0 %2083
      %2085 = vrot.lane.b32.xlu0 %v2060, 32
      %v2086 = vpop.permute.xlu0 %2085
      %2087 = vrot.lane.b32.xlu0 %v2061, 32
      %v2088 = vpop.permute.xlu0 %2087
      %2089 = vrot.lane.b32.xlu0 %v2062, 32
      %v2090 = vpop.permute.xlu0 %2089
      %2091 = vrot.lane.b32.xlu0 %v2063, 32
      %v2092 = vpop.permute.xlu0 %2091
      %2093 = vrot.lane.b32.xlu0 %v2064, 32
      %v2094 = vpop.permute.xlu0 %2093
      %2095 = vrot.lane.b32.xlu0 %v2065, 32
      %v2096 = vpop.permute.xlu0 %2095
      %2097 = vrot.lane.b32.xlu0 %v2066, 32
      %v2098 = vpop.permute.xlu0 %2097
      %v2099 = vunpack.c.l.b16 %v1794
      %v2100 = vunpack.c.l.b16 %v1797
      %v2101 = vunpack.c.l.b16 %v1801
      %v2102 = vunpack.c.l.b16 %v1804
      %v2103 = vunpack.c.l.b16 %v1808
      %v2104 = vunpack.c.l.b16 %v1811
      %v2105 = vunpack.c.l.b16 %v1815
      %v2106 = vunpack.c.l.b16 %v1818
      %v2107 = vunpack.c.l.b16 %v1822
      %v2108 = vunpack.c.l.b16 %v1825
      %v2109 = vunpack.c.l.b16 %v1829
      %v2110 = vunpack.c.l.b16 %v1832
      %v2111 = vunpack.c.l.b16 %v1836
      %v2112 = vunpack.c.l.b16 %v1839
      %v2113 = vunpack.c.l.b16 %v1843
      %v2114 = vunpack.c.l.b16 %v1846
      %v2115 = vunpack.c.l.b16 %v1850
      %v2116 = vunpack.c.l.b16 %v1853
      %v2117 = vunpack.c.l.b16 %v1857
      %v2118 = vunpack.c.l.b16 %v1860
      %v2119 = vunpack.c.l.b16 %v1864
      %v2120 = vunpack.c.l.b16 %v1867
      %v2121 = vunpack.c.l.b16 %v1871
      %v2122 = vunpack.c.l.b16 %v1874
      %v2123 = vunpack.c.l.b16 %v1878
      %v2124 = vunpack.c.l.b16 %v1881
      %v2125 = vunpack.c.l.b16 %v1885
      %v2126 = vunpack.c.l.b16 %v1888
      %v2127 = vunpack.c.l.b16 %v1892
      %v2128 = vunpack.c.l.b16 %v1895
      %v2129 = vunpack.c.l.b16 %v1899
      %v2130 = vunpack.c.l.b16 %v1902
      %v2131 = vpack.c.b16 %v2100, %v2099
      %v2132 = vpack.c.b16 %v2102, %v2101
      %v2133 = vpack.c.b16 %v2104, %v2103
      %v2134 = vpack.c.b16 %v2106, %v2105
      %v2135 = vpack.c.b16 %v2108, %v2107
      %v2136 = vpack.c.b16 %v2110, %v2109
      %v2137 = vpack.c.b16 %v2112, %v2111
      %v2138 = vpack.c.b16 %v2114, %v2113
      %v2139 = vpack.c.b16 %v2116, %v2115
      %v2140 = vpack.c.b16 %v2118, %v2117
      %v2141 = vpack.c.b16 %v2120, %v2119
      %v2142 = vpack.c.b16 %v2122, %v2121
      %v2143 = vpack.c.b16 %v2124, %v2123
      %v2144 = vpack.c.b16 %v2126, %v2125
      %v2145 = vpack.c.b16 %v2128, %v2127
      %v2146 = vpack.c.b16 %v2130, %v2129
      %2147 = vrot.lane.b32.xlu0 %v2131, 64
      %v2148 = vpop.permute.xlu0 %2147
      %2149 = vrot.lane.b32.xlu0 %v2132, 64
      %v2150 = vpop.permute.xlu0 %2149
      %2151 = vrot.lane.b32.xlu0 %v2133, 64
      %v2152 = vpop.permute.xlu0 %2151
      %2153 = vrot.lane.b32.xlu0 %v2134, 64
      %v2154 = vpop.permute.xlu0 %2153
      %2155 = vrot.lane.b32.xlu0 %v2135, 64
      %v2156 = vpop.permute.xlu0 %2155
      %2157 = vrot.lane.b32.xlu0 %v2136, 64
      %v2158 = vpop.permute.xlu0 %2157
      %2159 = vrot.lane.b32.xlu0 %v2137, 64
      %v2160 = vpop.permute.xlu0 %2159
      %2161 = vrot.lane.b32.xlu0 %v2138, 64
      %v2162 = vpop.permute.xlu0 %2161
      %2163 = vrot.lane.b32.xlu0 %v2139, 64
      %v2164 = vpop.permute.xlu0 %2163
      %2165 = vrot.lane.b32.xlu0 %v2140, 64
      %v2166 = vpop.permute.xlu0 %2165
      %2167 = vrot.lane.b32.xlu0 %v2141, 64
      %v2168 = vpop.permute.xlu0 %2167
      %2169 = vrot.lane.b32.xlu0 %v2142, 64
      %v2170 = vpop.permute.xlu0 %2169
      %2171 = vrot.lane.b32.xlu0 %v2143, 64
      %v2172 = vpop.permute.xlu0 %2171
      %2173 = vrot.lane.b32.xlu0 %v2144, 64
      %v2174 = vpop.permute.xlu0 %2173
      %2175 = vrot.lane.b32.xlu0 %v2145, 64
      %v2176 = vpop.permute.xlu0 %2175
      %2177 = vrot.lane.b32.xlu0 %v2146, 64
      %v2178 = vpop.permute.xlu0 %2177
      %v2179 = vunpack.c.l.b16 %v1116
      %v2180 = vunpack.c.l.b16 %v1117
      %v2181 = vpack.c.b16 %v2180, %v2179
      %2182 = vrot.lane.b32.xlu0 %v2004, 96
      %v2183 = vpop.permute.xlu0 %2182
      %2184 = vrot.lane.b32.xlu0 %v2005, 96
      %v2185 = vpop.permute.xlu0 %2184
      %2186 = vrot.lane.b32.xlu0 %v2006, 96
      %v2187 = vpop.permute.xlu0 %2186
      %2188 = vrot.lane.b32.xlu0 %v2007, 96
      %v2189 = vpop.permute.xlu0 %2188
      %2190 = vrot.lane.b32.xlu0 %v2008, 96
      %v2191 = vpop.permute.xlu0 %2190
      %2192 = vrot.lane.b32.xlu0 %v2009, 96
      %v2193 = vpop.permute.xlu0 %2192
      %2194 = vrot.lane.b32.xlu0 %v2010, 96
      %v2195 = vpop.permute.xlu0 %2194
      %2196 = vrot.lane.b32.xlu0 %v2011, 96
      %v2197 = vpop.permute.xlu0 %2196
      %2198 = vrot.lane.b32.xlu0 %v2012, 96
      %v2199 = vpop.permute.xlu0 %2198
      %2200 = vrot.lane.b32.xlu0 %v2013, 96
      %v2201 = vpop.permute.xlu0 %2200
      %2202 = vrot.lane.b32.xlu0 %v2014, 96
      %v2203 = vpop.permute.xlu0 %2202
      %2204 = vrot.lane.b32.xlu0 %v2015, 96
      %v2205 = vpop.permute.xlu0 %2204
      %2206 = vrot.lane.b32.xlu0 %v2016, 96
      %v2207 = vpop.permute.xlu0 %2206
      %2208 = vrot.lane.b32.xlu0 %v2017, 96
      %v2209 = vpop.permute.xlu0 %2208
      %2210 = vrot.lane.b32.xlu0 %v2018, 96
      %v2211 = vpop.permute.xlu0 %2210
      %2212 = vrot.lane.b32.xlu0 %v2181, 96
      %v2213 = vpop.permute.xlu0 %2212
      %v2214 = vunpack.c.l.b16 %v1916
      %v2215 = vunpack.c.l.b16 %v1926
      %v2216 = vpack.c.b16 %v2215, %v2214
      %v2217 = vunpack.c.l.b16 %v1933
      %v2218 = vunpack.c.l.b16 %v1936
      %v2219 = vpack.c.b16 %v2218, %v2217
      %2220 = vrot.lane.b32.xlu0 %v2132, 32
      %v2221 = vpop.permute.xlu0 %2220
      %2222 = vrot.lane.b32.xlu0 %v2133, 32
      %v2223 = vpop.permute.xlu0 %2222
      %2224 = vrot.lane.b32.xlu0 %v2134, 32
      %v2225 = vpop.permute.xlu0 %2224
      %2226 = vrot.lane.b32.xlu0 %v2135, 32
      %v2227 = vpop.permute.xlu0 %2226
      %2228 = vrot.lane.b32.xlu0 %v2136, 32
      %v2229 = vpop.permute.xlu0 %2228
      %2230 = vrot.lane.b32.xlu0 %v2137, 32
      %v2231 = vpop.permute.xlu0 %2230
      %2232 = vrot.lane.b32.xlu0 %v2138, 32
      %v2233 = vpop.permute.xlu0 %2232
      %2234 = vrot.lane.b32.xlu0 %v2139, 32
      %v2235 = vpop.permute.xlu0 %2234
      %2236 = vrot.lane.b32.xlu0 %v2140, 32
      %v2237 = vpop.permute.xlu0 %2236
      %2238 = vrot.lane.b32.xlu0 %v2141, 32
      %v2239 = vpop.permute.xlu0 %2238
      %2240 = vrot.lane.b32.xlu0 %v2142, 32
      %v2241 = vpop.permute.xlu0 %2240
      %2242 = vrot.lane.b32.xlu0 %v2143, 32
      %v2243 = vpop.permute.xlu0 %2242
      %2244 = vrot.lane.b32.xlu0 %v2144, 32
      %v2245 = vpop.permute.xlu0 %2244
      %2246 = vrot.lane.b32.xlu0 %v2145, 32
      %v2247 = vpop.permute.xlu0 %2246
      %2248 = vrot.lane.b32.xlu0 %v2146, 32
      %v2249 = vpop.permute.xlu0 %2248
      %2250 = vrot.lane.b32.xlu0 %v2219, 32
      %v2251 = vpop.permute.xlu0 %2250
      %v2252 = vunpack.c.l.b16 %v1119
      %v2253 = vunpack.c.l.b16 %v1120
      %v2254 = vpack.c.b16 %v2253, %v2252
      %2255 = vrot.lane.b32.xlu0 %v2005, 64
      %v2256 = vpop.permute.xlu0 %2255
      %2257 = vrot.lane.b32.xlu0 %v2006, 64
      %v2258 = vpop.permute.xlu0 %2257
      %2259 = vrot.lane.b32.xlu0 %v2007, 64
      %v2260 = vpop.permute.xlu0 %2259
      %2261 = vrot.lane.b32.xlu0 %v2008, 64
      %v2262 = vpop.permute.xlu0 %2261
      %2263 = vrot.lane.b32.xlu0 %v2009, 64
      %v2264 = vpop.permute.xlu0 %2263
      %2265 = vrot.lane.b32.xlu0 %v2010, 64
      %v2266 = vpop.permute.xlu0 %2265
      %2267 = vrot.lane.b32.xlu0 %v2011, 64
      %v2268 = vpop.permute.xlu0 %2267
      %2269 = vrot.lane.b32.xlu0 %v2012, 64
      %v2270 = vpop.permute.xlu0 %2269
      %2271 = vrot.lane.b32.xlu0 %v2013, 64
      %v2272 = vpop.permute.xlu0 %2271
      %2273 = vrot.lane.b32.xlu0 %v2014, 64
      %v2274 = vpop.permute.xlu0 %2273
      %2275 = vrot.lane.b32.xlu0 %v2015, 64
      %v2276 = vpop.permute.xlu0 %2275
      %2277 = vrot.lane.b32.xlu0 %v2016, 64
      %v2278 = vpop.permute.xlu0 %2277
      %2279 = vrot.lane.b32.xlu0 %v2017, 64
      %v2280 = vpop.permute.xlu0 %2279
      %2281 = vrot.lane.b32.xlu0 %v2018, 64
      %v2282 = vpop.permute.xlu0 %2281
      %2283 = vrot.lane.b32.xlu0 %v2181, 64
      %v2284 = vpop.permute.xlu0 %2283
      %2285 = vrot.lane.b32.xlu0 %v2254, 64
      %v2286 = vpop.permute.xlu0 %2285
      %v2287 = vunpack.c.l.b16 %v1950
      %v2288 = vunpack.c.l.b16 %v1960
      %v2289 = vpack.c.b16 %v2288, %v2287
      %2290 = vrot.lane.b32.xlu0 %v2053, 96
      %v2291 = vpop.permute.xlu0 %2290
      %2292 = vrot.lane.b32.xlu0 %v2054, 96
      %v2293 = vpop.permute.xlu0 %2292
      %2294 = vrot.lane.b32.xlu0 %v2055, 96
      %v2295 = vpop.permute.xlu0 %2294
      %2296 = vrot.lane.b32.xlu0 %v2056, 96
      %v2297 = vpop.permute.xlu0 %2296
      %2298 = vrot.lane.b32.xlu0 %v2057, 96
      %v2299 = vpop.permute.xlu0 %2298
      %2300 = vrot.lane.b32.xlu0 %v2058, 96
      %v2301 = vpop.permute.xlu0 %2300
      %2302 = vrot.lane.b32.xlu0 %v2059, 96
      %v2303 = vpop.permute.xlu0 %2302
      %2304 = vrot.lane.b32.xlu0 %v2060, 96
      %v2305 = vpop.permute.xlu0 %2304
      %2306 = vrot.lane.b32.xlu0 %v2061, 96
      %v2307 = vpop.permute.xlu0 %2306
      %2308 = vrot.lane.b32.xlu0 %v2062, 96
      %v2309 = vpop.permute.xlu0 %2308
      %2310 = vrot.lane.b32.xlu0 %v2063, 96
      %v2311 = vpop.permute.xlu0 %2310
      %2312 = vrot.lane.b32.xlu0 %v2064, 96
      %v2313 = vpop.permute.xlu0 %2312
      %2314 = vrot.lane.b32.xlu0 %v2065, 96
      %v2315 = vpop.permute.xlu0 %2314
      %2316 = vrot.lane.b32.xlu0 %v2066, 96
      %v2317 = vpop.permute.xlu0 %2316
      %2318 = vrot.lane.b32.xlu0 %v2216, 96
      %v2319 = vpop.permute.xlu0 %2318
      %2320 = vrot.lane.b32.xlu0 %v2289, 96
      %v2321 = vpop.permute.xlu0 %2320
      %v2322 = vunpack.c.l.b16 %v1967
      %v2323 = vunpack.c.l.b16 %v1970
      %v2324 = vpack.c.b16 %v2323, %v2322
      %vm2325 = vcmask 261120
      %v2328 = vsel %vm2325, %v2003, %v2068
      %v2331 = vsel %vm2325, %v2004, %v2070
      %v2334 = vsel %vm2325, %v2005, %v2072
      %v2337 = vsel %vm2325, %v2006, %v2074
      %v2340 = vsel %vm2325, %v2007, %v2076
      %v2343 = vsel %vm2325, %v2008, %v2078
      %v2346 = vsel %vm2325, %v2009, %v2080
      %v2349 = vsel %vm2325, %v2010, %v2082
      %v2352 = vsel %vm2325, %v2011, %v2084
      %v2355 = vsel %vm2325, %v2012, %v2086
      %v2358 = vsel %vm2325, %v2013, %v2088
      %v2361 = vsel %vm2325, %v2014, %v2090
      %v2364 = vsel %vm2325, %v2015, %v2092
      %v2367 = vsel %vm2325, %v2016, %v2094
      %v2370 = vsel %vm2325, %v2017, %v2096
      %v2373 = vsel %vm2325, %v2018, %v2098
      %vm2374 = vcmask 523264
      %v2376 = vsel %vm2374, %v2328, %v2148
      %v2378 = vsel %vm2374, %v2331, %v2150
      %v2380 = vsel %vm2374, %v2334, %v2152
      %v2382 = vsel %vm2374, %v2337, %v2154
      %v2384 = vsel %vm2374, %v2340, %v2156
      %v2386 = vsel %vm2374, %v2343, %v2158
      %v2388 = vsel %vm2374, %v2346, %v2160
      %v2390 = vsel %vm2374, %v2349, %v2162
      %v2392 = vsel %vm2374, %v2352, %v2164
      %v2394 = vsel %vm2374, %v2355, %v2166
      %v2396 = vsel %vm2374, %v2358, %v2168
      %v2398 = vsel %vm2374, %v2361, %v2170
      %v2400 = vsel %vm2374, %v2364, %v2172
      %v2402 = vsel %vm2374, %v2367, %v2174
      %v2404 = vsel %vm2374, %v2370, %v2176
      %v2406 = vsel %vm2374, %v2373, %v2178
      %vm2407 = vcmask 785408
      %v2409 = vsel %vm2407, %v2376, %v2183
      %v2412 = vsel %vm2407, %v2378, %v2185
      %v2415 = vsel %vm2407, %v2380, %v2187
      %v2418 = vsel %vm2407, %v2382, %v2189
      %v2421 = vsel %vm2407, %v2384, %v2191
      %v2424 = vsel %vm2407, %v2386, %v2193
      %v2427 = vsel %vm2407, %v2388, %v2195
      %v2430 = vsel %vm2407, %v2390, %v2197
      %v2433 = vsel %vm2407, %v2392, %v2199
      %v2436 = vsel %vm2407, %v2394, %v2201
      %v2439 = vsel %vm2407, %v2396, %v2203
      %v2442 = vsel %vm2407, %v2398, %v2205
      %v2445 = vsel %vm2407, %v2400, %v2207
      %v2448 = vsel %vm2407, %v2402, %v2209
      %v2451 = vsel %vm2407, %v2404, %v2211
      %v2454 = vsel %vm2407, %v2406, %v2213
      %v2458 = vsel %vm2325, %v2052, %v2221
      %v2461 = vsel %vm2325, %v2053, %v2223
      %v2464 = vsel %vm2325, %v2054, %v2225
      %v2467 = vsel %vm2325, %v2055, %v2227
      %v2470 = vsel %vm2325, %v2056, %v2229
      %v2473 = vsel %vm2325, %v2057, %v2231
      %v2476 = vsel %vm2325, %v2058, %v2233
      %v2479 = vsel %vm2325, %v2059, %v2235
      %v2482 = vsel %vm2325, %v2060, %v2237
      %v2485 = vsel %vm2325, %v2061, %v2239
      %v2488 = vsel %vm2325, %v2062, %v2241
      %v2491 = vsel %vm2325, %v2063, %v2243
      %v2494 = vsel %vm2325, %v2064, %v2245
      %v2497 = vsel %vm2325, %v2065, %v2247
      %v2500 = vsel %vm2325, %v2066, %v2249
      %v2503 = vsel %vm2325, %v2216, %v2251
      %v2505 = vsel %vm2374, %v2458, %v2256
      %v2507 = vsel %vm2374, %v2461, %v2258
      %v2509 = vsel %vm2374, %v2464, %v2260
      %v2511 = vsel %vm2374, %v2467, %v2262
      %v2513 = vsel %vm2374, %v2470, %v2264
      %v2515 = vsel %vm2374, %v2473, %v2266
      %v2517 = vsel %vm2374, %v2476, %v2268
      %v2519 = vsel %vm2374, %v2479, %v2270
      %v2521 = vsel %vm2374, %v2482, %v2272
      %v2523 = vsel %vm2374, %v2485, %v2274
      %v2525 = vsel %vm2374, %v2488, %v2276
      %v2527 = vsel %vm2374, %v2491, %v2278
      %v2529 = vsel %vm2374, %v2494, %v2280
      %v2531 = vsel %vm2374, %v2497, %v2282
      %v2533 = vsel %vm2374, %v2500, %v2284
      %v2535 = vsel %vm2374, %v2503, %v2286
      %v2537 = vsel %vm2407, %v2505, %v2291
      %v2540 = vsel %vm2407, %v2507, %v2293
      %v2543 = vsel %vm2407, %v2509, %v2295
      %v2546 = vsel %vm2407, %v2511, %v2297
      %v2549 = vsel %vm2407, %v2513, %v2299
      %v2552 = vsel %vm2407, %v2515, %v2301
      %v2555 = vsel %vm2407, %v2517, %v2303
      %v2558 = vsel %vm2407, %v2519, %v2305
      %v2561 = vsel %vm2407, %v2521, %v2307
      %v2564 = vsel %vm2407, %v2523, %v2309
      %v2567 = vsel %vm2407, %v2525, %v2311
      %v2570 = vsel %vm2407, %v2527, %v2313
      %v2573 = vsel %vm2407, %v2529, %v2315
      %v2576 = vsel %vm2407, %v2531, %v2317
      %v2579 = vsel %vm2407, %v2533, %v2319
      %v2582 = vsel %vm2407, %v2535, %v2321
      %v2584 = vld [vmem:[%s4] sm:$0xf]
      %v2585 = vld [vmem:[%s4 + $0x4] sm:$0xf]
      %v2586 = vld [vmem:[%s4 + $0x8] sm:$0xf]
      %v2587 = vld [vmem:[%s4 + $0xc] sm:$0xf]
      %v2588 = vld [vmem:[%s4 + $0x10] sm:$0xf]
      %v2589 = vld [vmem:[%s4 + $0x14] sm:$0xf]
      %v2590 = vld [vmem:[%s4 + $0x18] sm:$0xf]
      %v2591 = vld [vmem:[%s4 + $0x1c] sm:$0xf]
      %v2592 = vld [vmem:[%s4 + $0x20] sm:$0xf]
      %v2593 = vld [vmem:[%s4 + $0x24] sm:$0xf]
      %v2594 = vld [vmem:[%s4 + $0x28] sm:$0xf]
      %v2595 = vld [vmem:[%s4 + $0x2c] sm:$0xf]
      %v2596 = vld [vmem:[%s4 + $0x30] sm:$0xf]
      %v2597 = vld [vmem:[%s4 + $0x34] sm:$0xf]
      %v2598 = vld [vmem:[%s4 + $0x38] sm:$0xf]
      %v2599 = vld [vmem:[%s4 + $0x3c] sm:$0xf]
      %v2600 = vld [vmem:[%s4 + $0x40] sm:$0xf]
      %v2601 = vld [vmem:[%s4 + $0x44] sm:$0xf]
      %v2602 = vld [vmem:[%s4 + $0x48] sm:$0xf]
      %v2603 = vld [vmem:[%s4 + $0x4c] sm:$0xf]
      %v2604 = vld [vmem:[%s4 + $0x50] sm:$0xf]
      %v2605 = vld [vmem:[%s4 + $0x54] sm:$0xf]
      %v2606 = vld [vmem:[%s4 + $0x58] sm:$0xf]
      %v2607 = vld [vmem:[%s4 + $0x5c] sm:$0xf]
      %v2608 = vld [vmem:[%s4 + $0x60] sm:$0xf]
      %v2609 = vld [vmem:[%s4 + $0x64] sm:$0xf]
      %v2610 = vld [vmem:[%s4 + $0x68] sm:$0xf]
      %v2611 = vld [vmem:[%s4 + $0x6c] sm:$0xf]
      %v2612 = vld [vmem:[%s4 + $0x70] sm:$0xf]
      %v2613 = vld [vmem:[%s4 + $0x74] sm:$0xf]
      %v2614 = vld [vmem:[%s4 + $0x78] sm:$0xf]
      %v2615 = vld [vmem:[%s4 + $0x7c] sm:$0xf]
      %v2616 = vld [vmem:[%s4 + $0x80] sm:$0xf]
      %v2617 = vld [vmem:[%s4 + $0x84] sm:$0xf]
      %v2618 = vld [vmem:[%s4 + $0x88] sm:$0xf]
      %v2619 = vld [vmem:[%s4 + $0x8c] sm:$0xf]
      %v2656 = vunpack.c.l.b16 %v2584
      %v2657 = vunpack.c.l.b16 %v2585
      %v2658 = vunpack.c.l.b16 %v2586
      %v2659 = vunpack.c.l.b16 %v2587
      %v2660 = vunpack.c.l.b16 %v2588
      %v2661 = vunpack.c.l.b16 %v2589
      %v2662 = vunpack.c.l.b16 %v2590
      %v2663 = vunpack.c.l.b16 %v2591
      %v2664 = vunpack.c.l.b16 %v2592
      %v2665 = vunpack.c.l.b16 %v2593
      %v2666 = vunpack.c.l.b16 %v2594
      %v2667 = vunpack.c.l.b16 %v2595
      %v2668 = vunpack.c.l.b16 %v2596
      %v2669 = vunpack.c.l.b16 %v2597
      %v2670 = vunpack.c.l.b16 %v2598
      %v2671 = vunpack.c.l.b16 %v2599
      %v2672 = vunpack.c.l.b16 %v2600
      %v2673 = vunpack.c.l.b16 %v2601
      %v2674 = vunpack.c.l.b16 %v2602
      %v2675 = vunpack.c.l.b16 %v2603
      %v2676 = vunpack.c.l.b16 %v2604
      %v2677 = vunpack.c.l.b16 %v2605
      %v2678 = vunpack.c.l.b16 %v2606
      %v2679 = vunpack.c.l.b16 %v2607
      %v2680 = vunpack.c.l.b16 %v2608
      %v2681 = vunpack.c.l.b16 %v2609
      %v2682 = vunpack.c.l.b16 %v2610
      %v2683 = vunpack.c.l.b16 %v2611
      %v2684 = vunpack.c.l.b16 %v2612
      %v2685 = vunpack.c.l.b16 %v2613
      %v2686 = vunpack.c.l.b16 %v2614
      %v2687 = vunpack.c.l.b16 %v2615
      %v2688 = vunpack.c.l.b16 %v2616
      %v2689 = vunpack.c.l.b16 %v2617
      %v2690 = vunpack.c.l.b16 %v2618
      %v2691 = vunpack.c.l.b16 %v2619
      %v2692 = vpack.c.b16 %v2657, %v2656
      %v2693 = vpack.c.b16 %v2659, %v2658
      %v2694 = vpack.c.b16 %v2661, %v2660
      %v2695 = vpack.c.b16 %v2663, %v2662
      %v2696 = vpack.c.b16 %v2665, %v2664
      %v2697 = vpack.c.b16 %v2667, %v2666
      %v2698 = vpack.c.b16 %v2669, %v2668
      %v2699 = vpack.c.b16 %v2671, %v2670
      %v2700 = vpack.c.b16 %v2673, %v2672
      %v2701 = vpack.c.b16 %v2675, %v2674
      %v2702 = vpack.c.b16 %v2677, %v2676
      %v2703 = vpack.c.b16 %v2679, %v2678
      %v2704 = vpack.c.b16 %v2681, %v2680
      %v2705 = vpack.c.b16 %v2683, %v2682
      %v2706 = vpack.c.b16 %v2685, %v2684
      %v2707 = vpack.c.b16 %v2687, %v2686
      %v2708 = vpack.c.b16 %v2689, %v2688
      %v2709 = vpack.c.b16 %v2691, %v2690
      %v2729 = vsel %vm2325, %v2133, 0
      %v2732 = vsel %vm2325, %v2134, 0
      %v2735 = vsel %vm2325, %v2135, 0
      %v2738 = vsel %vm2325, %v2136, 0
      %v2741 = vsel %vm2325, %v2137, 0
      %v2744 = vsel %vm2325, %v2138, 0
      %v2747 = vsel %vm2325, %v2139, 0
      %v2750 = vsel %vm2325, %v2140, 0
      %v2753 = vsel %vm2325, %v2141, 0
      %v2756 = vsel %vm2325, %v2142, 0
      %v2759 = vsel %vm2325, %v2143, 0
      %v2762 = vsel %vm2325, %v2144, 0
      %v2765 = vsel %vm2325, %v2145, 0
      %v2768 = vsel %vm2325, %v2146, 0
      %v2771 = vsel %vm2325, %v2219, 0
      %v2774 = vsel %vm2325, %v2324, 0
      %2776 = vmatpush.bf16.msra.mxu0 %v2699
      %2777 = vmatpush.bf16.msra.mxu0 %v2698
      %2778 = vmatpush.bf16.msra.mxu0 %v2697
      %2779 = vmatpush.bf16.msra.mxu0 %v2696
      %2780 = vmatpush.bf16.msra.mxu0 %v2695
      %2781 = vmatpush.bf16.msra.mxu0 %v2694
      %2782 = vmatpush.bf16.msra.mxu0 %v2693
      %2783 = vmatpush.bf16.msra.mxu0 %v2692
      %2784 = vmatmul.bf16.gmra.mxu0 %v2409
      %v2785 = vpop.f32.mrf.mxu0
      %v2786 = vadd.f32 0.0, %v2785
      %v2787 = vpop.f32.mrf.mxu0
      %v2788 = vadd.f32 0.0, %v2787
      %2789 = vmatmul.bf16.gmra.mxu0 %v2412
      %v2790 = vpop.f32.mrf.mxu0
      %v2791 = vadd.f32 0.0, %v2790
      %v2792 = vpop.f32.mrf.mxu0
      %v2793 = vadd.f32 0.0, %v2792
      %2794 = vmatmul.bf16.gmra.mxu0 %v2415
      %v2795 = vpop.f32.mrf.mxu0
      %v2796 = vadd.f32 0.0, %v2795
      %v2797 = vpop.f32.mrf.mxu0
      %v2798 = vadd.f32 0.0, %v2797
      %2799 = vmatmul.bf16.gmra.mxu0 %v2418
      %v2800 = vpop.f32.mrf.mxu0
      %v2801 = vadd.f32 0.0, %v2800
      %v2802 = vpop.f32.mrf.mxu0
      %v2803 = vadd.f32 0.0, %v2802
      %2804 = vmatmul.bf16.gmra.mxu0 %v2421
      %v2805 = vpop.f32.mrf.mxu0
      %v2806 = vadd.f32 0.0, %v2805
      %v2807 = vpop.f32.mrf.mxu0
      %v2808 = vadd.f32 0.0, %v2807
      %2809 = vmatmul.bf16.gmra.mxu0 %v2424
      %v2810 = vpop.f32.mrf.mxu0
      %v2811 = vadd.f32 0.0, %v2810
      %v2812 = vpop.f32.mrf.mxu0
      %v2813 = vadd.f32 0.0, %v2812
      %2814 = vmatmul.bf16.gmra.mxu0 %v2427
      %v2815 = vpop.f32.mrf.mxu0
      %v2816 = vadd.f32 0.0, %v2815
      %v2817 = vpop.f32.mrf.mxu0
      %v2818 = vadd.f32 0.0, %v2817
      %2819 = vmatmul.bf16.gmra.mxu0 %v2430
      %v2820 = vpop.f32.mrf.mxu0
      %v2821 = vadd.f32 0.0, %v2820
      %v2822 = vpop.f32.mrf.mxu0
      %v2823 = vadd.f32 0.0, %v2822
      %2824 = vmatmul.bf16.gmra.mxu0 %v2433
      %v2825 = vpop.f32.mrf.mxu0
      %v2826 = vadd.f32 0.0, %v2825
      %v2827 = vpop.f32.mrf.mxu0
      %v2828 = vadd.f32 0.0, %v2827
      %2829 = vmatmul.bf16.gmra.mxu0 %v2436
      %v2830 = vpop.f32.mrf.mxu0
      %v2831 = vadd.f32 0.0, %v2830
      %v2832 = vpop.f32.mrf.mxu0
      %v2833 = vadd.f32 0.0, %v2832
      %2834 = vmatmul.bf16.gmra.mxu0 %v2439
      %v2835 = vpop.f32.mrf.mxu0
      %v2836 = vadd.f32 0.0, %v2835
      %v2837 = vpop.f32.mrf.mxu0
      %v2838 = vadd.f32 0.0, %v2837
      %2839 = vmatmul.bf16.gmra.mxu0 %v2442
      %v2840 = vpop.f32.mrf.mxu0
      %v2841 = vadd.f32 0.0, %v2840
      %v2842 = vpop.f32.mrf.mxu0
      %v2843 = vadd.f32 0.0, %v2842
      %2844 = vmatmul.bf16.gmra.mxu0 %v2445
      %v2845 = vpop.f32.mrf.mxu0
      %v2846 = vadd.f32 0.0, %v2845
      %v2847 = vpop.f32.mrf.mxu0
      %v2848 = vadd.f32 0.0, %v2847
      %2849 = vmatmul.bf16.gmra.mxu0 %v2448
      %v2850 = vpop.f32.mrf.mxu0
      %v2851 = vadd.f32 0.0, %v2850
      %v2852 = vpop.f32.mrf.mxu0
      %v2853 = vadd.f32 0.0, %v2852
      %2854 = vmatmul.bf16.gmra.mxu0 %v2451
      %v2855 = vpop.f32.mrf.mxu0
      %v2856 = vadd.f32 0.0, %v2855
      %v2857 = vpop.f32.mrf.mxu0
      %v2858 = vadd.f32 0.0, %v2857
      %2859 = vmatmul.bf16.gmra.mxu0 %v2454
      %v2860 = vpop.f32.mrf.mxu0
      %v2861 = vadd.f32 0.0, %v2860
      %v2862 = vpop.f32.mrf.mxu0
      %v2863 = vadd.f32 0.0, %v2862
      %2864 = vdwg.mxu0
      %2865 = vmatpush.bf16.msra.mxu0 %v2707
      %2866 = vmatpush.bf16.msra.mxu0 %v2706
      %2867 = vmatpush.bf16.msra.mxu0 %v2705
      %2868 = vmatpush.bf16.msra.mxu0 %v2704
      %2869 = vmatpush.bf16.msra.mxu0 %v2703
      %2870 = vmatpush.bf16.msra.mxu0 %v2702
      %2871 = vmatpush.bf16.msra.mxu0 %v2701
      %2872 = vmatpush.bf16.msra.mxu0 %v2700
      %2873 = vmatmul.bf16.gmra.mxu0 %v2537
      %v2874 = vpop.f32.mrf.mxu0
      %v2875 = vadd.f32 %v2786, %v2874
      %v2876 = vpop.f32.mrf.mxu0
      %v2877 = vadd.f32 %v2788, %v2876
      %2878 = vmatmul.bf16.gmra.mxu0 %v2540
      %v2879 = vpop.f32.mrf.mxu0
      %v2880 = vadd.f32 %v2791, %v2879
      %v2881 = vpop.f32.mrf.mxu0
      %v2882 = vadd.f32 %v2793, %v2881
      %2883 = vmatmul.bf16.gmra.mxu0 %v2543
      %v2884 = vpop.f32.mrf.mxu0
      %v2885 = vadd.f32 %v2796, %v2884
      %v2886 = vpop.f32.mrf.mxu0
      %v2887 = vadd.f32 %v2798, %v2886
      %2888 = vmatmul.bf16.gmra.mxu0 %v2546
      %v2889 = vpop.f32.mrf.mxu0
      %v2890 = vadd.f32 %v2801, %v2889
      %v2891 = vpop.f32.mrf.mxu0
      %v2892 = vadd.f32 %v2803, %v2891
      %2893 = vmatmul.bf16.gmra.mxu0 %v2549
      %v2894 = vpop.f32.mrf.mxu0
      %v2895 = vadd.f32 %v2806, %v2894
      %v2896 = vpop.f32.mrf.mxu0
      %v2897 = vadd.f32 %v2808, %v2896
      %2898 = vmatmul.bf16.gmra.mxu0 %v2552
      %v2899 = vpop.f32.mrf.mxu0
      %v2900 = vadd.f32 %v2811, %v2899
      %v2901 = vpop.f32.mrf.mxu0
      %v2902 = vadd.f32 %v2813, %v2901
      %2903 = vmatmul.bf16.gmra.mxu0 %v2555
      %v2904 = vpop.f32.mrf.mxu0
      %v2905 = vadd.f32 %v2816, %v2904
      %v2906 = vpop.f32.mrf.mxu0
      %v2907 = vadd.f32 %v2818, %v2906
      %2908 = vmatmul.bf16.gmra.mxu0 %v2558
      %v2909 = vpop.f32.mrf.mxu0
      %v2910 = vadd.f32 %v2821, %v2909
      %v2911 = vpop.f32.mrf.mxu0
      %v2912 = vadd.f32 %v2823, %v2911
      %2913 = vmatmul.bf16.gmra.mxu0 %v2561
      %v2914 = vpop.f32.mrf.mxu0
      %v2915 = vadd.f32 %v2826, %v2914
      %v2916 = vpop.f32.mrf.mxu0
      %v2917 = vadd.f32 %v2828, %v2916
      %2918 = vmatmul.bf16.gmra.mxu0 %v2564
      %v2919 = vpop.f32.mrf.mxu0
      %v2920 = vadd.f32 %v2831, %v2919
      %v2921 = vpop.f32.mrf.mxu0
      %v2922 = vadd.f32 %v2833, %v2921
      %2923 = vmatmul.bf16.gmra.mxu0 %v2567
      %v2924 = vpop.f32.mrf.mxu0
      %v2925 = vadd.f32 %v2836, %v2924
      %v2926 = vpop.f32.mrf.mxu0
      %v2927 = vadd.f32 %v2838, %v2926
      %2928 = vmatmul.bf16.gmra.mxu0 %v2570
      %v2929 = vpop.f32.mrf.mxu0
      %v2930 = vadd.f32 %v2841, %v2929
      %v2931 = vpop.f32.mrf.mxu0
      %v2932 = vadd.f32 %v2843, %v2931
      %2933 = vmatmul.bf16.gmra.mxu0 %v2573
      %v2934 = vpop.f32.mrf.mxu0
      %v2935 = vadd.f32 %v2846, %v2934
      %v2936 = vpop.f32.mrf.mxu0
      %v2937 = vadd.f32 %v2848, %v2936
      %2938 = vmatmul.bf16.gmra.mxu0 %v2576
      %v2939 = vpop.f32.mrf.mxu0
      %v2940 = vadd.f32 %v2851, %v2939
      %v2941 = vpop.f32.mrf.mxu0
      %v2942 = vadd.f32 %v2853, %v2941
      %2943 = vmatmul.bf16.gmra.mxu0 %v2579
      %v2944 = vpop.f32.mrf.mxu0
      %v2945 = vadd.f32 %v2856, %v2944
      %v2946 = vpop.f32.mrf.mxu0
      %v2947 = vadd.f32 %v2858, %v2946
      %2948 = vmatmul.bf16.gmra.mxu0 %v2582
      %v2949 = vpop.f32.mrf.mxu0
      %v2950 = vadd.f32 %v2861, %v2949
      %v2951 = vpop.f32.mrf.mxu0
      %v2952 = vadd.f32 %v2863, %v2951
      %2953 = vdwg.mxu0
      %2954 = vmatpush.bf16.msra.mxu0 0
      %2955 = vmatpush.bf16.msra.mxu0 0
      %2956 = vmatpush.bf16.msra.mxu0 0
      %2957 = vmatpush.bf16.msra.mxu0 0
      %2958 = vmatpush.bf16.msra.mxu0 0
      %2959 = vmatpush.bf16.msra.mxu0 0
      %2960 = vmatpush.bf16.msra.mxu0 %v2709
      %2961 = vmatpush.bf16.msra.mxu0 %v2708
      %2962 = vmatmul.bf16.gmra.mxu0 %v2729
      %v2963 = vpop.f32.mrf.mxu0
      %v2964 = vadd.f32 %v2875, %v2963
      %v2965 = vpop.f32.mrf.mxu0
      %v2966 = vadd.f32 %v2877, %v2965
      %2967 = vmatmul.bf16.gmra.mxu0 %v2732
      %v2968 = vpop.f32.mrf.mxu0
      %v2969 = vadd.f32 %v2880, %v2968
      %v2970 = vpop.f32.mrf.mxu0
      %v2971 = vadd.f32 %v2882, %v2970
      %2972 = vmatmul.bf16.gmra.mxu0 %v2735
      %v2973 = vpop.f32.mrf.mxu0
      %v2974 = vadd.f32 %v2885, %v2973
      %v2975 = vpop.f32.mrf.mxu0
      %v2976 = vadd.f32 %v2887, %v2975
      %2977 = vmatmul.bf16.gmra.mxu0 %v2738
      %v2978 = vpop.f32.mrf.mxu0
      %v2979 = vadd.f32 %v2890, %v2978
      %v2980 = vpop.f32.mrf.mxu0
      %v2981 = vadd.f32 %v2892, %v2980
      %2982 = vmatmul.bf16.gmra.mxu0 %v2741
      %v2983 = vpop.f32.mrf.mxu0
      %v2984 = vadd.f32 %v2895, %v2983
      %v2985 = vpop.f32.mrf.mxu0
      %v2986 = vadd.f32 %v2897, %v2985
      %2987 = vmatmul.bf16.gmra.mxu0 %v2744
      %v2988 = vpop.f32.mrf.mxu0
      %v2989 = vadd.f32 %v2900, %v2988
      %v2990 = vpop.f32.mrf.mxu0
      %v2991 = vadd.f32 %v2902, %v2990
      %2992 = vmatmul.bf16.gmra.mxu0 %v2747
      %v2993 = vpop.f32.mrf.mxu0
      %v2994 = vadd.f32 %v2905, %v2993
      %v2995 = vpop.f32.mrf.mxu0
      %v2996 = vadd.f32 %v2907, %v2995
      %2997 = vmatmul.bf16.gmra.mxu0 %v2750
      %v2998 = vpop.f32.mrf.mxu0
      %v2999 = vadd.f32 %v2910, %v2998
      %v3000 = vpop.f32.mrf.mxu0
      %v3001 = vadd.f32 %v2912, %v3000
      %3002 = vmatmul.bf16.gmra.mxu0 %v2753
      %v3003 = vpop.f32.mrf.mxu0
      %v3004 = vadd.f32 %v2915, %v3003
      %v3005 = vpop.f32.mrf.mxu0
      %v3006 = vadd.f32 %v2917, %v3005
      %3007 = vmatmul.bf16.gmra.mxu0 %v2756
      %v3008 = vpop.f32.mrf.mxu0
      %v3009 = vadd.f32 %v2920, %v3008
      %v3010 = vpop.f32.mrf.mxu0
      %v3011 = vadd.f32 %v2922, %v3010
      %3012 = vmatmul.bf16.gmra.mxu0 %v2759
      %v3013 = vpop.f32.mrf.mxu0
      %v3014 = vadd.f32 %v2925, %v3013
      %v3015 = vpop.f32.mrf.mxu0
      %v3016 = vadd.f32 %v2927, %v3015
      %3017 = vmatmul.bf16.gmra.mxu0 %v2762
      %v3018 = vpop.f32.mrf.mxu0
      %v3019 = vadd.f32 %v2930, %v3018
      %v3020 = vpop.f32.mrf.mxu0
      %v3021 = vadd.f32 %v2932, %v3020
      %3022 = vmatmul.bf16.gmra.mxu0 %v2765
      %v3023 = vpop.f32.mrf.mxu0
      %v3024 = vadd.f32 %v2935, %v3023
      %v3025 = vpop.f32.mrf.mxu0
      %v3026 = vadd.f32 %v2937, %v3025
      %3027 = vmatmul.bf16.gmra.mxu0 %v2768
      %v3028 = vpop.f32.mrf.mxu0
      %v3029 = vadd.f32 %v2940, %v3028
      %v3030 = vpop.f32.mrf.mxu0
      %v3031 = vadd.f32 %v2942, %v3030
      %3032 = vmatmul.bf16.gmra.mxu0 %v2771
      %v3033 = vpop.f32.mrf.mxu0
      %v3034 = vadd.f32 %v2945, %v3033
      %v3035 = vpop.f32.mrf.mxu0
      %v3036 = vadd.f32 %v2947, %v3035
      %3037 = vmatmul.bf16.gmra.mxu0 %v2774
      %v3038 = vpop.f32.mrf.mxu0
      %v3039 = vadd.f32 %v2950, %v3038
      %v3040 = vpop.f32.mrf.mxu0
      %v3041 = vadd.f32 %v2952, %v3040
      %3042 = vdwg.mxu0
      %v3043 = vadd.f32 %v2964, %v1321
      %v3044 = vadd.f32 %v2966, %v1322
      %v3045 = vadd.f32 %v2969, %v1323
      %v3046 = vadd.f32 %v2971, %v1324
      %v3047 = vadd.f32 %v2974, %v1325
      %v3048 = vadd.f32 %v2976, %v1326
      %v3049 = vadd.f32 %v2979, %v1327
      %v3050 = vadd.f32 %v2981, %v1328
      %v3051 = vadd.f32 %v2984, %v1329
      %v3052 = vadd.f32 %v2986, %v1330
      %v3053 = vadd.f32 %v2989, %v1331
      %v3054 = vadd.f32 %v2991, %v1332
      %v3055 = vadd.f32 %v2994, %v1333
      %v3056 = vadd.f32 %v2996, %v1334
      %v3057 = vadd.f32 %v2999, %v1335
      %v3058 = vadd.f32 %v3001, %v1336
      %v3059 = vadd.f32 %v3004, %v1337
      %v3060 = vadd.f32 %v3006, %v1338
      %v3061 = vadd.f32 %v3009, %v1339
      %v3062 = vadd.f32 %v3011, %v1340
      %v3063 = vadd.f32 %v3014, %v1341
      %v3064 = vadd.f32 %v3016, %v1342
      %v3065 = vadd.f32 %v3019, %v1343
      %v3066 = vadd.f32 %v3021, %v1344
      %v3067 = vadd.f32 %v3024, %v1345
      %v3068 = vadd.f32 %v3026, %v1346
      %v3069 = vadd.f32 %v3029, %v1347
      %v3070 = vadd.f32 %v3031, %v1348
      %v3071 = vadd.f32 %v3034, %v1349
      %v3072 = vadd.f32 %v3036, %v1350
      %v3073 = vadd.f32 %v3039, %v1351
      %v3074 = vadd.f32 %v3041, %v1352
      %3107 = vrot.lane.b32.xlu0 %v1321, 32
      %v3108 = vpop.permute.xlu0 %3107
      %3109 = vrot.lane.b32.xlu0 %v1322, 32
      %v3110 = vpop.permute.xlu0 %3109
      %3111 = vrot.lane.b32.xlu0 %v1323, 32
      %v3112 = vpop.permute.xlu0 %3111
      %3113 = vrot.lane.b32.xlu0 %v1324, 32
      %v3114 = vpop.permute.xlu0 %3113
      %3115 = vrot.lane.b32.xlu0 %v1325, 32
      %v3116 = vpop.permute.xlu0 %3115
      %3117 = vrot.lane.b32.xlu0 %v1326, 32
      %v3118 = vpop.permute.xlu0 %3117
      %3119 = vrot.lane.b32.xlu0 %v1327, 32
      %v3120 = vpop.permute.xlu0 %3119
      %3121 = vrot.lane.b32.xlu0 %v1328, 32
      %v3122 = vpop.permute.xlu0 %3121
      %3123 = vrot.lane.b32.xlu0 %v1329, 32
      %v3124 = vpop.permute.xlu0 %3123
      %3125 = vrot.lane.b32.xlu0 %v1330, 32
      %v3126 = vpop.permute.xlu0 %3125
      %3127 = vrot.lane.b32.xlu0 %v1331, 32
      %v3128 = vpop.permute.xlu0 %3127
      %3129 = vrot.lane.b32.xlu0 %v1332, 32
      %v3130 = vpop.permute.xlu0 %3129
      %3131 = vrot.lane.b32.xlu0 %v1333, 32
      %v3132 = vpop.permute.xlu0 %3131
      %3133 = vrot.lane.b32.xlu0 %v1334, 32
      %v3134 = vpop.permute.xlu0 %3133
      %3135 = vrot.lane.b32.xlu0 %v1335, 32
      %v3136 = vpop.permute.xlu0 %3135
      %3137 = vrot.lane.b32.xlu0 %v1336, 32
      %v3138 = vpop.permute.xlu0 %3137
      %3139 = vrot.lane.b32.xlu0 %v1337, 32
      %v3140 = vpop.permute.xlu0 %3139
      %3141 = vrot.lane.b32.xlu0 %v1338, 32
      %v3142 = vpop.permute.xlu0 %3141
      %3143 = vrot.lane.b32.xlu0 %v1339, 32
      %v3144 = vpop.permute.xlu0 %3143
      %3145 = vrot.lane.b32.xlu0 %v1340, 32
      %v3146 = vpop.permute.xlu0 %3145
      %3147 = vrot.lane.b32.xlu0 %v1341, 32
      %v3148 = vpop.permute.xlu0 %3147
      %3149 = vrot.lane.b32.xlu0 %v1342, 32
      %v3150 = vpop.permute.xlu0 %3149
      %3151 = vrot.lane.b32.xlu0 %v1343, 32
      %v3152 = vpop.permute.xlu0 %3151
      %3153 = vrot.lane.b32.xlu0 %v1344, 32
      %v3154 = vpop.permute.xlu0 %3153
      %3155 = vrot.lane.b32.xlu0 %v1345, 32
      %v3156 = vpop.permute.xlu0 %3155
      %3157 = vrot.lane.b32.xlu0 %v1346, 32
      %v3158 = vpop.permute.xlu0 %3157
      %3159 = vrot.lane.b32.xlu0 %v1347, 32
      %v3160 = vpop.permute.xlu0 %3159
      %3161 = vrot.lane.b32.xlu0 %v1348, 32
      %v3162 = vpop.permute.xlu0 %3161
      %3163 = vrot.lane.b32.xlu0 %v1349, 32
      %v3164 = vpop.permute.xlu0 %3163
      %3165 = vrot.lane.b32.xlu0 %v1350, 32
      %v3166 = vpop.permute.xlu0 %3165
      %3167 = vrot.lane.b32.xlu0 %v1351, 32
      %v3168 = vpop.permute.xlu0 %3167
      %3169 = vrot.lane.b32.xlu0 %v1352, 32
      %v3170 = vpop.permute.xlu0 %3169
      %v3203 = vadd.f32 %v2964, %v3108
      %v3204 = vadd.f32 %v2966, %v3110
      %v3205 = vadd.f32 %v2969, %v3112
      %v3206 = vadd.f32 %v2971, %v3114
      %v3207 = vadd.f32 %v2974, %v3116
      %v3208 = vadd.f32 %v2976, %v3118
      %v3209 = vadd.f32 %v2979, %v3120
      %v3210 = vadd.f32 %v2981, %v3122
      %v3211 = vadd.f32 %v2984, %v3124
      %v3212 = vadd.f32 %v2986, %v3126
      %v3213 = vadd.f32 %v2989, %v3128
      %v3214 = vadd.f32 %v2991, %v3130
      %v3215 = vadd.f32 %v2994, %v3132
      %v3216 = vadd.f32 %v2996, %v3134
      %v3217 = vadd.f32 %v2999, %v3136
      %v3218 = vadd.f32 %v3001, %v3138
      %v3219 = vadd.f32 %v3004, %v3140
      %v3220 = vadd.f32 %v3006, %v3142
      %v3221 = vadd.f32 %v3009, %v3144
      %v3222 = vadd.f32 %v3011, %v3146
      %v3223 = vadd.f32 %v3014, %v3148
      %v3224 = vadd.f32 %v3016, %v3150
      %v3225 = vadd.f32 %v3019, %v3152
      %v3226 = vadd.f32 %v3021, %v3154
      %v3227 = vadd.f32 %v3024, %v3156
      %v3228 = vadd.f32 %v3026, %v3158
      %v3229 = vadd.f32 %v3029, %v3160
      %v3230 = vadd.f32 %v3031, %v3162
      %v3231 = vadd.f32 %v3034, %v3164
      %v3232 = vadd.f32 %v3036, %v3166
      %v3233 = vadd.f32 %v3039, %v3168
      %v3234 = vadd.f32 %v3041, %v3170
      %3235 = vrot.lane.b32.xlu0 %v1321, 64
      %v3236 = vpop.permute.xlu0 %3235
      %3237 = vrot.lane.b32.xlu0 %v1322, 64
      %v3238 = vpop.permute.xlu0 %3237
      %3239 = vrot.lane.b32.xlu0 %v1323, 64
      %v3240 = vpop.permute.xlu0 %3239
      %3241 = vrot.lane.b32.xlu0 %v1324, 64
      %v3242 = vpop.permute.xlu0 %3241
      %3243 = vrot.lane.b32.xlu0 %v1325, 64
      %v3244 = vpop.permute.xlu0 %3243
      %3245 = vrot.lane.b32.xlu0 %v1326, 64
      %v3246 = vpop.permute.xlu0 %3245
      %3247 = vrot.lane.b32.xlu0 %v1327, 64
      %v3248 = vpop.permute.xlu0 %3247
      %3249 = vrot.lane.b32.xlu0 %v1328, 64
      %v3250 = vpop.permute.xlu0 %3249
      %3251 = vrot.lane.b32.xlu0 %v1329, 64
      %v3252 = vpop.permute.xlu0 %3251
      %3253 = vrot.lane.b32.xlu0 %v1330, 64
      %v3254 = vpop.permute.xlu0 %3253
      %3255 = vrot.lane.b32.xlu0 %v1331, 64
      %v3256 = vpop.permute.xlu0 %3255
      %3257 = vrot.lane.b32.xlu0 %v1332, 64
      %v3258 = vpop.permute.xlu0 %3257
      %3259 = vrot.lane.b32.xlu0 %v1333, 64
      %v3260 = vpop.permute.xlu0 %3259
      %3261 = vrot.lane.b32.xlu0 %v1334, 64
      %v3262 = vpop.permute.xlu0 %3261
      %3263 = vrot.lane.b32.xlu0 %v1335, 64
      %v3264 = vpop.permute.xlu0 %3263
      %3265 = vrot.lane.b32.xlu0 %v1336, 64
      %v3266 = vpop.permute.xlu0 %3265
      %3267 = vrot.lane.b32.xlu0 %v1337, 64
      %v3268 = vpop.permute.xlu0 %3267
      %3269 = vrot.lane.b32.xlu0 %v1338, 64
      %v3270 = vpop.permute.xlu0 %3269
      %3271 = vrot.lane.b32.xlu0 %v1339, 64
      %v3272 = vpop.permute.xlu0 %3271
      %3273 = vrot.lane.b32.xlu0 %v1340, 64
      %v3274 = vpop.permute.xlu0 %3273
      %3275 = vrot.lane.b32.xlu0 %v1341, 64
      %v3276 = vpop.permute.xlu0 %3275
      %3277 = vrot.lane.b32.xlu0 %v1342, 64
      %v3278 = vpop.permute.xlu0 %3277
      %3279 = vrot.lane.b32.xlu0 %v1343, 64
      %v3280 = vpop.permute.xlu0 %3279
      %3281 = vrot.lane.b32.xlu0 %v1344, 64
      %v3282 = vpop.permute.xlu0 %3281
      %3283 = vrot.lane.b32.xlu0 %v1345, 64
      %v3284 = vpop.permute.xlu0 %3283
      %3285 = vrot.lane.b32.xlu0 %v1346, 64
      %v3286 = vpop.permute.xlu0 %3285
      %3287 = vrot.lane.b32.xlu0 %v1347, 64
      %v3288 = vpop.permute.xlu0 %3287
      %3289 = vrot.lane.b32.xlu0 %v1348, 64
      %v3290 = vpop.permute.xlu0 %3289
      %3291 = vrot.lane.b32.xlu0 %v1349, 64
      %v3292 = vpop.permute.xlu0 %3291
      %3293 = vrot.lane.b32.xlu0 %v1350, 64
      %v3294 = vpop.permute.xlu0 %3293
      %3295 = vrot.lane.b32.xlu0 %v1351, 64
      %v3296 = vpop.permute.xlu0 %3295
      %3297 = vrot.lane.b32.xlu0 %v1352, 64
      %v3298 = vpop.permute.xlu0 %3297
      %v3331 = vadd.f32 %v2964, %v3236
      %v3332 = vadd.f32 %v2966, %v3238
      %v3333 = vadd.f32 %v2969, %v3240
      %v3334 = vadd.f32 %v2971, %v3242
      %v3335 = vadd.f32 %v2974, %v3244
      %v3336 = vadd.f32 %v2976, %v3246
      %v3337 = vadd.f32 %v2979, %v3248
      %v3338 = vadd.f32 %v2981, %v3250
      %v3339 = vadd.f32 %v2984, %v3252
      %v3340 = vadd.f32 %v2986, %v3254
      %v3341 = vadd.f32 %v2989, %v3256
      %v3342 = vadd.f32 %v2991, %v3258
      %v3343 = vadd.f32 %v2994, %v3260
      %v3344 = vadd.f32 %v2996, %v3262
      %v3345 = vadd.f32 %v2999, %v3264
      %v3346 = vadd.f32 %v3001, %v3266
      %v3347 = vadd.f32 %v3004, %v3268
      %v3348 = vadd.f32 %v3006, %v3270
      %v3349 = vadd.f32 %v3009, %v3272
      %v3350 = vadd.f32 %v3011, %v3274
      %v3351 = vadd.f32 %v3014, %v3276
      %v3352 = vadd.f32 %v3016, %v3278
      %v3353 = vadd.f32 %v3019, %v3280
      %v3354 = vadd.f32 %v3021, %v3282
      %v3355 = vadd.f32 %v3024, %v3284
      %v3356 = vadd.f32 %v3026, %v3286
      %v3357 = vadd.f32 %v3029, %v3288
      %v3358 = vadd.f32 %v3031, %v3290
      %v3359 = vadd.f32 %v3034, %v3292
      %v3360 = vadd.f32 %v3036, %v3294
      %v3361 = vadd.f32 %v3039, %v3296
      %v3362 = vadd.f32 %v3041, %v3298
      %3363 = vrot.lane.b32.xlu0 %v1321, 96
      %v3364 = vpop.permute.xlu0 %3363
      %3365 = vrot.lane.b32.xlu0 %v1322, 96
      %v3366 = vpop.permute.xlu0 %3365
      %3367 = vrot.lane.b32.xlu0 %v1323, 96
      %v3368 = vpop.permute.xlu0 %3367
      %3369 = vrot.lane.b32.xlu0 %v1324, 96
      %v3370 = vpop.permute.xlu0 %3369
      %3371 = vrot.lane.b32.xlu0 %v1325, 96
      %v3372 = vpop.permute.xlu0 %3371
      %3373 = vrot.lane.b32.xlu0 %v1326, 96
      %v3374 = vpop.permute.xlu0 %3373
      %3375 = vrot.lane.b32.xlu0 %v1327, 96
      %v3376 = vpop.permute.xlu0 %3375
      %3377 = vrot.lane.b32.xlu0 %v1328, 96
      %v3378 = vpop.permute.xlu0 %3377
      %3379 = vrot.lane.b32.xlu0 %v1329, 96
      %v3380 = vpop.permute.xlu0 %3379
      %3381 = vrot.lane.b32.xlu0 %v1330, 96
      %v3382 = vpop.permute.xlu0 %3381
      %3383 = vrot.lane.b32.xlu0 %v1331, 96
      %v3384 = vpop.permute.xlu0 %3383
      %3385 = vrot.lane.b32.xlu0 %v1332, 96
      %v3386 = vpop.permute.xlu0 %3385
      %3387 = vrot.lane.b32.xlu0 %v1333, 96
      %v3388 = vpop.permute.xlu0 %3387
      %3389 = vrot.lane.b32.xlu0 %v1334, 96
      %v3390 = vpop.permute.xlu0 %3389
      %3391 = vrot.lane.b32.xlu0 %v1335, 96
      %v3392 = vpop.permute.xlu0 %3391
      %3393 = vrot.lane.b32.xlu0 %v1336, 96
      %v3394 = vpop.permute.xlu0 %3393
      %3395 = vrot.lane.b32.xlu0 %v1337, 96
      %v3396 = vpop.permute.xlu0 %3395
      %3397 = vrot.lane.b32.xlu0 %v1338, 96
      %v3398 = vpop.permute.xlu0 %3397
      %3399 = vrot.lane.b32.xlu0 %v1339, 96
      %v3400 = vpop.permute.xlu0 %3399
      %3401 = vrot.lane.b32.xlu0 %v1340, 96
      %v3402 = vpop.permute.xlu0 %3401
      %3403 = vrot.lane.b32.xlu0 %v1341, 96
      %v3404 = vpop.permute.xlu0 %3403
      %3405 = vrot.lane.b32.xlu0 %v1342, 96
      %v3406 = vpop.permute.xlu0 %3405
      %3407 = vrot.lane.b32.xlu0 %v1343, 96
      %v3408 = vpop.permute.xlu0 %3407
      %3409 = vrot.lane.b32.xlu0 %v1344, 96
      %v3410 = vpop.permute.xlu0 %3409
      %3411 = vrot.lane.b32.xlu0 %v1345, 96
      %v3412 = vpop.permute.xlu0 %3411
      %3413 = vrot.lane.b32.xlu0 %v1346, 96
      %v3414 = vpop.permute.xlu0 %3413
      %3415 = vrot.lane.b32.xlu0 %v1347, 96
      %v3416 = vpop.permute.xlu0 %3415
      %3417 = vrot.lane.b32.xlu0 %v1348, 96
      %v3418 = vpop.permute.xlu0 %3417
      %3419 = vrot.lane.b32.xlu0 %v1349, 96
      %v3420 = vpop.permute.xlu0 %3419
      %3421 = vrot.lane.b32.xlu0 %v1350, 96
      %v3422 = vpop.permute.xlu0 %3421
      %3423 = vrot.lane.b32.xlu0 %v1351, 96
      %v3424 = vpop.permute.xlu0 %3423
      %3425 = vrot.lane.b32.xlu0 %v1352, 96
      %v3426 = vpop.permute.xlu0 %3425
      %v3459 = vadd.f32 %v2964, %v3364
      %v3460 = vadd.f32 %v2966, %v3366
      %v3461 = vadd.f32 %v2969, %v3368
      %v3462 = vadd.f32 %v2971, %v3370
      %v3463 = vadd.f32 %v2974, %v3372
      %v3464 = vadd.f32 %v2976, %v3374
      %v3465 = vadd.f32 %v2979, %v3376
      %v3466 = vadd.f32 %v2981, %v3378
      %v3467 = vadd.f32 %v2984, %v3380
      %v3468 = vadd.f32 %v2986, %v3382
      %v3469 = vadd.f32 %v2989, %v3384
      %v3470 = vadd.f32 %v2991, %v3386
      %v3471 = vadd.f32 %v2994, %v3388
      %v3472 = vadd.f32 %v2996, %v3390
      %v3473 = vadd.f32 %v2999, %v3392
      %v3474 = vadd.f32 %v3001, %v3394
      %v3475 = vadd.f32 %v3004, %v3396
      %v3476 = vadd.f32 %v3006, %v3398
      %v3477 = vadd.f32 %v3009, %v3400
      %v3478 = vadd.f32 %v3011, %v3402
      %v3479 = vadd.f32 %v3014, %v3404
      %v3480 = vadd.f32 %v3016, %v3406
      %v3481 = vadd.f32 %v3019, %v3408
      %v3482 = vadd.f32 %v3021, %v3410
      %v3483 = vadd.f32 %v3024, %v3412
      %v3484 = vadd.f32 %v3026, %v3414
      %v3485 = vadd.f32 %v3029, %v3416
      %v3486 = vadd.f32 %v3031, %v3418
      %v3487 = vadd.f32 %v3034, %v3420
      %v3488 = vadd.f32 %v3036, %v3422
      %v3489 = vadd.f32 %v3039, %v3424
      %v3490 = vadd.f32 %v3041, %v3426
      %v3491 = vsel %vm2325, %v3043, %v3203
      %v3492 = vsel %vm2325, %v3044, %v3204
      %v3493 = vsel %vm2325, %v3045, %v3205
      %v3494 = vsel %vm2325, %v3046, %v3206
      %v3495 = vsel %vm2325, %v3047, %v3207
      %v3496 = vsel %vm2325, %v3048, %v3208
      %v3497 = vsel %vm2325, %v3049, %v3209
      %v3498 = vsel %vm2325, %v3050, %v3210
      %v3499 = vsel %vm2325, %v3051, %v3211
      %v3500 = vsel %vm2325, %v3052, %v3212
      %v3501 = vsel %vm2325, %v3053, %v3213
      %v3502 = vsel %vm2325, %v3054, %v3214
      %v3503 = vsel %vm2325, %v3055, %v3215
      %v3504 = vsel %vm2325, %v3056, %v3216
      %v3505 = vsel %vm2325, %v3057, %v3217
      %v3506 = vsel %vm2325, %v3058, %v3218
      %v3507 = vsel %vm2325, %v3059, %v3219
      %v3508 = vsel %vm2325, %v3060, %v3220
      %v3509 = vsel %vm2325, %v3061, %v3221
      %v3510 = vsel %vm2325, %v3062, %v3222
      %v3511 = vsel %vm2325, %v3063, %v3223
      %v3512 = vsel %vm2325, %v3064, %v3224
      %v3513 = vsel %vm2325, %v3065, %v3225
      %v3514 = vsel %vm2325, %v3066, %v3226
      %v3515 = vsel %vm2325, %v3067, %v3227
      %v3516 = vsel %vm2325, %v3068, %v3228
      %v3517 = vsel %vm2325, %v3069, %v3229
      %v3518 = vsel %vm2325, %v3070, %v3230
      %v3519 = vsel %vm2325, %v3071, %v3231
      %v3520 = vsel %vm2325, %v3072, %v3232
      %v3521 = vsel %vm2325, %v3073, %v3233
      %v3522 = vsel %vm2325, %v3074, %v3234
      %3523 = vst.msk [vmem:[%s360] sm:$0xff] %vm2374, %v3491
      %3524 = vst.msk [vmem:[%s360 + $0x8] sm:$0xff] %vm2374, %v3492
      %3525 = vst.msk [vmem:[%s360 + $0x20] sm:$0xff] %vm2374, %v3493
      %3526 = vst.msk [vmem:[%s360 + $0x28] sm:$0xff] %vm2374, %v3494
      %3527 = vst.msk [vmem:[%s360 + $0x40] sm:$0xff] %vm2374, %v3495
      %3528 = vst.msk [vmem:[%s360 + $0x48] sm:$0xff] %vm2374, %v3496
      %3529 = vst.msk [vmem:[%s360 + $0x60] sm:$0xff] %vm2374, %v3497
      %3530 = vst.msk [vmem:[%s360 + $0x68] sm:$0xff] %vm2374, %v3498
      %3531 = vst.msk [vmem:[%s360 + $0x80] sm:$0xff] %vm2374, %v3499
      %3532 = vst.msk [vmem:[%s360 + $0x88] sm:$0xff] %vm2374, %v3500
      %3533 = vst.msk [vmem:[%s360 + $0xa0] sm:$0xff] %vm2374, %v3501
      %3534 = vst.msk [vmem:[%s360 + $0xa8] sm:$0xff] %vm2374, %v3502
      %3535 = vst.msk [vmem:[%s360 + $0xc0] sm:$0xff] %vm2374, %v3503
      %3536 = vst.msk [vmem:[%s360 + $0xc8] sm:$0xff] %vm2374, %v3504
      %3537 = vst.msk [vmem:[%s360 + $0xe0] sm:$0xff] %vm2374, %v3505
      %3538 = vst.msk [vmem:[%s360 + $0xe8] sm:$0xff] %vm2374, %v3506
      %3539 = vst.msk [vmem:[%s360 + $0x100] sm:$0xff] %vm2374, %v3507
      %3540 = vst.msk [vmem:[%s360 + $0x108] sm:$0xff] %vm2374, %v3508
      %3541 = vst.msk [vmem:[%s360 + $0x120] sm:$0xff] %vm2374, %v3509
      %3542 = vst.msk [vmem:[%s360 + $0x128] sm:$0xff] %vm2374, %v3510
      %3543 = vst.msk [vmem:[%s360 + $0x140] sm:$0xff] %vm2374, %v3511
      %3544 = vst.msk [vmem:[%s360 + $0x148] sm:$0xff] %vm2374, %v3512
      %3545 = vst.msk [vmem:[%s360 + $0x160] sm:$0xff] %vm2374, %v3513
      %3546 = vst.msk [vmem:[%s360 + $0x168] sm:$0xff] %vm2374, %v3514
      %3547 = vst.msk [vmem:[%s360 + $0x180] sm:$0xff] %vm2374, %v3515
      %3548 = vst.msk [vmem:[%s360 + $0x188] sm:$0xff] %vm2374, %v3516
      %3549 = vst.msk [vmem:[%s360 + $0x1a0] sm:$0xff] %vm2374, %v3517
      %3550 = vst.msk [vmem:[%s360 + $0x1a8] sm:$0xff] %vm2374, %v3518
      %3551 = vst.msk [vmem:[%s360 + $0x1c0] sm:$0xff] %vm2374, %v3519
      %3552 = vst.msk [vmem:[%s360 + $0x1c8] sm:$0xff] %vm2374, %v3520
      %3553 = vst.msk [vmem:[%s360 + $0x1e0] sm:$0xff] %vm2374, %v3521
      %3554 = vst.msk [vmem:[%s360 + $0x1e8] sm:$0xff] %vm2374, %v3522
      %3587 = vrot.lane.b32.xlu0 %v3331, 64
      %v3588 = vpop.permute.xlu0 %3587
      %3589 = vrot.lane.b32.xlu0 %v3332, 64
      %v3590 = vpop.permute.xlu0 %3589
      %3591 = vrot.lane.b32.xlu0 %v3333, 64
      %v3592 = vpop.permute.xlu0 %3591
      %3593 = vrot.lane.b32.xlu0 %v3334, 64
      %v3594 = vpop.permute.xlu0 %3593
      %3595 = vrot.lane.b32.xlu0 %v3335, 64
      %v3596 = vpop.permute.xlu0 %3595
      %3597 = vrot.lane.b32.xlu0 %v3336, 64
      %v3598 = vpop.permute.xlu0 %3597
      %3599 = vrot.lane.b32.xlu0 %v3337, 64
      %v3600 = vpop.permute.xlu0 %3599
      %3601 = vrot.lane.b32.xlu0 %v3338, 64
      %v3602 = vpop.permute.xlu0 %3601
      %3603 = vrot.lane.b32.xlu0 %v3339, 64
      %v3604 = vpop.permute.xlu0 %3603
      %3605 = vrot.lane.b32.xlu0 %v3340, 64
      %v3606 = vpop.permute.xlu0 %3605
      %3607 = vrot.lane.b32.xlu0 %v3341, 64
      %v3608 = vpop.permute.xlu0 %3607
      %3609 = vrot.lane.b32.xlu0 %v3342, 64
      %v3610 = vpop.permute.xlu0 %3609
      %3611 = vrot.lane.b32.xlu0 %v3343, 64
      %v3612 = vpop.permute.xlu0 %3611
      %3613 = vrot.lane.b32.xlu0 %v3344, 64
      %v3614 = vpop.permute.xlu0 %3613
      %3615 = vrot.lane.b32.xlu0 %v3345, 64
      %v3616 = vpop.permute.xlu0 %3615
      %3617 = vrot.lane.b32.xlu0 %v3346, 64
      %v3618 = vpop.permute.xlu0 %3617
      %3619 = vrot.lane.b32.xlu0 %v3347, 64
      %v3620 = vpop.permute.xlu0 %3619
      %3621 = vrot.lane.b32.xlu0 %v3348, 64
      %v3622 = vpop.permute.xlu0 %3621
      %3623 = vrot.lane.b32.xlu0 %v3349, 64
      %v3624 = vpop.permute.xlu0 %3623
      %3625 = vrot.lane.b32.xlu0 %v3350, 64
      %v3626 = vpop.permute.xlu0 %3625
      %3627 = vrot.lane.b32.xlu0 %v3351, 64
      %v3628 = vpop.permute.xlu0 %3627
      %3629 = vrot.lane.b32.xlu0 %v3352, 64
      %v3630 = vpop.permute.xlu0 %3629
      %3631 = vrot.lane.b32.xlu0 %v3353, 64
      %v3632 = vpop.permute.xlu0 %3631
      %3633 = vrot.lane.b32.xlu0 %v3354, 64
      %v3634 = vpop.permute.xlu0 %3633
      %3635 = vrot.lane.b32.xlu0 %v3355, 64
      %v3636 = vpop.permute.xlu0 %3635
      %3637 = vrot.lane.b32.xlu0 %v3356, 64
      %v3638 = vpop.permute.xlu0 %3637
      %3639 = vrot.lane.b32.xlu0 %v3357, 64
      %v3640 = vpop.permute.xlu0 %3639
      %3641 = vrot.lane.b32.xlu0 %v3358, 64
      %v3642 = vpop.permute.xlu0 %3641
      %3643 = vrot.lane.b32.xlu0 %v3359, 64
      %v3644 = vpop.permute.xlu0 %3643
      %3645 = vrot.lane.b32.xlu0 %v3360, 64
      %v3646 = vpop.permute.xlu0 %3645
      %3647 = vrot.lane.b32.xlu0 %v3361, 64
      %v3648 = vpop.permute.xlu0 %3647
      %3649 = vrot.lane.b32.xlu0 %v3362, 64
      %v3650 = vpop.permute.xlu0 %3649
      %3715 = vrot.lane.b32.xlu0 %v3459, 64
      %v3716 = vpop.permute.xlu0 %3715
      %3717 = vrot.lane.b32.xlu0 %v3460, 64
      %v3718 = vpop.permute.xlu0 %3717
      %3719 = vrot.lane.b32.xlu0 %v3461, 64
      %v3720 = vpop.permute.xlu0 %3719
      %3721 = vrot.lane.b32.xlu0 %v3462, 64
      %v3722 = vpop.permute.xlu0 %3721
      %3723 = vrot.lane.b32.xlu0 %v3463, 64
      %v3724 = vpop.permute.xlu0 %3723
      %3725 = vrot.lane.b32.xlu0 %v3464, 64
      %v3726 = vpop.permute.xlu0 %3725
      %3727 = vrot.lane.b32.xlu0 %v3465, 64
      %v3728 = vpop.permute.xlu0 %3727
      %3729 = vrot.lane.b32.xlu0 %v3466, 64
      %v3730 = vpop.permute.xlu0 %3729
      %3731 = vrot.lane.b32.xlu0 %v3467, 64
      %v3732 = vpop.permute.xlu0 %3731
      %3733 = vrot.lane.b32.xlu0 %v3468, 64
      %v3734 = vpop.permute.xlu0 %3733
      %3735 = vrot.lane.b32.xlu0 %v3469, 64
      %v3736 = vpop.permute.xlu0 %3735
      %3737 = vrot.lane.b32.xlu0 %v3470, 64
      %v3738 = vpop.permute.xlu0 %3737
      %3739 = vrot.lane.b32.xlu0 %v3471, 64
      %v3740 = vpop.permute.xlu0 %3739
      %3741 = vrot.lane.b32.xlu0 %v3472, 64
      %v3742 = vpop.permute.xlu0 %3741
      %3743 = vrot.lane.b32.xlu0 %v3473, 64
      %v3744 = vpop.permute.xlu0 %3743
      %3745 = vrot.lane.b32.xlu0 %v3474, 64
      %v3746 = vpop.permute.xlu0 %3745
      %3747 = vrot.lane.b32.xlu0 %v3475, 64
      %v3748 = vpop.permute.xlu0 %3747
      %3749 = vrot.lane.b32.xlu0 %v3476, 64
      %v3750 = vpop.permute.xlu0 %3749
      %3751 = vrot.lane.b32.xlu0 %v3477, 64
      %v3752 = vpop.permute.xlu0 %3751
      %3753 = vrot.lane.b32.xlu0 %v3478, 64
      %v3754 = vpop.permute.xlu0 %3753
      %3755 = vrot.lane.b32.xlu0 %v3479, 64
      %v3756 = vpop.permute.xlu0 %3755
      %3757 = vrot.lane.b32.xlu0 %v3480, 64
      %v3758 = vpop.permute.xlu0 %3757
      %3759 = vrot.lane.b32.xlu0 %v3481, 64
      %v3760 = vpop.permute.xlu0 %3759
      %3761 = vrot.lane.b32.xlu0 %v3482, 64
      %v3762 = vpop.permute.xlu0 %3761
      %3763 = vrot.lane.b32.xlu0 %v3483, 64
      %v3764 = vpop.permute.xlu0 %3763
      %3765 = vrot.lane.b32.xlu0 %v3484, 64
      %v3766 = vpop.permute.xlu0 %3765
      %3767 = vrot.lane.b32.xlu0 %v3485, 64
      %v3768 = vpop.permute.xlu0 %3767
      %3769 = vrot.lane.b32.xlu0 %v3486, 64
      %v3770 = vpop.permute.xlu0 %3769
      %3771 = vrot.lane.b32.xlu0 %v3487, 64
      %v3772 = vpop.permute.xlu0 %3771
      %3773 = vrot.lane.b32.xlu0 %v3488, 64
      %v3774 = vpop.permute.xlu0 %3773
      %3775 = vrot.lane.b32.xlu0 %v3489, 64
      %v3776 = vpop.permute.xlu0 %3775
      %3777 = vrot.lane.b32.xlu0 %v3490, 64
      %v3778 = vpop.permute.xlu0 %3777
      %v3811 = vsel %vm2325, %v3588, %v3716
      %v3812 = vsel %vm2325, %v3590, %v3718
      %v3813 = vsel %vm2325, %v3592, %v3720
      %v3814 = vsel %vm2325, %v3594, %v3722
      %v3815 = vsel %vm2325, %v3596, %v3724
      %v3816 = vsel %vm2325, %v3598, %v3726
      %v3817 = vsel %vm2325, %v3600, %v3728
      %v3818 = vsel %vm2325, %v3602, %v3730
      %v3819 = vsel %vm2325, %v3604, %v3732
      %v3820 = vsel %vm2325, %v3606, %v3734
      %v3821 = vsel %vm2325, %v3608, %v3736
      %v3822 = vsel %vm2325, %v3610, %v3738
      %v3823 = vsel %vm2325, %v3612, %v3740
      %v3824 = vsel %vm2325, %v3614, %v3742
      %v3825 = vsel %vm2325, %v3616, %v3744
      %v3826 = vsel %vm2325, %v3618, %v3746
      %v3827 = vsel %vm2325, %v3620, %v3748
      %v3828 = vsel %vm2325, %v3622, %v3750
      %v3829 = vsel %vm2325, %v3624, %v3752
      %v3830 = vsel %vm2325, %v3626, %v3754
      %v3831 = vsel %vm2325, %v3628, %v3756
      %v3832 = vsel %vm2325, %v3630, %v3758
      %v3833 = vsel %vm2325, %v3632, %v3760
      %v3834 = vsel %vm2325, %v3634, %v3762
      %v3835 = vsel %vm2325, %v3636, %v3764
      %v3836 = vsel %vm2325, %v3638, %v3766
      %v3837 = vsel %vm2325, %v3640, %v3768
      %v3838 = vsel %vm2325, %v3642, %v3770
      %v3839 = vsel %vm2325, %v3644, %v3772
      %v3840 = vsel %vm2325, %v3646, %v3774
      %v3841 = vsel %vm2325, %v3648, %v3776
      %v3842 = vsel %vm2325, %v3650, %v3778
      %s3843 = scalar_lea.vmem %s360, 16
      %3844 = vst.msk [vmem:[%s3843] sm:$0xff] %vm2374, %v3811
      %3845 = vst.msk [vmem:[%s3843 + $0x8] sm:$0xff] %vm2374, %v3812
      %3846 = vst.msk [vmem:[%s3843 + $0x20] sm:$0xff] %vm2374, %v3813
      %3847 = vst.msk [vmem:[%s3843 + $0x28] sm:$0xff] %vm2374, %v3814
      %3848 = vst.msk [vmem:[%s3843 + $0x40] sm:$0xff] %vm2374, %v3815
      %3849 = vst.msk [vmem:[%s3843 + $0x48] sm:$0xff] %vm2374, %v3816
      %3850 = vst.msk [vmem:[%s3843 + $0x60] sm:$0xff] %vm2374, %v3817
      %3851 = vst.msk [vmem:[%s3843 + $0x68] sm:$0xff] %vm2374, %v3818
      %3852 = vst.msk [vmem:[%s3843 + $0x80] sm:$0xff] %vm2374, %v3819
      %3853 = vst.msk [vmem:[%s3843 + $0x88] sm:$0xff] %vm2374, %v3820
      %3854 = vst.msk [vmem:[%s3843 + $0xa0] sm:$0xff] %vm2374, %v3821
      %3855 = vst.msk [vmem:[%s3843 + $0xa8] sm:$0xff] %vm2374, %v3822
      %3856 = vst.msk [vmem:[%s3843 + $0xc0] sm:$0xff] %vm2374, %v3823
      %3857 = vst.msk [vmem:[%s3843 + $0xc8] sm:$0xff] %vm2374, %v3824
      %3858 = vst.msk [vmem:[%s3843 + $0xe0] sm:$0xff] %vm2374, %v3825
      %3859 = vst.msk [vmem:[%s3843 + $0xe8] sm:$0xff] %vm2374, %v3826
      %3860 = vst.msk [vmem:[%s3843 + $0x100] sm:$0xff] %vm2374, %v3827
      %3861 = vst.msk [vmem:[%s3843 + $0x108] sm:$0xff] %vm2374, %v3828
      %3862 = vst.msk [vmem:[%s3843 + $0x120] sm:$0xff] %vm2374, %v3829
      %3863 = vst.msk [vmem:[%s3843 + $0x128] sm:$0xff] %vm2374, %v3830
      %3864 = vst.msk [vmem:[%s3843 + $0x140] sm:$0xff] %vm2374, %v3831
      %3865 = vst.msk [vmem:[%s3843 + $0x148] sm:$0xff] %vm2374, %v3832
      %3866 = vst.msk [vmem:[%s3843 + $0x160] sm:$0xff] %vm2374, %v3833
      %3867 = vst.msk [vmem:[%s3843 + $0x168] sm:$0xff] %vm2374, %v3834
      %3868 = vst.msk [vmem:[%s3843 + $0x180] sm:$0xff] %vm2374, %v3835
      %3869 = vst.msk [vmem:[%s3843 + $0x188] sm:$0xff] %vm2374, %v3836
      %3870 = vst.msk [vmem:[%s3843 + $0x1a0] sm:$0xff] %vm2374, %v3837
      %3871 = vst.msk [vmem:[%s3843 + $0x1a8] sm:$0xff] %vm2374, %v3838
      %3872 = vst.msk [vmem:[%s3843 + $0x1c0] sm:$0xff] %vm2374, %v3839
      %3873 = vst.msk [vmem:[%s3843 + $0x1c8] sm:$0xff] %vm2374, %v3840
      %3874 = vst.msk [vmem:[%s3843 + $0x1e0] sm:$0xff] %vm2374, %v3841
      %3875 = vst.msk [vmem:[%s3843 + $0x1e8] sm:$0xff] %vm2374, %v3842
      %s3876 = smul.u32 16, %s24
      %p3877 = scmp.lt.s32.totalorder %s23, 1
      %s3878 = scalar_select %p3877, %s23, 1
      %p3879 = scmp.lt.s32.totalorder %s3876, 15
      %s3880 = scalar_select %p3879, %s3876, 15
      %s3881 = smul.addr %s3880, 4
      %s3882 = smul.addr %s3878, 64
      %s3883 = sadd.s32 %s3881, %s3882
      %s3884 = smul.addr %s3883, 8
      %s3885 = scalar_lea.vmem %s8, %s3884
      // Predicated region
      $region57: #{resnet_block_up.5} parent=51 // pred_check
        %p3886 = pneg %p231
      $region58: #{resnet_block_up.5} parent=51 // pred_check_branch
        %3888 = sbr.rel (%p3886) target = $region60
      $region59: #{resnet_block_up.5} parent=51 // pred_region
        %s3889 = smul.u32 16, %s24
      $region60: #{resnet_block_up.5} parent=51 // pred_fallthru
        _
    $region52: #{resnet_block_up.5} parent=5 // pred_fallthru
      _
    %p3890 = scmp.le.s32.totalorder 2, %s14
    // Predicated region
    $region61: #{resnet_block_up.5} parent=5 // pred_check
      %p3891 = pneg %p3890
    $region62: #{resnet_block_up.5} parent=5 // pred_check_branch
      %3893 = sbr.rel (%p3891) target = $region64
    $region63: #{resnet_block_up.5} parent=5 // pred_region
      %s3894 = ssub.s32 %s14, 2
      // Predicated region
      $region65: #{resnet_block_up.5} parent=63 // pred_check
        %p3895 = pneg %p237
      $region66: #{resnet_block_up.5} parent=63 // pred_check_branch
        %3897 = sbr.rel (%p3895) target = $region68
      $region67: #{resnet_block_up.5} parent=63 // pred_region
        %s3898 = smul.u32 16, %s26
        %p3899 = scmp.lt.s32.totalorder %s25, 1
        %s3900 = scalar_select %p3899, %s25, 1
        %p3901 = scmp.lt.s32.totalorder %s3898, 15
        %s3902 = scalar_select %p3901, %s3898, 15
        %s3903 = smul.addr %s3902, 4
        %s3904 = smul.addr %s3900, 64
        %s3905 = sadd.s32 %s3903, %s3904
        %s3906 = smul.addr %s3905, 8
        %s3907 = scalar_lea.vmem %s8, %s3906
      $region68: #{resnet_block_up.5} parent=63 // pred_fallthru
        _
    $region64: #{resnet_block_up.5} parent=5 // pred_fallthru
      _
  $region6: #{resnet_block_up.5} parent=0 // loop_footer
    %s18 = sadd.s32 1, %s14
  $region7: #{resnet_block_up.5} parent=0 // loop_footer_branch
    %13 = sbr.rel target = $region3
  $region8: #{resnet_block_up.5} parent=0 // loop_exit
    _

</llo_original>
